<compile_context>
chip_gen: v6e
topology: v6e:2x2x1
jax: 0.10.0
libtpu: 0.0.40
codegen_flags: <defaults>
</compile_context>

<pallas_src>
import functools

import jax
import jax.numpy as jnp
from jax import lax
from jax.experimental import pallas as pl
from jax.experimental.pallas import tpu as pltpu


# ---------------------------------------------------------------------------
# Static 3x3 kernel rotation tables (dest[r][c] <- src (r', c')), matching
# AdaptiveAngleConv._rotate_kernel for n = angle // 45 in {1, 2, 3, 4}.
# ---------------------------------------------------------------------------
_ROT_SRC = {
    1: [[(1, 0), (0, 0), (0, 1)],
        [(2, 0), (1, 1), (0, 2)],
        [(2, 1), (2, 2), (1, 2)]],
    2: [[(2, 0), (1, 0), (0, 0)],
        [(2, 1), (1, 1), (0, 1)],
        [(2, 2), (1, 2), (0, 2)]],
    3: [[(2, 1), (2, 0), (1, 0)],
        [(2, 2), (1, 1), (0, 0)],
        [(1, 2), (0, 2), (0, 1)]],
    4: [[(2, 2), (2, 1), (2, 0)],
        [(1, 2), (1, 1), (1, 0)],
        [(0, 2), (0, 1), (0, 0)]],
}


def _rotate_kernel(w, n):
    """w: (Cout, Cin, 3, 3) -> rotated (Cout, Cin, 3, 3)."""
    src = _ROT_SRC[n]
    src_r = jnp.array([[s[0] for s in row] for row in src], dtype=jnp.int32)
    src_c = jnp.array([[s[1] for s in row] for row in src], dtype=jnp.int32)
    return w[:, :, src_r, src_c]


# ---------------------------------------------------------------------------
# Attention head (tiny MLP on globally-pooled features) — plain JAX glue.
# ---------------------------------------------------------------------------
def _attention_head(x, params):
    avg = jnp.mean(x, axis=(2, 3))                                   # (bs, Cin)
    hid = jax.nn.relu(avg @ params["att_w1"].T)                      # (bs, hidden)
    n_att = jax.nn.softmax((hid @ params["att_wn"].T) / params["temprature"], axis=-1)
    cin_att = jax.nn.sigmoid(hid @ params["att_wc"].T)               # (bs, Cin)
    k2_att = jax.nn.sigmoid(hid @ params["att_wk"].T)                # (bs, ks*ks)
    out_att = jax.nn.sigmoid(hid @ params["att_wo"].T)               # (bs, Cout)
    return n_att, cin_att, k2_att, out_att


def _build_kernels(params, angle_list):
    w0 = params["conv_w"]                                            # (Cout, Cin, 3, 3)
    K = len(angle_list)
    ks = [w0] + [_rotate_kernel(w0, angle_list[i] // 45) for i in range(1, K)]
    k_sum = jnp.stack(ks, axis=0)                                    # (K, Cout, Cin, 3, 3)
    b_sum = jnp.concatenate([params["conv_b"][None, :], params["extra_bias"]], axis=0)
    return k_sum, b_sum                                              # (K,Cout,Cin,3,3),(K,Cout)


# ---------------------------------------------------------------------------
# Pallas kernel: one grid step = (batch sample, row tile).
#   - zero-pads the sample's NCHW activations into a VMEM scratch
#   - builds a transposed im2col slab (9*Cin, TH*W)  (pixels on lanes)
#   - one deep MXU matmul with the pre-aggregated per-sample weights
#   - adds the aggregated bias and stores a lane-dense NCHW output block
# ---------------------------------------------------------------------------
def _aar_conv_kernel(x_ref, w_ref, b_ref, o_ref, xp_ref,
                     *, H, W, TH, ks, pad, use_bf16):
    Cin = x_ref.shape[1]
    h0 = pl.multiple_of(pl.program_id(1) * TH, TH)

    # In-kernel zero padding (no wrapper-side jnp.pad HBM round trip).
    xp_ref[...] = jnp.zeros_like(xp_ref)
    xp_ref[:, pl.ds(pad, H), pl.ds(pad, W)] = x_ref[0].astype(jnp.float32)

    # Transposed im2col: rows = (tap, cin), cols = this tile's flattened pixels.
    taps = []
    for dy in range(ks):
        for dx in range(ks):
            win = xp_ref[:, pl.ds(h0 + dy, TH), pl.ds(dx, W)]        # (Cin, TH, W)
            taps.append(win.reshape(Cin, TH * W))
    xs = jnp.concatenate(taps, axis=0)                               # (ks*ks*Cin, TH*W)

    w_b = w_ref[0].astype(jnp.float32)                               # (Cout, ks*ks*Cin)
    if use_bf16:  # v6e/v7x MXU throughput knob (requires a looser validation tol)
        xs = xs.astype(jnp.bfloat16)
        w_b = w_b.astype(jnp.bfloat16)

    acc = jnp.dot(w_b, xs, preferred_element_type=jnp.float32)       # (Cout, TH*W)
    acc = acc + b_ref[0, 0, :].astype(jnp.float32)[:, None]
    o_ref[0] = acc.astype(o_ref.dtype)


def _pick_row_tile(H, W):
    """Largest row tile TH dividing H with a lane-dense output (TH*W % 128 == 0),
    preferring one that yields >= 2 spatial tiles (keeps both v7x cores busy)."""
    best = None
    for th in range(H, 0, -1):
        if H % th or (th * W) % 128:
            continue
        if best is None:
            best = th
        if H // th >= 2:
            return th
    return best if best is not None else H


# ---------------------------------------------------------------------------
# Wrapper: attention head + per-sample weight aggregation in plain JAX (tiny),
# then the Pallas kernel for the per-sample grouped conv (the hot path).
# ---------------------------------------------------------------------------
def adaptive_angle_conv(x, params, *, ksize=3, stride=1, padding=1,
                        angle_list=(0, 45, 90, 135, 180),
                        row_tile=None, use_bf16_matmul=False):
    assert stride == 1 and padding == ksize // 2, "kernel implements same-size 3x3 conv"
    bs, Cin, H, W = x.shape
    Cout = params["conv_w"].shape[0]
    ks2 = ksize * ksize

    k_sum, b_sum = _build_kernels(params, angle_list)                 # (K,Cout,Cin,3,3),(K,Cout)
    n_att, cin_att, k2_att, out_att = _attention_head(x, params)

    # aggregate_weight = softmax_att @ k_sum, with all sigmoid attentions folded
    # into the weights (linearly equivalent to scaling x / the per-tap products).
    # This is a (bs,K)x(K,Cout*Cin*ks2) matmul + elementwise scales — negligible
    # next to the conv — and removes the K-loop + K-times weight residency from
    # the Pallas kernel.
    agg_w = jnp.einsum("bk,koihw->boihw", n_att, k_sum)               # (bs,Cout,Cin,kh,kw)
    agg_w = agg_w * cin_att[:, None, :, None, None]
    agg_w = agg_w * k2_att.reshape(bs, 1, 1, ksize, ksize)
    agg_w = agg_w * out_att[:, :, None, None, None]
    # tap-major contraction layout matching the in-kernel im2col slab
    w_flat = jnp.transpose(agg_w, (0, 1, 3, 4, 2)).reshape(bs, Cout, ks2 * Cin)
    agg_b = (n_att @ b_sum).reshape(bs, 1, Cout)                      # bias NOT out_att-scaled

    TH = row_tile if row_tile is not None else _pick_row_tile(H, W)
    assert H % TH == 0
    n_h = H // TH

    kernel = functools.partial(_aar_conv_kernel, H=H, W=W, TH=TH, ks=ksize,
                               pad=padding, use_bf16=use_bf16_matmul)

    y_flat = pl.pallas_call(
        kernel,
        out_shape=jax.ShapeDtypeStruct((bs, Cout, H * W), x.dtype),
        grid=(bs, n_h),
        in_specs=[
            pl.BlockSpec((1, Cin, H, W), lambda b, h: (b, 0, 0, 0)),        # x, NCHW
            pl.BlockSpec((1, Cout, ks2 * Cin), lambda b, h: (b, 0, 0)),     # per-sample weights
            pl.BlockSpec((1, 1, Cout), lambda b, h: (b, 0, 0)),             # per-sample bias
        ],
        out_specs=pl.BlockSpec((1, Cout, TH * W), lambda b, h: (b, 0, h)),  # lane-dense NCHW
        scratch_shapes=[pltpu.VMEM((Cin, H + 2 * padding, W + 2 * padding), jnp.float32)],
        compiler_params=pltpu.CompilerParams(
            dimension_semantics=("parallel", "parallel")),
    )(x, w_flat, agg_b)

    return y_flat.reshape(bs, Cout, H, W)   # pure reshape — no output transpose


# ---------------------------------------------------------------------------
# Pure-JAX reference (mirrors the PyTorch forward exactly) for verification.
# ---------------------------------------------------------------------------
def reference_forward(x, params, *, ksize=3, stride=1, padding=1,
                      angle_list=(0, 45, 90, 135, 180)):
    bs, Cin, H, W = x.shape
    Cout = params["conv_w"].shape[0]
    k_sum, b_sum = _build_kernels(params, angle_list)
    n_att, cin_att, k2_att, out_att = _attention_head(x, params)

    agg_w = jnp.einsum("bk,kochw->bochw", n_att, k_sum)              # (bs,Cout,Cin,3,3)
    agg_w = agg_w * cin_att[:, None, :, None, None]
    agg_w = agg_w * k2_att.reshape(bs, 1, 1, ksize, ksize)
    agg_w = agg_w * out_att[:, :, None, None, None]
    agg_b = n_att @ b_sum                                            # (bs, Cout)

    y = lax.conv_general_dilated(
        x.reshape(1, bs * Cin, H, W),
        agg_w.reshape(bs * Cout, Cin, ksize, ksize),
        window_strides=(stride, stride),
        padding=((padding, padding), (padding, padding)),
        dimension_numbers=("NCHW", "OIHW", "NCHW"),
        feature_group_count=bs,
    )
    return y.reshape(bs, Cout, H, W) + agg_b[:, :, None, None]


# ---------------------------------------------------------------------------
# Deterministic parameter init (shapes taken from the module __init__).
# ---------------------------------------------------------------------------
def init_params(key, Cin, Cout, K, ksize, ratio=16):
    assert Cin > ratio
    hidden = Cin // ratio
    keys = jax.random.split(key, 8)

    def kaiming(k, shape, fan_out):
        return jax.random.normal(k, shape, jnp.float32) * jnp.sqrt(2.0 / fan_out)

    return dict(
        att_w1=kaiming(keys[0], (hidden, Cin), hidden),
        att_wn=kaiming(keys[1], (K, hidden), K),
        att_wc=kaiming(keys[2], (Cin, hidden), Cin),
        att_wk=kaiming(keys[3], (ksize * ksize, hidden), ksize * ksize),
        att_wo=kaiming(keys[4], (Cout, hidden), Cout),
        conv_w=jax.random.normal(keys[5], (Cout, Cin, ksize, ksize), jnp.float32)
        * (1.0 / jnp.sqrt(Cin * ksize * ksize)),
        conv_b=jax.random.normal(keys[6], (Cout,), jnp.float32) * 0.1,
        extra_bias=jax.random.normal(keys[7], (K - 1, Cout), jnp.float32),
        temprature=30.0,
    )


if __name__ == "__main__":
    bs, Cin, Cout, H, W = 2, 32, 16, 16, 16      # Cin must exceed ratio=16
    ksize, K = 3, 5
    angle_list = (0, 45, 90, 135, 180)

    root = jax.random.PRNGKey(0)
    kx, kp = jax.random.split(root)
    x = jax.random.normal(kx, (bs, Cin, H, W), jnp.float32)
    params = init_params(kp, Cin, Cout, K, ksize)

    y = adaptive_angle_conv(x, params, ksize=ksize, angle_list=angle_list)
    y = jax.block_until_ready(y)

    y_ref = jax.block_until_ready(reference_forward(x, params, ksize=ksize,
                                                    angle_list=angle_list))
    assert y.shape == (bs, Cout, H, W)
    max_err = float(jnp.max(jnp.abs(y - y_ref)))
    assert max_err < 1e-3, f"mismatch vs reference: {max_err}"

    print("KERNEL_OK")
</pallas_src>

<mosaic_0001>
module attributes {stable_mosaic.version = 11 : i64} {
  func.func @_aar_conv_kernel(%arg0: i32, %arg1: i32, %arg2: memref<1x32x16x16xf32, #tpu.memory_space<vmem>>, %arg3: memref<1x16x288xf32, #tpu.memory_space<vmem>>, %arg4: memref<1x1x16xf32, #tpu.memory_space<vmem>>, %arg5: memref<1x16x128xf32, #tpu.memory_space<vmem>>, %arg6: memref<32x18x18xf32, #tpu.memory_space<vmem>>) attributes {dimension_semantics = [#tpu.dimension_semantics<parallel>, #tpu.dimension_semantics<parallel>], iteration_bounds = array<i64: 2, 2>, scalar_prefetch = 0 : i64, scratch_operands = 1 : i64, tpu.core_type = #tpu.core_type<tc>, window_params = [{transform_indices = @transform_0, window_bounds = array<i64: 1, 32, 16, 16>}, {transform_indices = @transform_1, window_bounds = array<i64: 1, 16, 288>}, {transform_indices = @transform_2, window_bounds = array<i64: 1, 1, 16>}, {transform_indices = @transform_3, window_bounds = array<i64: 1, 16, 128>}]} {
    %c8_i32 = arith.constant 8 : i32
    %0 = arith.muli %arg1, %c8_i32 : i32
    %1 = tpu.assume_multiple %0, 8 : i32
    %cst = arith.constant 0.000000e+00 : f32
    %2 = vector.broadcast %cst : f32 to vector<32x18x18xf32>
    %c0 = arith.constant 0 : index
    %c0_0 = arith.constant 0 : index
    %c0_1 = arith.constant 0 : index
    %3 = vector.load %arg6[%c0, %c0_0, %c0_1] : memref<32x18x18xf32, #tpu.memory_space<vmem>>, vector<32x18x18xf32>
    tpu.vector_store %arg6[%c0, %c0_0, %c0_1], %2 {strides = array<i32>} : memref<32x18x18xf32, #tpu.memory_space<vmem>>, vector<32x18x18xf32>,
    %c0_2 = arith.constant 0 : index
    %c0_3 = arith.constant 0 : index
    %c0_4 = arith.constant 0 : index
    %c0_5 = arith.constant 0 : index
    %4 = vector.load %arg2[%c0_2, %c0_3, %c0_4, %c0_5] : memref<1x32x16x16xf32, #tpu.memory_space<vmem>>, vector<1x32x16x16xf32>
    %5 = vector.shape_cast %4 : vector<1x32x16x16xf32> to vector<32x16x16xf32>
    %c0_6 = arith.constant 0 : index
    %c1 = arith.constant 1 : index
    %c1_7 = arith.constant 1 : index
    %6 = vector.load %arg6[%c0_6, %c1, %c1_7] : memref<32x18x18xf32, #tpu.memory_space<vmem>>, vector<32x16x16xf32>
    tpu.vector_store %arg6[%c0_6, %c1, %c1_7], %5 {strides = array<i32>} : memref<32x18x18xf32, #tpu.memory_space<vmem>>, vector<32x16x16xf32>,
    %c0_i32 = arith.constant 0 : i32
    %7 = arith.addi %1, %c0_i32 : i32
    %c0_8 = arith.constant 0 : index
    %8 = arith.index_cast %7 : i32 to index
    %c0_9 = arith.constant 0 : index
    %9 = vector.load %arg6[%c0_8, %8, %c0_9] : memref<32x18x18xf32, #tpu.memory_space<vmem>>, vector<32x8x16xf32>
    %10 = vector.shape_cast %9 : vector<32x8x16xf32> to vector<32x128xf32>
    %c0_i32_10 = arith.constant 0 : i32
    %11 = arith.addi %1, %c0_i32_10 : i32
    %c0_11 = arith.constant 0 : index
    %12 = arith.index_cast %11 : i32 to index
    %c1_12 = arith.constant 1 : index
    %13 = vector.load %arg6[%c0_11, %12, %c1_12] : memref<32x18x18xf32, #tpu.memory_space<vmem>>, vector<32x8x16xf32>
    %14 = vector.shape_cast %13 : vector<32x8x16xf32> to vector<32x128xf32>
    %c0_i32_13 = arith.constant 0 : i32
    %15 = arith.addi %1, %c0_i32_13 : i32
    %c0_14 = arith.constant 0 : index
    %16 = arith.index_cast %15 : i32 to index
    %c2 = arith.constant 2 : index
    %17 = vector.load %arg6[%c0_14, %16, %c2] : memref<32x18x18xf32, #tpu.memory_space<vmem>>, vector<32x8x16xf32>
    %18 = vector.shape_cast %17 : vector<32x8x16xf32> to vector<32x128xf32>
    %c1_i32 = arith.constant 1 : i32
    %19 = arith.addi %1, %c1_i32 : i32
    %c0_15 = arith.constant 0 : index
    %20 = arith.index_cast %19 : i32 to index
    %c0_16 = arith.constant 0 : index
    %21 = vector.load %arg6[%c0_15, %20, %c0_16] : memref<32x18x18xf32, #tpu.memory_space<vmem>>, vector<32x8x16xf32>
    %22 = vector.shape_cast %21 : vector<32x8x16xf32> to vector<32x128xf32>
    %c1_i32_17 = arith.constant 1 : i32
    %23 = arith.addi %1, %c1_i32_17 : i32
    %c0_18 = arith.constant 0 : index
    %24 = arith.index_cast %23 : i32 to index
    %c1_19 = arith.constant 1 : index
    %25 = vector.load %arg6[%c0_18, %24, %c1_19] : memref<32x18x18xf32, #tpu.memory_space<vmem>>, vector<32x8x16xf32>
    %26 = vector.shape_cast %25 : vector<32x8x16xf32> to vector<32x128xf32>
    %c1_i32_20 = arith.constant 1 : i32
    %27 = arith.addi %1, %c1_i32_20 : i32
    %c0_21 = arith.constant 0 : index
    %28 = arith.index_cast %27 : i32 to index
    %c2_22 = arith.constant 2 : index
    %29 = vector.load %arg6[%c0_21, %28, %c2_22] : memref<32x18x18xf32, #tpu.memory_space<vmem>>, vector<32x8x16xf32>
    %30 = vector.shape_cast %29 : vector<32x8x16xf32> to vector<32x128xf32>
    %c2_i32 = arith.constant 2 : i32
    %31 = arith.addi %1, %c2_i32 : i32
    %c0_23 = arith.constant 0 : index
    %32 = arith.index_cast %31 : i32 to index
    %c0_24 = arith.constant 0 : index
    %33 = vector.load %arg6[%c0_23, %32, %c0_24] : memref<32x18x18xf32, #tpu.memory_space<vmem>>, vector<32x8x16xf32>
    %34 = vector.shape_cast %33 : vector<32x8x16xf32> to vector<32x128xf32>
    %c2_i32_25 = arith.constant 2 : i32
    %35 = arith.addi %1, %c2_i32_25 : i32
    %c0_26 = arith.constant 0 : index
    %36 = arith.index_cast %35 : i32 to index
    %c1_27 = arith.constant 1 : index
    %37 = vector.load %arg6[%c0_26, %36, %c1_27] : memref<32x18x18xf32, #tpu.memory_space<vmem>>, vector<32x8x16xf32>
    %38 = vector.shape_cast %37 : vector<32x8x16xf32> to vector<32x128xf32>
    %c2_i32_28 = arith.constant 2 : i32
    %39 = arith.addi %1, %c2_i32_28 : i32
    %c0_29 = arith.constant 0 : index
    %40 = arith.index_cast %39 : i32 to index
    %c2_30 = arith.constant 2 : index
    %41 = vector.load %arg6[%c0_29, %40, %c2_30] : memref<32x18x18xf32, #tpu.memory_space<vmem>>, vector<32x8x16xf32>
    %42 = vector.shape_cast %41 : vector<32x8x16xf32> to vector<32x128xf32>
    %43 = tpu.concatenate %10, %14, %18, %22, %26, %30, %34, %38, %42 in 0 : vector<32x128xf32>, vector<32x128xf32>, vector<32x128xf32>, vector<32x128xf32>, vector<32x128xf32>, vector<32x128xf32>, vector<32x128xf32>, vector<32x128xf32>, vector<32x128xf32> -> vector<288x128xf32>
    %c0_31 = arith.constant 0 : index
    %c0_32 = arith.constant 0 : index
    %c0_33 = arith.constant 0 : index
    %44 = vector.load %arg3[%c0_31, %c0_32, %c0_33] : memref<1x16x288xf32, #tpu.memory_space<vmem>>, vector<1x16x288xf32>
    %45 = vector.shape_cast %44 : vector<1x16x288xf32> to vector<16x288xf32>
    %cst_34 = arith.constant dense<0.000000e+00> : vector<16x128xf32>
    %46 = tpu.matmul %45, %43, %cst_34 {dimension_numbers = #tpu.dot_dimension_numbers<[1], [0], [0], [1], [0, 0, 1, 1], [], []>} : vector<16x288xf32>, vector<288x128xf32>, vector<16x128xf32> -> vector<16x128xf32>
    %c0_35 = arith.constant 0 : index
    %c0_36 = arith.constant 0 : index
    %c0_37 = arith.constant 0 : index
    %47 = vector.load %arg4[%c0_35, %c0_36, %c0_37] : memref<1x1x16xf32, #tpu.memory_space<vmem>>, vector<1x1x16xf32>
    %48 = vector.shape_cast %47 : vector<1x1x16xf32> to vector<16xf32>
    %49 = vector.shape_cast %48 : vector<16xf32> to vector<16x1xf32>
    %50 = vector.broadcast %49 : vector<16x1xf32> to vector<16x128xf32>
    %51 = arith.addf %46, %50 : vector<16x128xf32>
    %c0_38 = arith.constant 0 : index
    %c0_39 = arith.constant 0 : index
    %c0_40 = arith.constant 0 : index
    %52 = vector.load %arg5[%c0_38, %c0_39, %c0_40] : memref<1x16x128xf32, #tpu.memory_space<vmem>>, vector<1x16x128xf32>
    %53 = vector.shape_cast %52 : vector<1x16x128xf32> to vector<16x128xf32>
    %54 = vector.shape_cast %51 : vector<16x128xf32> to vector<1x16x128xf32>
    tpu.vector_store %arg5[%c0_38, %c0_39, %c0_40], %54 {strides = array<i32>} : memref<1x16x128xf32, #tpu.memory_space<vmem>>, vector<1x16x128xf32>,
    return
  }
  func.func @transform_0(%arg0: i32, %arg1: i32) -> (i32, i32, i32, i32) {
    %c0_i32 = arith.constant 0 : i32
    %c0_i32_0 = arith.constant 0 : i32
    %c0_i32_1 = arith.constant 0 : i32
    %c0_i32_2 = arith.constant 0 : i32
    return %arg0, %c0_i32, %c0_i32_0, %c0_i32_1 : i32, i32, i32, i32
  }
  func.func @transform_1(%arg0: i32, %arg1: i32) -> (i32, i32, i32) {
    %c0_i32 = arith.constant 0 : i32
    %c0_i32_0 = arith.constant 0 : i32
    %c0_i32_1 = arith.constant 0 : i32
    return %arg0, %c0_i32, %c0_i32_0 : i32, i32, i32
  }
  func.func @transform_2(%arg0: i32, %arg1: i32) -> (i32, i32, i32) {
    %c0_i32 = arith.constant 0 : i32
    %c0_i32_0 = arith.constant 0 : i32
    %c0_i32_1 = arith.constant 0 : i32
    return %arg0, %c0_i32, %c0_i32_0 : i32, i32, i32
  }
  func.func @transform_3(%arg0: i32, %arg1: i32) -> (i32, i32, i32) {
    %c0_i32 = arith.constant 0 : i32
    %c0_i32_0 = arith.constant 0 : i32
    return %arg0, %c0_i32, %arg1 : i32, i32, i32
  }
}

</mosaic_0001>

<llo_original>
// kernel: tpu_custom_call.1
$region0: #{tpu_custom_call.1}
  #allocation0 [shape = 'u32[]', space=smem, size = 0x4, offset = 0x4, fixed_abs, tag = 'smem constant byte address 0x4 - core index']
  #allocation1 [shape = 'u32[144,128]{1,0:T(1,128)}', space=vmem, size = 0x12000, scoped, tag = 'internal scratch']
  #allocation2 [shape = 'f32[32,18,18]{2,1,0:T(8,128)}', space=vmem, size = 0x60000, scoped, tag = 'scratch operand']
  %s0 = inlined_call_operand.vmem [shape: f32[2,32,16,16], index: 0, kind: input, shape index: {}]
  %s1 = inlined_call_operand.vmem [shape: f32[2,16,288], index: 1, kind: input, shape index: {}]
  %s2 = inlined_call_operand.vmem [shape: f32[2,1,16], index: 2, kind: input, shape index: {}]
  %s3 = inlined_call_operand.hbm [shape: f32[2,16,256], index: 3, kind: output, shape index: {}]
  %s4 = sld [smem:[#allocation0]]
  $region45: #{tpu_custom_call.1} parent=0
    _
  %s6 = ssub.s32 1, %s4
  %s7 = scalar_select 0, %s6, %s4
  $region1: #{tpu_custom_call.1} parent=0
    #allocation3 [shape = 'u8[16384]{0}', space=vmem, size = 0x4000, scoped, tag = 'output window, operand 0']
    #allocation4 [shape = 's32[2]{0}', space=sflag, size = 0x8, scoped, tag = 'scoped memory for tpu_custom_call.1']
    %8 = vsyncpa [#allocation4], 0
    %s9 = scalar_lea.sflag [#allocation4], 1
    %10 = vsyncpa %s9, 0
    loop: start=0, step=1, limit=6
    $region2: #{tpu_custom_call.1} parent=1 // loop_pre_header
      _
    $region3: #{tpu_custom_call.1} parent=1 // loop_header
      %s12 = sphi 0, %s16
      %p13 = scmp.ge.s32.totalorder %s12, 6
      %s19 = sphi 0, %s31
      %s20 = sphi 0, %s27
      %s21 = sphi 0, %s19
      %s22 = sphi 0, %s20
      %s23 = sphi 0, %s21
      %s24 = sphi 0, %s22
      %s34 = sphi 0, %s36
      %s37 = sphi 0, %s34
      %s38 = sphi 0, %s37
      %s54 = sphi 0, %s38
      %s60 = sphi 0, %s62
      %s63 = sphi 0, %s60
      %s64 = sphi 0, %s63
      %s80 = sphi 0, %s64
      %s86 = sphi 0, %s88
      %s89 = sphi 0, %s86
      %s90 = sphi 0, %s89
      %s106 = sphi 0, %s90
      %s114 = sphi 0, %s116
      %s117 = sphi 0, %s114
      %s118 = sphi 0, %s117
      %s134 = sphi 0, %s118
    $region4: #{tpu_custom_call.1} parent=1 // loop_header_branch
      %15 = sbr.rel (%p13) target = $region8
    $region5: #{tpu_custom_call.1} parent=1 // loop_body
      %s17 = ssub.s32 %s12, 1
      %s18 = ssub.s32 %s12, 2
      %s25 = sadd.s32 1, %s20
      %p26 = scmp.ge.s32.totalorder %s25, 2
      %s27 = scalar_select %p26, 0, %s25
      %s28 = sadd.s32 1, %s19
      %s29 = scalar_select %p26, %s28, %s19
      %p30 = scmp.ge.s32.totalorder %s29, 2
      %s31 = scalar_select %p30, 0, %s29
      %s32 = ssub.s32 %s19, %s31
      %p33 = scmp.eq.s32.totalorder %s32, 0
      %s35 = sadd.s32 %s34, 1
      %s36 = scalar_select %p33, %s34, %s35
      %p39 = pneg %p33
      %p40 = scmp.eq.s32.totalorder %s12, 3
      %p41 = por %p39, %p40
      %p42 = scmp.ne.s32.totalorder %s34, %s37
      %p43 = scmp.eq.s32.totalorder %s12, 0
      %p44 = por %p42, %p43
      %p45 = scmp.ne.s32.totalorder %s34, %s37
      %p46 = scmp.eq.s32.totalorder %s17, 3
      %p47 = por %p45, %p46
      %p48 = scmp.ne.s32.totalorder %s37, %s38
      %p49 = scmp.eq.s32.totalorder %s17, 0
      %p50 = por %p48, %p49
      %p51 = scmp.ne.s32.totalorder %s37, %s38
      %p52 = scmp.eq.s32.totalorder %s18, 3
      %p53 = por %p51, %p52
      %p55 = scmp.ne.s32.totalorder %s38, %s54
      %p56 = scmp.eq.s32.totalorder %s18, 0
      %p57 = por %p55, %p56
      %s58 = ssub.s32 %s19, %s31
      %p59 = scmp.eq.s32.totalorder %s58, 0
      %s61 = sadd.s32 %s60, 1
      %s62 = scalar_select %p59, %s60, %s61
      %p65 = pneg %p59
      %p66 = scmp.eq.s32.totalorder %s12, 3
      %p67 = por %p65, %p66
      %p68 = scmp.ne.s32.totalorder %s60, %s63
      %p69 = scmp.eq.s32.totalorder %s12, 0
      %p70 = por %p68, %p69
      %p71 = scmp.ne.s32.totalorder %s60, %s63
      %p72 = scmp.eq.s32.totalorder %s17, 3
      %p73 = por %p71, %p72
      %p74 = scmp.ne.s32.totalorder %s63, %s64
      %p75 = scmp.eq.s32.totalorder %s17, 0
      %p76 = por %p74, %p75
      %p77 = scmp.ne.s32.totalorder %s63, %s64
      %p78 = scmp.eq.s32.totalorder %s18, 3
      %p79 = por %p77, %p78
      %p81 = scmp.ne.s32.totalorder %s64, %s80
      %p82 = scmp.eq.s32.totalorder %s18, 0
      %p83 = por %p81, %p82
      %s84 = ssub.s32 %s19, %s31
      %p85 = scmp.eq.s32.totalorder %s84, 0
      %s87 = sadd.s32 %s86, 1
      %s88 = scalar_select %p85, %s86, %s87
      %p91 = pneg %p85
      %p92 = scmp.eq.s32.totalorder %s12, 3
      %p93 = por %p91, %p92
      %p94 = scmp.ne.s32.totalorder %s86, %s89
      %p95 = scmp.eq.s32.totalorder %s12, 0
      %p96 = por %p94, %p95
      %p97 = scmp.ne.s32.totalorder %s86, %s89
      %p98 = scmp.eq.s32.totalorder %s17, 3
      %p99 = por %p97, %p98
      %p100 = scmp.ne.s32.totalorder %s89, %s90
      %p101 = scmp.eq.s32.totalorder %s17, 0
      %p102 = por %p100, %p101
      %p103 = scmp.ne.s32.totalorder %s89, %s90
      %p104 = scmp.eq.s32.totalorder %s18, 3
      %p105 = por %p103, %p104
      %p107 = scmp.ne.s32.totalorder %s90, %s106
      %p108 = scmp.eq.s32.totalorder %s18, 0
      %p109 = por %p107, %p108
      %s110 = ssub.s32 %s19, %s31
      %s111 = ssub.s32 %s20, %s27
      %s112 = sor.u32 %s110, %s111
      %p113 = scmp.eq.s32.totalorder %s112, 0
      %s115 = sadd.s32 %s114, 1
      %s116 = scalar_select %p113, %s114, %s115
      %p119 = pneg %p113
      %p120 = scmp.eq.s32.totalorder %s12, 3
      %p121 = por %p119, %p120
      %p122 = scmp.ne.s32.totalorder %s114, %s117
      %p123 = scmp.eq.s32.totalorder %s12, 0
      %p124 = por %p122, %p123
      %p125 = scmp.ne.s32.totalorder %s114, %s117
      %p126 = scmp.eq.s32.totalorder %s17, 3
      %p127 = por %p125, %p126
      %p128 = scmp.ne.s32.totalorder %s117, %s118
      %p129 = scmp.eq.s32.totalorder %s17, 0
      %p130 = por %p128, %p129
      %p131 = scmp.ne.s32.totalorder %s117, %s118
      %p132 = scmp.eq.s32.totalorder %s18, 3
      %p133 = por %p131, %p132
      %p135 = scmp.ne.s32.totalorder %s118, %s134
      %p136 = scmp.eq.s32.totalorder %s18, 0
      %p137 = por %p135, %p136
      %p138 = scmp.le.s32.totalorder 1, %s12
      %p139 = scmp.lt.s32.totalorder %s12, 5
      %p140 = pnand %p138, %p139
      %p141 = pneg %p140
      // Predicated region
      $region9: #{tpu_custom_call.1} parent=5 // pred_check
        _
      $region10: #{tpu_custom_call.1} parent=5 // pred_check_branch
        %143 = sbr.rel (%p140) target = $region12
      $region11: #{tpu_custom_call.1} parent=5 // pred_region
        %s144 = ssub.s32 %s12, 1
      $region12: #{tpu_custom_call.1} parent=5 // pred_fallthru
        _
      %p145 = scmp.lt.s32.totalorder %s12, 4
      // Predicated region
      $region13: #{tpu_custom_call.1} parent=5 // pred_check
        %p146 = pneg %p145
      $region14: #{tpu_custom_call.1} parent=5 // pred_check_branch
        %148 = sbr.rel (%p146) target = $region16
      $region15: #{tpu_custom_call.1} parent=5 // pred_region
        // Predicated region
        $region17: #{tpu_custom_call.1} parent=15 // pred_check
          %p149 = pneg %p44
        $region18: #{tpu_custom_call.1} parent=15 // pred_check_branch
          %151 = sbr.rel (%p149) target = $region20
        $region19: #{tpu_custom_call.1} parent=15 // pred_region
          %p152 = scmp.lt.s32.totalorder %s19, 1
          %s153 = scalar_select %p152, %s19, 1
          %s154 = smul.addr %s153, 64
          %s155 = smul.addr %s154, 8
          %s156 = scalar_lea.vmem %s0, %s155
        $region20: #{tpu_custom_call.1} parent=15 // pred_fallthru
          _
        // Predicated region
        $region21: #{tpu_custom_call.1} parent=15 // pred_check
          %p157 = pneg %p70
        $region22: #{tpu_custom_call.1} parent=15 // pred_check_branch
          %159 = sbr.rel (%p157) target = $region24
        $region23: #{tpu_custom_call.1} parent=15 // pred_region
          %p160 = scmp.lt.s32.totalorder %s19, 1
          %s161 = scalar_select %p160, %s19, 1
          %s162 = smul.addr %s161, 6
          %s163 = smul.addr %s162, 8
          %s164 = scalar_lea.vmem %s1, %s163
        $region24: #{tpu_custom_call.1} parent=15 // pred_fallthru
          _
        // Predicated region
        $region25: #{tpu_custom_call.1} parent=15 // pred_check
          %p165 = pneg %p96
        $region26: #{tpu_custom_call.1} parent=15 // pred_check_branch
          %167 = sbr.rel (%p165) target = $region28
        $region27: #{tpu_custom_call.1} parent=15 // pred_region
          %p168 = scmp.lt.s32.totalorder %s19, 1
          %s169 = scalar_select %p168, %s19, 1
          %s170 = scalar_lea.vmem %s2, %s169
        $region28: #{tpu_custom_call.1} parent=15 // pred_fallthru
          _
      $region16: #{tpu_custom_call.1} parent=5 // pred_fallthru
        _
      %p171 = scmp.le.s32.totalorder 1, %s12
      %p172 = scmp.lt.s32.totalorder %s12, 5
      %p173 = pnand %p171, %p172
      %p174 = pneg %p173
      // Predicated region
      $region29: #{tpu_custom_call.1} parent=5 // pred_check
        _
      $region30: #{tpu_custom_call.1} parent=5 // pred_check_branch
        %176 = sbr.rel (%p173) target = $region32
      $region31: #{tpu_custom_call.1} parent=5 // pred_region
        %s177 = ssub.s32 %s12, 1
        %p178 = scmp.lt.s32.totalorder %s21, 1
        %s179 = scalar_select %p178, %s21, 1
        %s180 = smul.addr %s179, 64
        %s181 = smul.addr %s180, 8
        %s182 = scalar_lea.vmem %s0, %s181
        %p183 = pneg %p50
        %p184 = pneg %p47
        %p185 = scmp.lt.s32.totalorder %s21, 1
        %s186 = scalar_select %p185, %s21, 1
        %s187 = smul.addr %s186, 6
        %s188 = smul.addr %s187, 8
        %s189 = scalar_lea.vmem %s1, %s188
        %p190 = pneg %p76
        %p191 = pneg %p73
        %p192 = scmp.lt.s32.totalorder %s21, 1
        %s193 = scalar_select %p192, %s21, 1
        %s194 = scalar_lea.vmem %s2, %s193
        %p195 = pneg %p102
        %p196 = pneg %p99
        %p197 = pneg %p130
        %p198 = pneg %p127
        %s199 = sand.u32 %s117, 1
        %s200 = scalar_lea.sflag [#allocation4], %s199
        %s201 = sand.u32 %s117, 1
        %s202 = smul.addr %s201, 16
        %s203 = scalar_lea.vmem [#allocation3], %s202
        %p204 = scmp.lt.s32.totalorder %s21, 1
        %s205 = scalar_select %p204, %s21, 1
        %s206 = smul.addr %s205, 64
        %s207 = smul.addr %s206, 8
        %s208 = scalar_lea.vmem %s0, %s207
        %p209 = scmp.lt.s32.totalorder %s21, 1
        %s210 = scalar_select %p209, %s21, 1
        %s211 = smul.addr %s210, 6
        %s212 = smul.addr %s211, 8
        %s213 = scalar_lea.vmem %s1, %s212
        %p214 = scmp.lt.s32.totalorder %s21, 1
        %s215 = scalar_select %p214, %s21, 1
        %s216 = scalar_lea.vmem %s2, %s215
        %s217 = smul.u32 %s22, 8
        %vm218 = vcmask 146432
        %219 = vst.msk [vmem:[#allocation2] sm:$0xff] %vm218, 0.0
        %220 = vst.msk [vmem:[#allocation2 + $0x8] sm:$0xff] %vm218, 0.0
        %vm221 = vcmask 140288
        %222 = vst.msk [vmem:[#allocation2 + $0x10] sm:$0x3] %vm221, 0.0
        %223 = vst.msk [vmem:[#allocation2 + $0x18] sm:$0xff] %vm218, 0.0
        %224 = vst.msk [vmem:[#allocation2 + $0x20] sm:$0xff] %vm218, 0.0
        %225 = vst.msk [vmem:[#allocation2 + $0x28] sm:$0x3] %vm221, 0.0
        %226 = vst.msk [vmem:[#allocation2 + $0x30] sm:$0xff] %vm218, 0.0
        %227 = vst.msk [vmem:[#allocation2 + $0x38] sm:$0xff] %vm218, 0.0
        %228 = vst.msk [vmem:[#allocation2 + $0x40] sm:$0x3] %vm221, 0.0
        %229 = vst.msk [vmem:[#allocation2 + $0x48] sm:$0xff] %vm218, 0.0
        %230 = vst.msk [vmem:[#allocation2 + $0x50] sm:$0xff] %vm218, 0.0
        %231 = vst.msk [vmem:[#allocation2 + $0x58] sm:$0x3] %vm221, 0.0
        %232 = vst.msk [vmem:[#allocation2 + $0x60] sm:$0xff] %vm218, 0.0
        %233 = vst.msk [vmem:[#allocation2 + $0x68] sm:$0xff] %vm218, 0.0
        %234 = vst.msk [vmem:[#allocation2 + $0x70] sm:$0x3] %vm221, 0.0
        %235 = vst.msk [vmem:[#allocation2 + $0x78] sm:$0xff] %vm218, 0.0
        %236 = vst.msk [vmem:[#allocation2 + $0x80] sm:$0xff] %vm218, 0.0
        %237 = vst.msk [vmem:[#allocation2 + $0x88] sm:$0x3] %vm221, 0.0
        %238 = vst.msk [vmem:[#allocation2 + $0x90] sm:$0xff] %vm218, 0.0
        %239 = vst.msk [vmem:[#allocation2 + $0x98] sm:$0xff] %vm218, 0.0
        %240 = vst.msk [vmem:[#allocation2 + $0xa0] sm:$0x3] %vm221, 0.0
        %241 = vst.msk [vmem:[#allocation2 + $0xa8] sm:$0xff] %vm218, 0.0
        %242 = vst.msk [vmem:[#allocation2 + $0xb0] sm:$0xff] %vm218, 0.0
        %243 = vst.msk [vmem:[#allocation2 + $0xb8] sm:$0x3] %vm221, 0.0
        %244 = vst.msk [vmem:[#allocation2 + $0xc0] sm:$0xff] %vm218, 0.0
        %245 = vst.msk [vmem:[#allocation2 + $0xc8] sm:$0xff] %vm218, 0.0
        %246 = vst.msk [vmem:[#allocation2 + $0xd0] sm:$0x3] %vm221, 0.0
        %247 = vst.msk [vmem:[#allocation2 + $0xd8] sm:$0xff] %vm218, 0.0
        %248 = vst.msk [vmem:[#allocation2 + $0xe0] sm:$0xff] %vm218, 0.0
        %249 = vst.msk [vmem:[#allocation2 + $0xe8] sm:$0x3] %vm221, 0.0
        %250 = vst.msk [vmem:[#allocation2 + $0xf0] sm:$0xff] %vm218, 0.0
        %251 = vst.msk [vmem:[#allocation2 + $0xf8] sm:$0xff] %vm218, 0.0
        %252 = vst.msk [vmem:[#allocation2 + $0x100] sm:$0x3] %vm221, 0.0
        %253 = vst.msk [vmem:[#allocation2 + $0x108] sm:$0xff] %vm218, 0.0
        %254 = vst.msk [vmem:[#allocation2 + $0x110] sm:$0xff] %vm218, 0.0
        %255 = vst.msk [vmem:[#allocation2 + $0x118] sm:$0x3] %vm221, 0.0
        %256 = vst.msk [vmem:[#allocation2 + $0x120] sm:$0xff] %vm218, 0.0
        %257 = vst.msk [vmem:[#allocation2 + $0x128] sm:$0xff] %vm218, 0.0
        %258 = vst.msk [vmem:[#allocation2 + $0x130] sm:$0x3] %vm221, 0.0
        %259 = vst.msk [vmem:[#allocation2 + $0x138] sm:$0xff] %vm218, 0.0
        %260 = vst.msk [vmem:[#allocation2 + $0x140] sm:$0xff] %vm218, 0.0
        %261 = vst.msk [vmem:[#allocation2 + $0x148] sm:$0x3] %vm221, 0.0
        %262 = vst.msk [vmem:[#allocation2 + $0x150] sm:$0xff] %vm218, 0.0
        %263 = vst.msk [vmem:[#allocation2 + $0x158] sm:$0xff] %vm218, 0.0
        %264 = vst.msk [vmem:[#allocation2 + $0x160] sm:$0x3] %vm221, 0.0
        %265 = vst.msk [vmem:[#allocation2 + $0x168] sm:$0xff] %vm218, 0.0
        %266 = vst.msk [vmem:[#allocation2 + $0x170] sm:$0xff] %vm218, 0.0
        %267 = vst.msk [vmem:[#allocation2 + $0x178] sm:$0x3] %vm221, 0.0
        %268 = vst.msk [vmem:[#allocation2 + $0x180] sm:$0xff] %vm218, 0.0
        %269 = vst.msk [vmem:[#allocation2 + $0x188] sm:$0xff] %vm218, 0.0
        %270 = vst.msk [vmem:[#allocation2 + $0x190] sm:$0x3] %vm221, 0.0
        %271 = vst.msk [vmem:[#allocation2 + $0x198] sm:$0xff] %vm218, 0.0
        %272 = vst.msk [vmem:[#allocation2 + $0x1a0] sm:$0xff] %vm218, 0.0
        %273 = vst.msk [vmem:[#allocation2 + $0x1a8] sm:$0x3] %vm221, 0.0
        %274 = vst.msk [vmem:[#allocation2 + $0x1b0] sm:$0xff] %vm218, 0.0
        %275 = vst.msk [vmem:[#allocation2 + $0x1b8] sm:$0xff] %vm218, 0.0
        %276 = vst.msk [vmem:[#allocation2 + $0x1c0] sm:$0x3] %vm221, 0.0
        %277 = vst.msk [vmem:[#allocation2 + $0x1c8] sm:$0xff] %vm218, 0.0
        %278 = vst.msk [vmem:[#allocation2 + $0x1d0] sm:$0xff] %vm218, 0.0
        %279 = vst.msk [vmem:[#allocation2 + $0x1d8] sm:$0x3] %vm221, 0.0
        %280 = vst.msk [vmem:[#allocation2 + $0x1e0] sm:$0xff] %vm218, 0.0
        %281 = vst.msk [vmem:[#allocation2 + $0x1e8] sm:$0xff] %vm218, 0.0
        %282 = vst.msk [vmem:[#allocation2 + $0x1f0] sm:$0x3] %vm221, 0.0
        %283 = vst.msk [vmem:[#allocation2 + $0x1f8] sm:$0xff] %vm218, 0.0
        %284 = vst.msk [vmem:[#allocation2 + $0x200] sm:$0xff] %vm218, 0.0
        %285 = vst.msk [vmem:[#allocation2 + $0x208] sm:$0x3] %vm221, 0.0
        %286 = vst.msk [vmem:[#allocation2 + $0x210] sm:$0xff] %vm218, 0.0
        %287 = vst.msk [vmem:[#allocation2 + $0x218] sm:$0xff] %vm218, 0.0
        %288 = vst.msk [vmem:[#allocation2 + $0x220] sm:$0x3] %vm221, 0.0
        %289 = vst.msk [vmem:[#allocation2 + $0x228] sm:$0xff] %vm218, 0.0
        %290 = vst.msk [vmem:[#allocation2 + $0x230] sm:$0xff] %vm218, 0.0
        %291 = vst.msk [vmem:[#allocation2 + $0x238] sm:$0x3] %vm221, 0.0
        %292 = vst.msk [vmem:[#allocation2 + $0x240] sm:$0xff] %vm218, 0.0
        %293 = vst.msk [vmem:[#allocation2 + $0x248] sm:$0xff] %vm218, 0.0
        %294 = vst.msk [vmem:[#allocation2 + $0x250] sm:$0x3] %vm221, 0.0
        %295 = vst.msk [vmem:[#allocation2 + $0x258] sm:$0xff] %vm218, 0.0
        %296 = vst.msk [vmem:[#allocation2 + $0x260] sm:$0xff] %vm218, 0.0
        %297 = vst.msk [vmem:[#allocation2 + $0x268] sm:$0x3] %vm221, 0.0
        %298 = vst.msk [vmem:[#allocation2 + $0x270] sm:$0xff] %vm218, 0.0
        %299 = vst.msk [vmem:[#allocation2 + $0x278] sm:$0xff] %vm218, 0.0
        %300 = vst.msk [vmem:[#allocation2 + $0x280] sm:$0x3] %vm221, 0.0
        %301 = vst.msk [vmem:[#allocation2 + $0x288] sm:$0xff] %vm218, 0.0
        %302 = vst.msk [vmem:[#allocation2 + $0x290] sm:$0xff] %vm218, 0.0
        %303 = vst.msk [vmem:[#allocation2 + $0x298] sm:$0x3] %vm221, 0.0
        %304 = vst.msk [vmem:[#allocation2 + $0x2a0] sm:$0xff] %vm218, 0.0
        %305 = vst.msk [vmem:[#allocation2 + $0x2a8] sm:$0xff] %vm218, 0.0
        %306 = vst.msk [vmem:[#allocation2 + $0x2b0] sm:$0x3] %vm221, 0.0
        %307 = vst.msk [vmem:[#allocation2 + $0x2b8] sm:$0xff] %vm218, 0.0
        %308 = vst.msk [vmem:[#allocation2 + $0x2c0] sm:$0xff] %vm218, 0.0
        %309 = vst.msk [vmem:[#allocation2 + $0x2c8] sm:$0x3] %vm221, 0.0
        %310 = vst.msk [vmem:[#allocation2 + $0x2d0] sm:$0xff] %vm218, 0.0
        %311 = vst.msk [vmem:[#allocation2 + $0x2d8] sm:$0xff] %vm218, 0.0
        %312 = vst.msk [vmem:[#allocation2 + $0x2e0] sm:$0x3] %vm221, 0.0
        %313 = vst.msk [vmem:[#allocation2 + $0x2e8] sm:$0xff] %vm218, 0.0
        %314 = vst.msk [vmem:[#allocation2 + $0x2f0] sm:$0xff] %vm218, 0.0
        %315 = vst.msk [vmem:[#allocation2 + $0x2f8] sm:$0x3] %vm221, 0.0
        %v316 = vld [vmem:[%s208] sm:$0xff]
        %v317 = vld [vmem:[%s208 + $0x8] sm:$0xff]
        %v318 = vld [vmem:[%s208 + $0x10] sm:$0xff]
        %v319 = vld [vmem:[%s208 + $0x18] sm:$0xff]
        %v320 = vld [vmem:[%s208 + $0x20] sm:$0xff]
        %v321 = vld [vmem:[%s208 + $0x28] sm:$0xff]
        %v322 = vld [vmem:[%s208 + $0x30] sm:$0xff]
        %v323 = vld [vmem:[%s208 + $0x38] sm:$0xff]
        %v324 = vld [vmem:[%s208 + $0x40] sm:$0xff]
        %v325 = vld [vmem:[%s208 + $0x48] sm:$0xff]
        %v326 = vld [vmem:[%s208 + $0x50] sm:$0xff]
        %v327 = vld [vmem:[%s208 + $0x58] sm:$0xff]
        %v328 = vld [vmem:[%s208 + $0x60] sm:$0xff]
        %v329 = vld [vmem:[%s208 + $0x68] sm:$0xff]
        %v330 = vld [vmem:[%s208 + $0x70] sm:$0xff]
        %v331 = vld [vmem:[%s208 + $0x78] sm:$0xff]
        %v332 = vld [vmem:[%s208 + $0x80] sm:$0xff]
        %v333 = vld [vmem:[%s208 + $0x88] sm:$0xff]
        %v334 = vld [vmem:[%s208 + $0x90] sm:$0xff]
        %v335 = vld [vmem:[%s208 + $0x98] sm:$0xff]
        %v336 = vld [vmem:[%s208 + $0xa0] sm:$0xff]
        %v337 = vld [vmem:[%s208 + $0xa8] sm:$0xff]
        %v338 = vld [vmem:[%s208 + $0xb0] sm:$0xff]
        %v339 = vld [vmem:[%s208 + $0xb8] sm:$0xff]
        %v340 = vld [vmem:[%s208 + $0xc0] sm:$0xff]
        %v341 = vld [vmem:[%s208 + $0xc8] sm:$0xff]
        %v342 = vld [vmem:[%s208 + $0xd0] sm:$0xff]
        %v343 = vld [vmem:[%s208 + $0xd8] sm:$0xff]
        %v344 = vld [vmem:[%s208 + $0xe0] sm:$0xff]
        %v345 = vld [vmem:[%s208 + $0xe8] sm:$0xff]
        %v346 = vld [vmem:[%s208 + $0xf0] sm:$0xff]
        %v347 = vld [vmem:[%s208 + $0xf8] sm:$0xff]
        %v348 = vld [vmem:[%s208 + $0x100] sm:$0xff]
        %v349 = vld [vmem:[%s208 + $0x108] sm:$0xff]
        %v350 = vld [vmem:[%s208 + $0x110] sm:$0xff]
        %v351 = vld [vmem:[%s208 + $0x118] sm:$0xff]
        %v352 = vld [vmem:[%s208 + $0x120] sm:$0xff]
        %v353 = vld [vmem:[%s208 + $0x128] sm:$0xff]
        %v354 = vld [vmem:[%s208 + $0x130] sm:$0xff]
        %v355 = vld [vmem:[%s208 + $0x138] sm:$0xff]
        %v356 = vld [vmem:[%s208 + $0x140] sm:$0xff]
        %v357 = vld [vmem:[%s208 + $0x148] sm:$0xff]
        %v358 = vld [vmem:[%s208 + $0x150] sm:$0xff]
        %v359 = vld [vmem:[%s208 + $0x158] sm:$0xff]
        %v360 = vld [vmem:[%s208 + $0x160] sm:$0xff]
        %v361 = vld [vmem:[%s208 + $0x168] sm:$0xff]
        %v362 = vld [vmem:[%s208 + $0x170] sm:$0xff]
        %v363 = vld [vmem:[%s208 + $0x178] sm:$0xff]
        %v364 = vld [vmem:[%s208 + $0x180] sm:$0xff]
        %v365 = vld [vmem:[%s208 + $0x188] sm:$0xff]
        %v366 = vld [vmem:[%s208 + $0x190] sm:$0xff]
        %v367 = vld [vmem:[%s208 + $0x198] sm:$0xff]
        %v368 = vld [vmem:[%s208 + $0x1a0] sm:$0xff]
        %v369 = vld [vmem:[%s208 + $0x1a8] sm:$0xff]
        %v370 = vld [vmem:[%s208 + $0x1b0] sm:$0xff]
        %v371 = vld [vmem:[%s208 + $0x1b8] sm:$0xff]
        %v372 = vld [vmem:[%s208 + $0x1c0] sm:$0xff]
        %v373 = vld [vmem:[%s208 + $0x1c8] sm:$0xff]
        %v374 = vld [vmem:[%s208 + $0x1d0] sm:$0xff]
        %v375 = vld [vmem:[%s208 + $0x1d8] sm:$0xff]
        %v376 = vld [vmem:[%s208 + $0x1e0] sm:$0xff]
        %v377 = vld [vmem:[%s208 + $0x1e8] sm:$0xff]
        %v378 = vld [vmem:[%s208 + $0x1f0] sm:$0xff]
        %v379 = vld [vmem:[%s208 + $0x1f8] sm:$0xff]
        %444 = vrot.lane.b32.xlu0 %v316, 1
        %v445 = vpop.permute.xlu0 %444
        %446 = vrot.lane.b32.xlu0 %v317, 1
        %v447 = vpop.permute.xlu0 %446
        %448 = vrot.lane.b32.xlu0 %v318, 1
        %v449 = vpop.permute.xlu0 %448
        %450 = vrot.lane.b32.xlu0 %v319, 1
        %v451 = vpop.permute.xlu0 %450
        %452 = vrot.lane.b32.xlu0 %v320, 1
        %v453 = vpop.permute.xlu0 %452
        %454 = vrot.lane.b32.xlu0 %v321, 1
        %v455 = vpop.permute.xlu0 %454
        %456 = vrot.lane.b32.xlu0 %v322, 1
        %v457 = vpop.permute.xlu0 %456
        %458 = vrot.lane.b32.xlu0 %v323, 1
        %v459 = vpop.permute.xlu0 %458
        %460 = vrot.lane.b32.xlu0 %v324, 1
        %v461 = vpop.permute.xlu0 %460
        %462 = vrot.lane.b32.xlu0 %v325, 1
        %v463 = vpop.permute.xlu0 %462
        %464 = vrot.lane.b32.xlu0 %v326, 1
        %v465 = vpop.permute.xlu0 %464
        %466 = vrot.lane.b32.xlu0 %v327, 1
        %v467 = vpop.permute.xlu0 %466
        %468 = vrot.lane.b32.xlu0 %v328, 1
        %v469 = vpop.permute.xlu0 %468
        %470 = vrot.lane.b32.xlu0 %v329, 1
        %v471 = vpop.permute.xlu0 %470
        %472 = vrot.lane.b32.xlu0 %v330, 1
        %v473 = vpop.permute.xlu0 %472
        %474 = vrot.lane.b32.xlu0 %v331, 1
        %v475 = vpop.permute.xlu0 %474
        %476 = vrot.lane.b32.xlu0 %v332, 1
        %v477 = vpop.permute.xlu0 %476
        %478 = vrot.lane.b32.xlu0 %v333, 1
        %v479 = vpop.permute.xlu0 %478
        %480 = vrot.lane.b32.xlu0 %v334, 1
        %v481 = vpop.permute.xlu0 %480
        %482 = vrot.lane.b32.xlu0 %v335, 1
        %v483 = vpop.permute.xlu0 %482
        %484 = vrot.lane.b32.xlu0 %v336, 1
        %v485 = vpop.permute.xlu0 %484
        %486 = vrot.lane.b32.xlu0 %v337, 1
        %v487 = vpop.permute.xlu0 %486
        %488 = vrot.lane.b32.xlu0 %v338, 1
        %v489 = vpop.permute.xlu0 %488
        %490 = vrot.lane.b32.xlu0 %v339, 1
        %v491 = vpop.permute.xlu0 %490
        %492 = vrot.lane.b32.xlu0 %v340, 1
        %v493 = vpop.permute.xlu0 %492
        %494 = vrot.lane.b32.xlu0 %v341, 1
        %v495 = vpop.permute.xlu0 %494
        %496 = vrot.lane.b32.xlu0 %v342, 1
        %v497 = vpop.permute.xlu0 %496
        %498 = vrot.lane.b32.xlu0 %v343, 1
        %v499 = vpop.permute.xlu0 %498
        %500 = vrot.lane.b32.xlu0 %v344, 1
        %v501 = vpop.permute.xlu0 %500
        %502 = vrot.lane.b32.xlu0 %v345, 1
        %v503 = vpop.permute.xlu0 %502
        %504 = vrot.lane.b32.xlu0 %v346, 1
        %v505 = vpop.permute.xlu0 %504
        %506 = vrot.lane.b32.xlu0 %v347, 1
        %v507 = vpop.permute.xlu0 %506
        %508 = vrot.lane.b32.xlu0 %v348, 1
        %v509 = vpop.permute.xlu0 %508
        %510 = vrot.lane.b32.xlu0 %v349, 1
        %v511 = vpop.permute.xlu0 %510
        %512 = vrot.lane.b32.xlu0 %v350, 1
        %v513 = vpop.permute.xlu0 %512
        %514 = vrot.lane.b32.xlu0 %v351, 1
        %v515 = vpop.permute.xlu0 %514
        %516 = vrot.lane.b32.xlu0 %v352, 1
        %v517 = vpop.permute.xlu0 %516
        %518 = vrot.lane.b32.xlu0 %v353, 1
        %v519 = vpop.permute.xlu0 %518
        %520 = vrot.lane.b32.xlu0 %v354, 1
        %v521 = vpop.permute.xlu0 %520
        %522 = vrot.lane.b32.xlu0 %v355, 1
        %v523 = vpop.permute.xlu0 %522
        %524 = vrot.lane.b32.xlu0 %v356, 1
        %v525 = vpop.permute.xlu0 %524
        %526 = vrot.lane.b32.xlu0 %v357, 1
        %v527 = vpop.permute.xlu0 %526
        %528 = vrot.lane.b32.xlu0 %v358, 1
        %v529 = vpop.permute.xlu0 %528
        %530 = vrot.lane.b32.xlu0 %v359, 1
        %v531 = vpop.permute.xlu0 %530
        %532 = vrot.lane.b32.xlu0 %v360, 1
        %v533 = vpop.permute.xlu0 %532
        %534 = vrot.lane.b32.xlu0 %v361, 1
        %v535 = vpop.permute.xlu0 %534
        %536 = vrot.lane.b32.xlu0 %v362, 1
        %v537 = vpop.permute.xlu0 %536
        %538 = vrot.lane.b32.xlu0 %v363, 1
        %v539 = vpop.permute.xlu0 %538
        %540 = vrot.lane.b32.xlu0 %v364, 1
        %v541 = vpop.permute.xlu0 %540
        %542 = vrot.lane.b32.xlu0 %v365, 1
        %v543 = vpop.permute.xlu0 %542
        %544 = vrot.lane.b32.xlu0 %v366, 1
        %v545 = vpop.permute.xlu0 %544
        %546 = vrot.lane.b32.xlu0 %v367, 1
        %v547 = vpop.permute.xlu0 %546
        %548 = vrot.lane.b32.xlu0 %v368, 1
        %v549 = vpop.permute.xlu0 %548
        %550 = vrot.lane.b32.xlu0 %v369, 1
        %v551 = vpop.permute.xlu0 %550
        %552 = vrot.lane.b32.xlu0 %v370, 1
        %v553 = vpop.permute.xlu0 %552
        %554 = vrot.lane.b32.xlu0 %v371, 1
        %v555 = vpop.permute.xlu0 %554
        %556 = vrot.lane.b32.xlu0 %v372, 1
        %v557 = vpop.permute.xlu0 %556
        %558 = vrot.lane.b32.xlu0 %v373, 1
        %v559 = vpop.permute.xlu0 %558
        %560 = vrot.lane.b32.xlu0 %v374, 1
        %v561 = vpop.permute.xlu0 %560
        %562 = vrot.lane.b32.xlu0 %v375, 1
        %v563 = vpop.permute.xlu0 %562
        %564 = vrot.lane.b32.xlu0 %v376, 1
        %v565 = vpop.permute.xlu0 %564
        %566 = vrot.lane.b32.xlu0 %v377, 1
        %v567 = vpop.permute.xlu0 %566
        %568 = vrot.lane.b32.xlu0 %v378, 1
        %v569 = vpop.permute.xlu0 %568
        %570 = vrot.lane.b32.xlu0 %v379, 1
        %v571 = vpop.permute.xlu0 %570
        %vm636 = vcmask 138248
        %637 = vst.msk [vmem:[#allocation2 + $0x1] sm:$0xff] %vm636, %v445
        %638 = vst.msk [vmem:[#allocation2 + $0x9] sm:$0xff] %vm636, %v447
        %639 = vst.msk [vmem:[#allocation2 + $0x19] sm:$0xff] %vm636, %v449
        %640 = vst.msk [vmem:[#allocation2 + $0x21] sm:$0xff] %vm636, %v451
        %641 = vst.msk [vmem:[#allocation2 + $0x31] sm:$0xff] %vm636, %v453
        %642 = vst.msk [vmem:[#allocation2 + $0x39] sm:$0xff] %vm636, %v455
        %643 = vst.msk [vmem:[#allocation2 + $0x49] sm:$0xff] %vm636, %v457
        %644 = vst.msk [vmem:[#allocation2 + $0x51] sm:$0xff] %vm636, %v459
        %645 = vst.msk [vmem:[#allocation2 + $0x61] sm:$0xff] %vm636, %v461
        %646 = vst.msk [vmem:[#allocation2 + $0x69] sm:$0xff] %vm636, %v463
        %647 = vst.msk [vmem:[#allocation2 + $0x79] sm:$0xff] %vm636, %v465
        %648 = vst.msk [vmem:[#allocation2 + $0x81] sm:$0xff] %vm636, %v467
        %649 = vst.msk [vmem:[#allocation2 + $0x91] sm:$0xff] %vm636, %v469
        %650 = vst.msk [vmem:[#allocation2 + $0x99] sm:$0xff] %vm636, %v471
        %651 = vst.msk [vmem:[#allocation2 + $0xa9] sm:$0xff] %vm636, %v473
        %652 = vst.msk [vmem:[#allocation2 + $0xb1] sm:$0xff] %vm636, %v475
        %653 = vst.msk [vmem:[#allocation2 + $0xc1] sm:$0xff] %vm636, %v477
        %654 = vst.msk [vmem:[#allocation2 + $0xc9] sm:$0xff] %vm636, %v479
        %655 = vst.msk [vmem:[#allocation2 + $0xd9] sm:$0xff] %vm636, %v481
        %656 = vst.msk [vmem:[#allocation2 + $0xe1] sm:$0xff] %vm636, %v483
        %657 = vst.msk [vmem:[#allocation2 + $0xf1] sm:$0xff] %vm636, %v485
        %658 = vst.msk [vmem:[#allocation2 + $0xf9] sm:$0xff] %vm636, %v487
        %659 = vst.msk [vmem:[#allocation2 + $0x109] sm:$0xff] %vm636, %v489
        %660 = vst.msk [vmem:[#allocation2 + $0x111] sm:$0xff] %vm636, %v491
        %661 = vst.msk [vmem:[#allocation2 + $0x121] sm:$0xff] %vm636, %v493
        %662 = vst.msk [vmem:[#allocation2 + $0x129] sm:$0xff] %vm636, %v495
        %663 = vst.msk [vmem:[#allocation2 + $0x139] sm:$0xff] %vm636, %v497
        %664 = vst.msk [vmem:[#allocation2 + $0x141] sm:$0xff] %vm636, %v499
        %665 = vst.msk [vmem:[#allocation2 + $0x151] sm:$0xff] %vm636, %v501
        %666 = vst.msk [vmem:[#allocation2 + $0x159] sm:$0xff] %vm636, %v503
        %667 = vst.msk [vmem:[#allocation2 + $0x169] sm:$0xff] %vm636, %v505
        %668 = vst.msk [vmem:[#allocation2 + $0x171] sm:$0xff] %vm636, %v507
        %669 = vst.msk [vmem:[#allocation2 + $0x181] sm:$0xff] %vm636, %v509
        %670 = vst.msk [vmem:[#allocation2 + $0x189] sm:$0xff] %vm636, %v511
        %671 = vst.msk [vmem:[#allocation2 + $0x199] sm:$0xff] %vm636, %v513
        %672 = vst.msk [vmem:[#allocation2 + $0x1a1] sm:$0xff] %vm636, %v515
        %673 = vst.msk [vmem:[#allocation2 + $0x1b1] sm:$0xff] %vm636, %v517
        %674 = vst.msk [vmem:[#allocation2 + $0x1b9] sm:$0xff] %vm636, %v519
        %675 = vst.msk [vmem:[#allocation2 + $0x1c9] sm:$0xff] %vm636, %v521
        %676 = vst.msk [vmem:[#allocation2 + $0x1d1] sm:$0xff] %vm636, %v523
        %677 = vst.msk [vmem:[#allocation2 + $0x1e1] sm:$0xff] %vm636, %v525
        %678 = vst.msk [vmem:[#allocation2 + $0x1e9] sm:$0xff] %vm636, %v527
        %679 = vst.msk [vmem:[#allocation2 + $0x1f9] sm:$0xff] %vm636, %v529
        %680 = vst.msk [vmem:[#allocation2 + $0x201] sm:$0xff] %vm636, %v531
        %681 = vst.msk [vmem:[#allocation2 + $0x211] sm:$0xff] %vm636, %v533
        %682 = vst.msk [vmem:[#allocation2 + $0x219] sm:$0xff] %vm636, %v535
        %683 = vst.msk [vmem:[#allocation2 + $0x229] sm:$0xff] %vm636, %v537
        %684 = vst.msk [vmem:[#allocation2 + $0x231] sm:$0xff] %vm636, %v539
        %685 = vst.msk [vmem:[#allocation2 + $0x241] sm:$0xff] %vm636, %v541
        %686 = vst.msk [vmem:[#allocation2 + $0x249] sm:$0xff] %vm636, %v543
        %687 = vst.msk [vmem:[#allocation2 + $0x259] sm:$0xff] %vm636, %v545
        %688 = vst.msk [vmem:[#allocation2 + $0x261] sm:$0xff] %vm636, %v547
        %689 = vst.msk [vmem:[#allocation2 + $0x271] sm:$0xff] %vm636, %v549
        %690 = vst.msk [vmem:[#allocation2 + $0x279] sm:$0xff] %vm636, %v551
        %691 = vst.msk [vmem:[#allocation2 + $0x289] sm:$0xff] %vm636, %v553
        %692 = vst.msk [vmem:[#allocation2 + $0x291] sm:$0xff] %vm636, %v555
        %693 = vst.msk [vmem:[#allocation2 + $0x2a1] sm:$0xff] %vm636, %v557
        %694 = vst.msk [vmem:[#allocation2 + $0x2a9] sm:$0xff] %vm636, %v559
        %695 = vst.msk [vmem:[#allocation2 + $0x2b9] sm:$0xff] %vm636, %v561
        %696 = vst.msk [vmem:[#allocation2 + $0x2c1] sm:$0xff] %vm636, %v563
        %697 = vst.msk [vmem:[#allocation2 + $0x2d1] sm:$0xff] %vm636, %v565
        %698 = vst.msk [vmem:[#allocation2 + $0x2d9] sm:$0xff] %vm636, %v567
        %699 = vst.msk [vmem:[#allocation2 + $0x2e9] sm:$0xff] %vm636, %v569
        %700 = vst.msk [vmem:[#allocation2 + $0x2f1] sm:$0xff] %vm636, %v571
        %s701 = scalar_lea.vmem [#allocation2], %s217
        %v702 = vld [vmem:[%s701] sm:$0xff]
        %v703 = vld [vmem:[%s701 + $0x18] sm:$0xff]
        %v704 = vld [vmem:[%s701 + $0x30] sm:$0xff]
        %v705 = vld [vmem:[%s701 + $0x48] sm:$0xff]
        %v706 = vld [vmem:[%s701 + $0x60] sm:$0xff]
        %v707 = vld [vmem:[%s701 + $0x78] sm:$0xff]
        %v708 = vld [vmem:[%s701 + $0x90] sm:$0xff]
        %v709 = vld [vmem:[%s701 + $0xa8] sm:$0xff]
        %v710 = vld [vmem:[%s701 + $0xc0] sm:$0xff]
        %v711 = vld [vmem:[%s701 + $0xd8] sm:$0xff]
        %v712 = vld [vmem:[%s701 + $0xf0] sm:$0xff]
        %v713 = vld [vmem:[%s701 + $0x108] sm:$0xff]
        %v714 = vld [vmem:[%s701 + $0x120] sm:$0xff]
        %v715 = vld [vmem:[%s701 + $0x138] sm:$0xff]
        %v716 = vld [vmem:[%s701 + $0x150] sm:$0xff]
        %v717 = vld [vmem:[%s701 + $0x168] sm:$0xff]
        %v718 = vld [vmem:[%s701 + $0x180] sm:$0xff]
        %v719 = vld [vmem:[%s701 + $0x198] sm:$0xff]
        %v720 = vld [vmem:[%s701 + $0x1b0] sm:$0xff]
        %v721 = vld [vmem:[%s701 + $0x1c8] sm:$0xff]
        %v722 = vld [vmem:[%s701 + $0x1e0] sm:$0xff]
        %v723 = vld [vmem:[%s701 + $0x1f8] sm:$0xff]
        %v724 = vld [vmem:[%s701 + $0x210] sm:$0xff]
        %v725 = vld [vmem:[%s701 + $0x228] sm:$0xff]
        %v726 = vld [vmem:[%s701 + $0x240] sm:$0xff]
        %v727 = vld [vmem:[%s701 + $0x258] sm:$0xff]
        %v728 = vld [vmem:[%s701 + $0x270] sm:$0xff]
        %v729 = vld [vmem:[%s701 + $0x288] sm:$0xff]
        %v730 = vld [vmem:[%s701 + $0x2a0] sm:$0xff]
        %v731 = vld [vmem:[%s701 + $0x2b8] sm:$0xff]
        %v732 = vld [vmem:[%s701 + $0x2d0] sm:$0xff]
        %v733 = vld [vmem:[%s701 + $0x2e8] sm:$0xff]
        %v734 = vcombine.low %v702, %v704
        %v735 = vcombine.high %v702, %v704
        %v737 = vunpack.c.l.s4 1983009808
        %v738 = vunpack.c.0.s8 %v737
        %v739 = vlaneseq
        %v740 = vshrl.u32 %v739, 7
        %v741 = vsub.s32 %v738, %v740
        %v742 = vrot.slane %v734, %v741
        %v744 = vunpack.c.l.s4 1983009808
        %v745 = vunpack.c.0.s8 %v744
        %v746 = vlaneseq
        %v747 = vshrl.u32 %v746, 7
        %v748 = vsub.s32 %v745, %v747
        %v749 = vrot.slane %v735, %v748
        %v750 = vcombine.low %v703, %v705
        %v751 = vcombine.high %v703, %v705
        %v753 = vunpack.c.l.s4 1983009808
        %v754 = vunpack.c.0.s8 %v753
        %v755 = vlaneseq
        %v756 = vshrl.u32 %v755, 7
        %v757 = vsub.s32 %v754, %v756
        %v758 = vrot.slane %v750, %v757
        %v760 = vunpack.c.l.s4 1983009808
        %v761 = vunpack.c.0.s8 %v760
        %v762 = vlaneseq
        %v763 = vshrl.u32 %v762, 7
        %v764 = vsub.s32 %v761, %v763
        %v765 = vrot.slane %v751, %v764
        %v766 = vcombine.low %v706, %v708
        %v767 = vcombine.high %v706, %v708
        %v769 = vunpack.c.l.s4 1983009808
        %v770 = vunpack.c.0.s8 %v769
        %v771 = vlaneseq
        %v772 = vshrl.u32 %v771, 7
        %v773 = vsub.s32 %v770, %v772
        %v774 = vrot.slane %v766, %v773
        %v776 = vunpack.c.l.s4 1983009808
        %v777 = vunpack.c.0.s8 %v776
        %v778 = vlaneseq
        %v779 = vshrl.u32 %v778, 7
        %v780 = vsub.s32 %v777, %v779
        %v781 = vrot.slane %v767, %v780
        %v782 = vcombine.low %v707, %v709
        %v783 = vcombine.high %v707, %v709
        %v785 = vunpack.c.l.s4 1983009808
        %v786 = vunpack.c.0.s8 %v785
        %v787 = vlaneseq
        %v788 = vshrl.u32 %v787, 7
        %v789 = vsub.s32 %v786, %v788
        %v790 = vrot.slane %v782, %v789
        %v792 = vunpack.c.l.s4 1983009808
        %v793 = vunpack.c.0.s8 %v792
        %v794 = vlaneseq
        %v795 = vshrl.u32 %v794, 7
        %v796 = vsub.s32 %v793, %v795
        %v797 = vrot.slane %v783, %v796
        %v798 = vcombine.low %v742, %v758
        %v799 = vcombine.high %v742, %v758
        %v801 = vunpack.c.l.s4 1934713408
        %v802 = vunpack.c.0.s8 %v801
        %v803 = vlaneseq
        %v804 = vshrl.u32 %v803, 7
        %v805 = vsub.s32 %v802, %v804
        %v806 = vrot.slane %v798, %v805
        %v808 = vunpack.c.l.s4 1934713408
        %v809 = vunpack.c.0.s8 %v808
        %v810 = vlaneseq
        %v811 = vshrl.u32 %v810, 7
        %v812 = vsub.s32 %v809, %v811
        %v813 = vrot.slane %v799, %v812
        %v814 = vcombine.low %v749, %v765
        %v815 = vcombine.high %v749, %v765
        %v817 = vunpack.c.l.s4 1934713408
        %v818 = vunpack.c.0.s8 %v817
        %v819 = vlaneseq
        %v820 = vshrl.u32 %v819, 7
        %v821 = vsub.s32 %v818, %v820
        %v822 = vrot.slane %v814, %v821
        %v824 = vunpack.c.l.s4 1934713408
        %v825 = vunpack.c.0.s8 %v824
        %v826 = vlaneseq
        %v827 = vshrl.u32 %v826, 7
        %v828 = vsub.s32 %v825, %v827
        %v829 = vrot.slane %v815, %v828
        %v830 = vcombine.low %v774, %v790
        %v831 = vcombine.high %v774, %v790
        %v833 = vunpack.c.l.s4 1934713408
        %v834 = vunpack.c.0.s8 %v833
        %v835 = vlaneseq
        %v836 = vshrl.u32 %v835, 7
        %v837 = vsub.s32 %v834, %v836
        %v838 = vrot.slane %v830, %v837
        %v840 = vunpack.c.l.s4 1934713408
        %v841 = vunpack.c.0.s8 %v840
        %v842 = vlaneseq
        %v843 = vshrl.u32 %v842, 7
        %v844 = vsub.s32 %v841, %v843
        %v845 = vrot.slane %v831, %v844
        %v846 = vcombine.low %v781, %v797
        %v847 = vcombine.high %v781, %v797
        %v849 = vunpack.c.l.s4 1934713408
        %v850 = vunpack.c.0.s8 %v849
        %v851 = vlaneseq
        %v852 = vshrl.u32 %v851, 7
        %v853 = vsub.s32 %v850, %v852
        %v854 = vrot.slane %v846, %v853
        %v856 = vunpack.c.l.s4 1934713408
        %v857 = vunpack.c.0.s8 %v856
        %v858 = vlaneseq
        %v859 = vshrl.u32 %v858, 7
        %v860 = vsub.s32 %v857, %v859
        %v861 = vrot.slane %v847, %v860
        %v862 = vcombine.low %v806, %v838
        %v863 = vcombine.high %v806, %v838
        %v864 = vcombine.low %v813, %v845
        %v865 = vcombine.high %v813, %v845
        %v866 = vcombine.low %v822, %v854
        %v867 = vcombine.high %v822, %v854
        %v868 = vcombine.low %v829, %v861
        %v869 = vcombine.high %v829, %v861
        %v870 = vcombine.low %v710, %v712
        %v871 = vcombine.high %v710, %v712
        %v873 = vunpack.c.l.s4 1983009808
        %v874 = vunpack.c.0.s8 %v873
        %v875 = vlaneseq
        %v876 = vshrl.u32 %v875, 7
        %v877 = vsub.s32 %v874, %v876
        %v878 = vrot.slane %v870, %v877
        %v880 = vunpack.c.l.s4 1983009808
        %v881 = vunpack.c.0.s8 %v880
        %v882 = vlaneseq
        %v883 = vshrl.u32 %v882, 7
        %v884 = vsub.s32 %v881, %v883
        %v885 = vrot.slane %v871, %v884
        %v886 = vcombine.low %v711, %v713
        %v887 = vcombine.high %v711, %v713
        %v889 = vunpack.c.l.s4 1983009808
        %v890 = vunpack.c.0.s8 %v889
        %v891 = vlaneseq
        %v892 = vshrl.u32 %v891, 7
        %v893 = vsub.s32 %v890, %v892
        %v894 = vrot.slane %v886, %v893
        %v896 = vunpack.c.l.s4 1983009808
        %v897 = vunpack.c.0.s8 %v896
        %v898 = vlaneseq
        %v899 = vshrl.u32 %v898, 7
        %v900 = vsub.s32 %v897, %v899
        %v901 = vrot.slane %v887, %v900
        %v902 = vcombine.low %v714, %v716
        %v903 = vcombine.high %v714, %v716
        %v905 = vunpack.c.l.s4 1983009808
        %v906 = vunpack.c.0.s8 %v905
        %v907 = vlaneseq
        %v908 = vshrl.u32 %v907, 7
        %v909 = vsub.s32 %v906, %v908
        %v910 = vrot.slane %v902, %v909
        %v912 = vunpack.c.l.s4 1983009808
        %v913 = vunpack.c.0.s8 %v912
        %v914 = vlaneseq
        %v915 = vshrl.u32 %v914, 7
        %v916 = vsub.s32 %v913, %v915
        %v917 = vrot.slane %v903, %v916
        %v918 = vcombine.low %v715, %v717
        %v919 = vcombine.high %v715, %v717
        %v921 = vunpack.c.l.s4 1983009808
        %v922 = vunpack.c.0.s8 %v921
        %v923 = vlaneseq
        %v924 = vshrl.u32 %v923, 7
        %v925 = vsub.s32 %v922, %v924
        %v926 = vrot.slane %v918, %v925
        %v928 = vunpack.c.l.s4 1983009808
        %v929 = vunpack.c.0.s8 %v928
        %v930 = vlaneseq
        %v931 = vshrl.u32 %v930, 7
        %v932 = vsub.s32 %v929, %v931
        %v933 = vrot.slane %v919, %v932
        %v934 = vcombine.low %v878, %v894
        %v935 = vcombine.high %v878, %v894
        %v937 = vunpack.c.l.s4 1934713408
        %v938 = vunpack.c.0.s8 %v937
        %v939 = vlaneseq
        %v940 = vshrl.u32 %v939, 7
        %v941 = vsub.s32 %v938, %v940
        %v942 = vrot.slane %v934, %v941
        %v944 = vunpack.c.l.s4 1934713408
        %v945 = vunpack.c.0.s8 %v944
        %v946 = vlaneseq
        %v947 = vshrl.u32 %v946, 7
        %v948 = vsub.s32 %v945, %v947
        %v949 = vrot.slane %v935, %v948
        %v950 = vcombine.low %v885, %v901
        %v951 = vcombine.high %v885, %v901
        %v953 = vunpack.c.l.s4 1934713408
        %v954 = vunpack.c.0.s8 %v953
        %v955 = vlaneseq
        %v956 = vshrl.u32 %v955, 7
        %v957 = vsub.s32 %v954, %v956
        %v958 = vrot.slane %v950, %v957
        %v960 = vunpack.c.l.s4 1934713408
        %v961 = vunpack.c.0.s8 %v960
        %v962 = vlaneseq
        %v963 = vshrl.u32 %v962, 7
        %v964 = vsub.s32 %v961, %v963
        %v965 = vrot.slane %v951, %v964
        %v966 = vcombine.low %v910, %v926
        %v967 = vcombine.high %v910, %v926
        %v969 = vunpack.c.l.s4 1934713408
        %v970 = vunpack.c.0.s8 %v969
        %v971 = vlaneseq
        %v972 = vshrl.u32 %v971, 7
        %v973 = vsub.s32 %v970, %v972
        %v974 = vrot.slane %v966, %v973
        %v976 = vunpack.c.l.s4 1934713408
        %v977 = vunpack.c.0.s8 %v976
        %v978 = vlaneseq
        %v979 = vshrl.u32 %v978, 7
        %v980 = vsub.s32 %v977, %v979
        %v981 = vrot.slane %v967, %v980
        %v982 = vcombine.low %v917, %v933
        %v983 = vcombine.high %v917, %v933
        %v985 = vunpack.c.l.s4 1934713408
        %v986 = vunpack.c.0.s8 %v985
        %v987 = vlaneseq
        %v988 = vshrl.u32 %v987, 7
        %v989 = vsub.s32 %v986, %v988
        %v990 = vrot.slane %v982, %v989
        %v992 = vunpack.c.l.s4 1934713408
        %v993 = vunpack.c.0.s8 %v992
        %v994 = vlaneseq
        %v995 = vshrl.u32 %v994, 7
        %v996 = vsub.s32 %v993, %v995
        %v997 = vrot.slane %v983, %v996
        %v998 = vcombine.low %v942, %v974
        %v999 = vcombine.high %v942, %v974
        %v1000 = vcombine.low %v949, %v981
        %v1001 = vcombine.high %v949, %v981
        %v1002 = vcombine.low %v958, %v990
        %v1003 = vcombine.high %v958, %v990
        %v1004 = vcombine.low %v965, %v997
        %v1005 = vcombine.high %v965, %v997
        %v1006 = vcombine.low %v718, %v720
        %v1007 = vcombine.high %v718, %v720
        %v1009 = vunpack.c.l.s4 1983009808
        %v1010 = vunpack.c.0.s8 %v1009
        %v1011 = vlaneseq
        %v1012 = vshrl.u32 %v1011, 7
        %v1013 = vsub.s32 %v1010, %v1012
        %v1014 = vrot.slane %v1006, %v1013
        %v1016 = vunpack.c.l.s4 1983009808
        %v1017 = vunpack.c.0.s8 %v1016
        %v1018 = vlaneseq
        %v1019 = vshrl.u32 %v1018, 7
        %v1020 = vsub.s32 %v1017, %v1019
        %v1021 = vrot.slane %v1007, %v1020
        %v1022 = vcombine.low %v719, %v721
        %v1023 = vcombine.high %v719, %v721
        %v1025 = vunpack.c.l.s4 1983009808
        %v1026 = vunpack.c.0.s8 %v1025
        %v1027 = vlaneseq
        %v1028 = vshrl.u32 %v1027, 7
        %v1029 = vsub.s32 %v1026, %v1028
        %v1030 = vrot.slane %v1022, %v1029
        %v1032 = vunpack.c.l.s4 1983009808
        %v1033 = vunpack.c.0.s8 %v1032
        %v1034 = vlaneseq
        %v1035 = vshrl.u32 %v1034, 7
        %v1036 = vsub.s32 %v1033, %v1035
        %v1037 = vrot.slane %v1023, %v1036
        %v1038 = vcombine.low %v722, %v724
        %v1039 = vcombine.high %v722, %v724
        %v1041 = vunpack.c.l.s4 1983009808
        %v1042 = vunpack.c.0.s8 %v1041
        %v1043 = vlaneseq
        %v1044 = vshrl.u32 %v1043, 7
        %v1045 = vsub.s32 %v1042, %v1044
        %v1046 = vrot.slane %v1038, %v1045
        %v1048 = vunpack.c.l.s4 1983009808
        %v1049 = vunpack.c.0.s8 %v1048
        %v1050 = vlaneseq
        %v1051 = vshrl.u32 %v1050, 7
        %v1052 = vsub.s32 %v1049, %v1051
        %v1053 = vrot.slane %v1039, %v1052
        %v1054 = vcombine.low %v723, %v725
        %v1055 = vcombine.high %v723, %v725
        %v1057 = vunpack.c.l.s4 1983009808
        %v1058 = vunpack.c.0.s8 %v1057
        %v1059 = vlaneseq
        %v1060 = vshrl.u32 %v1059, 7
        %v1061 = vsub.s32 %v1058, %v1060
        %v1062 = vrot.slane %v1054, %v1061
        %v1064 = vunpack.c.l.s4 1983009808
        %v1065 = vunpack.c.0.s8 %v1064
        %v1066 = vlaneseq
        %v1067 = vshrl.u32 %v1066, 7
        %v1068 = vsub.s32 %v1065, %v1067
        %v1069 = vrot.slane %v1055, %v1068
        %v1070 = vcombine.low %v1014, %v1030
        %v1071 = vcombine.high %v1014, %v1030
        %v1073 = vunpack.c.l.s4 1934713408
        %v1074 = vunpack.c.0.s8 %v1073
        %v1075 = vlaneseq
        %v1076 = vshrl.u32 %v1075, 7
        %v1077 = vsub.s32 %v1074, %v1076
        %v1078 = vrot.slane %v1070, %v1077
        %v1080 = vunpack.c.l.s4 1934713408
        %v1081 = vunpack.c.0.s8 %v1080
        %v1082 = vlaneseq
        %v1083 = vshrl.u32 %v1082, 7
        %v1084 = vsub.s32 %v1081, %v1083
        %v1085 = vrot.slane %v1071, %v1084
        %v1086 = vcombine.low %v1021, %v1037
        %v1087 = vcombine.high %v1021, %v1037
        %v1089 = vunpack.c.l.s4 1934713408
        %v1090 = vunpack.c.0.s8 %v1089
        %v1091 = vlaneseq
        %v1092 = vshrl.u32 %v1091, 7
        %v1093 = vsub.s32 %v1090, %v1092
        %v1094 = vrot.slane %v1086, %v1093
        %v1096 = vunpack.c.l.s4 1934713408
        %v1097 = vunpack.c.0.s8 %v1096
        %v1098 = vlaneseq
        %v1099 = vshrl.u32 %v1098, 7
        %v1100 = vsub.s32 %v1097, %v1099
        %v1101 = vrot.slane %v1087, %v1100
        %v1102 = vcombine.low %v1046, %v1062
        %v1103 = vcombine.high %v1046, %v1062
        %v1105 = vunpack.c.l.s4 1934713408
        %v1106 = vunpack.c.0.s8 %v1105
        %v1107 = vlaneseq
        %v1108 = vshrl.u32 %v1107, 7
        %v1109 = vsub.s32 %v1106, %v1108
        %v1110 = vrot.slane %v1102, %v1109
        %v1112 = vunpack.c.l.s4 1934713408
        %v1113 = vunpack.c.0.s8 %v1112
        %v1114 = vlaneseq
        %v1115 = vshrl.u32 %v1114, 7
        %v1116 = vsub.s32 %v1113, %v1115
        %v1117 = vrot.slane %v1103, %v1116
        %v1118 = vcombine.low %v1053, %v1069
        %v1119 = vcombine.high %v1053, %v1069
        %v1121 = vunpack.c.l.s4 1934713408
        %v1122 = vunpack.c.0.s8 %v1121
        %v1123 = vlaneseq
        %v1124 = vshrl.u32 %v1123, 7
        %v1125 = vsub.s32 %v1122, %v1124
        %v1126 = vrot.slane %v1118, %v1125
        %v1128 = vunpack.c.l.s4 1934713408
        %v1129 = vunpack.c.0.s8 %v1128
        %v1130 = vlaneseq
        %v1131 = vshrl.u32 %v1130, 7
        %v1132 = vsub.s32 %v1129, %v1131
        %v1133 = vrot.slane %v1119, %v1132
        %v1134 = vcombine.low %v1078, %v1110
        %v1135 = vcombine.high %v1078, %v1110
        %v1136 = vcombine.low %v1085, %v1117
        %v1137 = vcombine.high %v1085, %v1117
        %v1138 = vcombine.low %v1094, %v1126
        %v1139 = vcombine.high %v1094, %v1126
        %v1140 = vcombine.low %v1101, %v1133
        %v1141 = vcombine.high %v1101, %v1133
        %v1142 = vcombine.low %v726, %v728
        %v1143 = vcombine.high %v726, %v728
        %v1145 = vunpack.c.l.s4 1983009808
        %v1146 = vunpack.c.0.s8 %v1145
        %v1147 = vlaneseq
        %v1148 = vshrl.u32 %v1147, 7
        %v1149 = vsub.s32 %v1146, %v1148
        %v1150 = vrot.slane %v1142, %v1149
        %v1152 = vunpack.c.l.s4 1983009808
        %v1153 = vunpack.c.0.s8 %v1152
        %v1154 = vlaneseq
        %v1155 = vshrl.u32 %v1154, 7
        %v1156 = vsub.s32 %v1153, %v1155
        %v1157 = vrot.slane %v1143, %v1156
        %v1158 = vcombine.low %v727, %v729
        %v1159 = vcombine.high %v727, %v729
        %v1161 = vunpack.c.l.s4 1983009808
        %v1162 = vunpack.c.0.s8 %v1161
        %v1163 = vlaneseq
        %v1164 = vshrl.u32 %v1163, 7
        %v1165 = vsub.s32 %v1162, %v1164
        %v1166 = vrot.slane %v1158, %v1165
        %v1168 = vunpack.c.l.s4 1983009808
        %v1169 = vunpack.c.0.s8 %v1168
        %v1170 = vlaneseq
        %v1171 = vshrl.u32 %v1170, 7
        %v1172 = vsub.s32 %v1169, %v1171
        %v1173 = vrot.slane %v1159, %v1172
        %v1174 = vcombine.low %v730, %v732
        %v1175 = vcombine.high %v730, %v732
        %v1177 = vunpack.c.l.s4 1983009808
        %v1178 = vunpack.c.0.s8 %v1177
        %v1179 = vlaneseq
        %v1180 = vshrl.u32 %v1179, 7
        %v1181 = vsub.s32 %v1178, %v1180
        %v1182 = vrot.slane %v1174, %v1181
        %v1184 = vunpack.c.l.s4 1983009808
        %v1185 = vunpack.c.0.s8 %v1184
        %v1186 = vlaneseq
        %v1187 = vshrl.u32 %v1186, 7
        %v1188 = vsub.s32 %v1185, %v1187
        %v1189 = vrot.slane %v1175, %v1188
        %v1190 = vcombine.low %v731, %v733
        %v1191 = vcombine.high %v731, %v733
        %v1193 = vunpack.c.l.s4 1983009808
        %v1194 = vunpack.c.0.s8 %v1193
        %v1195 = vlaneseq
        %v1196 = vshrl.u32 %v1195, 7
        %v1197 = vsub.s32 %v1194, %v1196
        %v1198 = vrot.slane %v1190, %v1197
        %v1200 = vunpack.c.l.s4 1983009808
        %v1201 = vunpack.c.0.s8 %v1200
        %v1202 = vlaneseq
        %v1203 = vshrl.u32 %v1202, 7
        %v1204 = vsub.s32 %v1201, %v1203
        %v1205 = vrot.slane %v1191, %v1204
        %v1206 = vcombine.low %v1150, %v1166
        %v1207 = vcombine.high %v1150, %v1166
        %v1209 = vunpack.c.l.s4 1934713408
        %v1210 = vunpack.c.0.s8 %v1209
        %v1211 = vlaneseq
        %v1212 = vshrl.u32 %v1211, 7
        %v1213 = vsub.s32 %v1210, %v1212
        %v1214 = vrot.slane %v1206, %v1213
        %v1216 = vunpack.c.l.s4 1934713408
        %v1217 = vunpack.c.0.s8 %v1216
        %v1218 = vlaneseq
        %v1219 = vshrl.u32 %v1218, 7
        %v1220 = vsub.s32 %v1217, %v1219
        %v1221 = vrot.slane %v1207, %v1220
        %v1222 = vcombine.low %v1157, %v1173
        %v1223 = vcombine.high %v1157, %v1173
        %v1225 = vunpack.c.l.s4 1934713408
        %v1226 = vunpack.c.0.s8 %v1225
        %v1227 = vlaneseq
        %v1228 = vshrl.u32 %v1227, 7
        %v1229 = vsub.s32 %v1226, %v1228
        %v1230 = vrot.slane %v1222, %v1229
        %v1232 = vunpack.c.l.s4 1934713408
        %v1233 = vunpack.c.0.s8 %v1232
        %v1234 = vlaneseq
        %v1235 = vshrl.u32 %v1234, 7
        %v1236 = vsub.s32 %v1233, %v1235
        %v1237 = vrot.slane %v1223, %v1236
        %v1238 = vcombine.low %v1182, %v1198
        %v1239 = vcombine.high %v1182, %v1198
        %v1241 = vunpack.c.l.s4 1934713408
        %v1242 = vunpack.c.0.s8 %v1241
        %v1243 = vlaneseq
        %v1244 = vshrl.u32 %v1243, 7
        %v1245 = vsub.s32 %v1242, %v1244
        %v1246 = vrot.slane %v1238, %v1245
        %v1248 = vunpack.c.l.s4 1934713408
        %v1249 = vunpack.c.0.s8 %v1248
        %v1250 = vlaneseq
        %v1251 = vshrl.u32 %v1250, 7
        %v1252 = vsub.s32 %v1249, %v1251
        %v1253 = vrot.slane %v1239, %v1252
        %v1254 = vcombine.low %v1189, %v1205
        %v1255 = vcombine.high %v1189, %v1205
        %v1257 = vunpack.c.l.s4 1934713408
        %v1258 = vunpack.c.0.s8 %v1257
        %v1259 = vlaneseq
        %v1260 = vshrl.u32 %v1259, 7
        %v1261 = vsub.s32 %v1258, %v1260
        %v1262 = vrot.slane %v1254, %v1261
        %v1264 = vunpack.c.l.s4 1934713408
        %v1265 = vunpack.c.0.s8 %v1264
        %v1266 = vlaneseq
        %v1267 = vshrl.u32 %v1266, 7
        %v1268 = vsub.s32 %v1265, %v1267
        %v1269 = vrot.slane %v1255, %v1268
        %v1270 = vcombine.low %v1214, %v1246
        %v1271 = vcombine.high %v1214, %v1246
        %v1272 = vcombine.low %v1221, %v1253
        %v1273 = vcombine.high %v1221, %v1253
        %v1274 = vcombine.low %v1230, %v1262
        %v1275 = vcombine.high %v1230, %v1262
        %v1276 = vcombine.low %v1237, %v1269
        %v1277 = vcombine.high %v1237, %v1269
        %1282 = vrot.lane.b32.xlu0 %v863, 16
        %v1283 = vpop.permute.xlu0 %1282
        %1284 = vrot.lane.b32.xlu0 %v999, 16
        %v1285 = vpop.permute.xlu0 %1284
        %1286 = vrot.lane.b32.xlu0 %v1135, 16
        %v1287 = vpop.permute.xlu0 %1286
        %1288 = vrot.lane.b32.xlu0 %v1271, 16
        %v1289 = vpop.permute.xlu0 %1288
        %1298 = vrot.lane.b32.xlu0 %v864, 32
        %v1299 = vpop.permute.xlu0 %1298
        %1300 = vrot.lane.b32.xlu0 %v1000, 32
        %v1301 = vpop.permute.xlu0 %1300
        %1302 = vrot.lane.b32.xlu0 %v1136, 32
        %v1303 = vpop.permute.xlu0 %1302
        %1304 = vrot.lane.b32.xlu0 %v1272, 32
        %v1305 = vpop.permute.xlu0 %1304
        %1314 = vrot.lane.b32.xlu0 %v865, 48
        %v1315 = vpop.permute.xlu0 %1314
        %1316 = vrot.lane.b32.xlu0 %v1001, 48
        %v1317 = vpop.permute.xlu0 %1316
        %1318 = vrot.lane.b32.xlu0 %v1137, 48
        %v1319 = vpop.permute.xlu0 %1318
        %1320 = vrot.lane.b32.xlu0 %v1273, 48
        %v1321 = vpop.permute.xlu0 %1320
        %1330 = vrot.lane.b32.xlu0 %v866, 64
        %v1331 = vpop.permute.xlu0 %1330
        %1332 = vrot.lane.b32.xlu0 %v1002, 64
        %v1333 = vpop.permute.xlu0 %1332
        %1334 = vrot.lane.b32.xlu0 %v1138, 64
        %v1335 = vpop.permute.xlu0 %1334
        %1336 = vrot.lane.b32.xlu0 %v1274, 64
        %v1337 = vpop.permute.xlu0 %1336
        %1346 = vrot.lane.b32.xlu0 %v867, 80
        %v1347 = vpop.permute.xlu0 %1346
        %1348 = vrot.lane.b32.xlu0 %v1003, 80
        %v1349 = vpop.permute.xlu0 %1348
        %1350 = vrot.lane.b32.xlu0 %v1139, 80
        %v1351 = vpop.permute.xlu0 %1350
        %1352 = vrot.lane.b32.xlu0 %v1275, 80
        %v1353 = vpop.permute.xlu0 %1352
        %1362 = vrot.lane.b32.xlu0 %v868, 96
        %v1363 = vpop.permute.xlu0 %1362
        %1364 = vrot.lane.b32.xlu0 %v1004, 96
        %v1365 = vpop.permute.xlu0 %1364
        %1366 = vrot.lane.b32.xlu0 %v1140, 96
        %v1367 = vpop.permute.xlu0 %1366
        %1368 = vrot.lane.b32.xlu0 %v1276, 96
        %v1369 = vpop.permute.xlu0 %1368
        %1378 = vrot.lane.b32.xlu0 %v869, 112
        %v1379 = vpop.permute.xlu0 %1378
        %1380 = vrot.lane.b32.xlu0 %v1005, 112
        %v1381 = vpop.permute.xlu0 %1380
        %1382 = vrot.lane.b32.xlu0 %v1141, 112
        %v1383 = vpop.permute.xlu0 %1382
        %1384 = vrot.lane.b32.xlu0 %v1277, 112
        %v1385 = vpop.permute.xlu0 %1384
        %vm1390 = vcmask 130048
        %v1391 = vsel %vm1390, %v862, %v1283
        %v1392 = vsel %vm1390, %v998, %v1285
        %v1393 = vsel %vm1390, %v1134, %v1287
        %v1394 = vsel %vm1390, %v1270, %v1289
        %vm1395 = vcmask 261120
        %v1396 = vsel %vm1395, %v1391, %v1299
        %v1397 = vsel %vm1395, %v1392, %v1301
        %v1398 = vsel %vm1395, %v1393, %v1303
        %v1399 = vsel %vm1395, %v1394, %v1305
        %vm1400 = vcmask 392192
        %v1401 = vsel %vm1400, %v1396, %v1315
        %v1402 = vsel %vm1400, %v1397, %v1317
        %v1403 = vsel %vm1400, %v1398, %v1319
        %v1404 = vsel %vm1400, %v1399, %v1321
        %vm1405 = vcmask 523264
        %v1406 = vsel %vm1405, %v1401, %v1331
        %v1407 = vsel %vm1405, %v1402, %v1333
        %v1408 = vsel %vm1405, %v1403, %v1335
        %v1409 = vsel %vm1405, %v1404, %v1337
        %vm1410 = vcmask 654336
        %v1411 = vsel %vm1410, %v1406, %v1347
        %v1412 = vsel %vm1410, %v1407, %v1349
        %v1413 = vsel %vm1410, %v1408, %v1351
        %v1414 = vsel %vm1410, %v1409, %v1353
        %vm1415 = vcmask 785408
        %v1416 = vsel %vm1415, %v1411, %v1363
        %v1417 = vsel %vm1415, %v1412, %v1365
        %v1418 = vsel %vm1415, %v1413, %v1367
        %v1419 = vsel %vm1415, %v1414, %v1369
        %vm1420 = vcmask 916480
        %v1421 = vsel %vm1420, %v1416, %v1379
        %v1422 = vsel %vm1420, %v1417, %v1381
        %v1423 = vsel %vm1420, %v1418, %v1383
        %v1424 = vsel %vm1420, %v1419, %v1385
        %1457 = vrot.lane.b32.xlu0 %v702, 127
        %v1458 = vpop.permute.xlu0 %1457
        %1459 = vrot.lane.b32.xlu0 %v703, 127
        %v1460 = vpop.permute.xlu0 %1459
        %1461 = vrot.lane.b32.xlu0 %v704, 127
        %v1462 = vpop.permute.xlu0 %1461
        %1463 = vrot.lane.b32.xlu0 %v705, 127
        %v1464 = vpop.permute.xlu0 %1463
        %1465 = vrot.lane.b32.xlu0 %v706, 127
        %v1466 = vpop.permute.xlu0 %1465
        %1467 = vrot.lane.b32.xlu0 %v707, 127
        %v1468 = vpop.permute.xlu0 %1467
        %1469 = vrot.lane.b32.xlu0 %v708, 127
        %v1470 = vpop.permute.xlu0 %1469
        %1471 = vrot.lane.b32.xlu0 %v709, 127
        %v1472 = vpop.permute.xlu0 %1471
        %1473 = vrot.lane.b32.xlu0 %v710, 127
        %v1474 = vpop.permute.xlu0 %1473
        %1475 = vrot.lane.b32.xlu0 %v711, 127
        %v1476 = vpop.permute.xlu0 %1475
        %1477 = vrot.lane.b32.xlu0 %v712, 127
        %v1478 = vpop.permute.xlu0 %1477
        %1479 = vrot.lane.b32.xlu0 %v713, 127
        %v1480 = vpop.permute.xlu0 %1479
        %1481 = vrot.lane.b32.xlu0 %v714, 127
        %v1482 = vpop.permute.xlu0 %1481
        %1483 = vrot.lane.b32.xlu0 %v715, 127
        %v1484 = vpop.permute.xlu0 %1483
        %1485 = vrot.lane.b32.xlu0 %v716, 127
        %v1486 = vpop.permute.xlu0 %1485
        %1487 = vrot.lane.b32.xlu0 %v717, 127
        %v1488 = vpop.permute.xlu0 %1487
        %1489 = vrot.lane.b32.xlu0 %v718, 127
        %v1490 = vpop.permute.xlu0 %1489
        %1491 = vrot.lane.b32.xlu0 %v719, 127
        %v1492 = vpop.permute.xlu0 %1491
        %1493 = vrot.lane.b32.xlu0 %v720, 127
        %v1494 = vpop.permute.xlu0 %1493
        %1495 = vrot.lane.b32.xlu0 %v721, 127
        %v1496 = vpop.permute.xlu0 %1495
        %1497 = vrot.lane.b32.xlu0 %v722, 127
        %v1498 = vpop.permute.xlu0 %1497
        %1499 = vrot.lane.b32.xlu0 %v723, 127
        %v1500 = vpop.permute.xlu0 %1499
        %1501 = vrot.lane.b32.xlu0 %v724, 127
        %v1502 = vpop.permute.xlu0 %1501
        %1503 = vrot.lane.b32.xlu0 %v725, 127
        %v1504 = vpop.permute.xlu0 %1503
        %1505 = vrot.lane.b32.xlu0 %v726, 127
        %v1506 = vpop.permute.xlu0 %1505
        %1507 = vrot.lane.b32.xlu0 %v727, 127
        %v1508 = vpop.permute.xlu0 %1507
        %1509 = vrot.lane.b32.xlu0 %v728, 127
        %v1510 = vpop.permute.xlu0 %1509
        %1511 = vrot.lane.b32.xlu0 %v729, 127
        %v1512 = vpop.permute.xlu0 %1511
        %1513 = vrot.lane.b32.xlu0 %v730, 127
        %v1514 = vpop.permute.xlu0 %1513
        %1515 = vrot.lane.b32.xlu0 %v731, 127
        %v1516 = vpop.permute.xlu0 %1515
        %1517 = vrot.lane.b32.xlu0 %v732, 127
        %v1518 = vpop.permute.xlu0 %1517
        %1519 = vrot.lane.b32.xlu0 %v733, 127
        %v1520 = vpop.permute.xlu0 %1519
        %v1553 = vcombine.low %v1458, %v1462
        %v1554 = vcombine.high %v1458, %v1462
        %v1556 = vunpack.c.l.s4 1983009808
        %v1557 = vunpack.c.0.s8 %v1556
        %v1558 = vlaneseq
        %v1559 = vshrl.u32 %v1558, 7
        %v1560 = vsub.s32 %v1557, %v1559
        %v1561 = vrot.slane %v1553, %v1560
        %v1563 = vunpack.c.l.s4 1983009808
        %v1564 = vunpack.c.0.s8 %v1563
        %v1565 = vlaneseq
        %v1566 = vshrl.u32 %v1565, 7
        %v1567 = vsub.s32 %v1564, %v1566
        %v1568 = vrot.slane %v1554, %v1567
        %v1569 = vcombine.low %v1460, %v1464
        %v1570 = vcombine.high %v1460, %v1464
        %v1572 = vunpack.c.l.s4 1983009808
        %v1573 = vunpack.c.0.s8 %v1572
        %v1574 = vlaneseq
        %v1575 = vshrl.u32 %v1574, 7
        %v1576 = vsub.s32 %v1573, %v1575
        %v1577 = vrot.slane %v1569, %v1576
        %v1579 = vunpack.c.l.s4 1983009808
        %v1580 = vunpack.c.0.s8 %v1579
        %v1581 = vlaneseq
        %v1582 = vshrl.u32 %v1581, 7
        %v1583 = vsub.s32 %v1580, %v1582
        %v1584 = vrot.slane %v1570, %v1583
        %v1585 = vcombine.low %v1466, %v1470
        %v1586 = vcombine.high %v1466, %v1470
        %v1588 = vunpack.c.l.s4 1983009808
        %v1589 = vunpack.c.0.s8 %v1588
        %v1590 = vlaneseq
        %v1591 = vshrl.u32 %v1590, 7
        %v1592 = vsub.s32 %v1589, %v1591
        %v1593 = vrot.slane %v1585, %v1592
        %v1595 = vunpack.c.l.s4 1983009808
        %v1596 = vunpack.c.0.s8 %v1595
        %v1597 = vlaneseq
        %v1598 = vshrl.u32 %v1597, 7
        %v1599 = vsub.s32 %v1596, %v1598
        %v1600 = vrot.slane %v1586, %v1599
        %v1601 = vcombine.low %v1468, %v1472
        %v1602 = vcombine.high %v1468, %v1472
        %v1604 = vunpack.c.l.s4 1983009808
        %v1605 = vunpack.c.0.s8 %v1604
        %v1606 = vlaneseq
        %v1607 = vshrl.u32 %v1606, 7
        %v1608 = vsub.s32 %v1605, %v1607
        %v1609 = vrot.slane %v1601, %v1608
        %v1611 = vunpack.c.l.s4 1983009808
        %v1612 = vunpack.c.0.s8 %v1611
        %v1613 = vlaneseq
        %v1614 = vshrl.u32 %v1613, 7
        %v1615 = vsub.s32 %v1612, %v1614
        %v1616 = vrot.slane %v1602, %v1615
        %v1617 = vcombine.low %v1561, %v1577
        %v1618 = vcombine.high %v1561, %v1577
        %v1620 = vunpack.c.l.s4 1934713408
        %v1621 = vunpack.c.0.s8 %v1620
        %v1622 = vlaneseq
        %v1623 = vshrl.u32 %v1622, 7
        %v1624 = vsub.s32 %v1621, %v1623
        %v1625 = vrot.slane %v1617, %v1624
        %v1627 = vunpack.c.l.s4 1934713408
        %v1628 = vunpack.c.0.s8 %v1627
        %v1629 = vlaneseq
        %v1630 = vshrl.u32 %v1629, 7
        %v1631 = vsub.s32 %v1628, %v1630
        %v1632 = vrot.slane %v1618, %v1631
        %v1633 = vcombine.low %v1568, %v1584
        %v1634 = vcombine.high %v1568, %v1584
        %v1636 = vunpack.c.l.s4 1934713408
        %v1637 = vunpack.c.0.s8 %v1636
        %v1638 = vlaneseq
        %v1639 = vshrl.u32 %v1638, 7
        %v1640 = vsub.s32 %v1637, %v1639
        %v1641 = vrot.slane %v1633, %v1640
        %v1643 = vunpack.c.l.s4 1934713408
        %v1644 = vunpack.c.0.s8 %v1643
        %v1645 = vlaneseq
        %v1646 = vshrl.u32 %v1645, 7
        %v1647 = vsub.s32 %v1644, %v1646
        %v1648 = vrot.slane %v1634, %v1647
        %v1649 = vcombine.low %v1593, %v1609
        %v1650 = vcombine.high %v1593, %v1609
        %v1652 = vunpack.c.l.s4 1934713408
        %v1653 = vunpack.c.0.s8 %v1652
        %v1654 = vlaneseq
        %v1655 = vshrl.u32 %v1654, 7
        %v1656 = vsub.s32 %v1653, %v1655
        %v1657 = vrot.slane %v1649, %v1656
        %v1659 = vunpack.c.l.s4 1934713408
        %v1660 = vunpack.c.0.s8 %v1659
        %v1661 = vlaneseq
        %v1662 = vshrl.u32 %v1661, 7
        %v1663 = vsub.s32 %v1660, %v1662
        %v1664 = vrot.slane %v1650, %v1663
        %v1665 = vcombine.low %v1600, %v1616
        %v1666 = vcombine.high %v1600, %v1616
        %v1668 = vunpack.c.l.s4 1934713408
        %v1669 = vunpack.c.0.s8 %v1668
        %v1670 = vlaneseq
        %v1671 = vshrl.u32 %v1670, 7
        %v1672 = vsub.s32 %v1669, %v1671
        %v1673 = vrot.slane %v1665, %v1672
        %v1675 = vunpack.c.l.s4 1934713408
        %v1676 = vunpack.c.0.s8 %v1675
        %v1677 = vlaneseq
        %v1678 = vshrl.u32 %v1677, 7
        %v1679 = vsub.s32 %v1676, %v1678
        %v1680 = vrot.slane %v1666, %v1679
        %v1681 = vcombine.low %v1625, %v1657
        %v1682 = vcombine.high %v1625, %v1657
        %v1683 = vcombine.low %v1632, %v1664
        %v1684 = vcombine.high %v1632, %v1664
        %v1685 = vcombine.low %v1641, %v1673
        %v1686 = vcombine.high %v1641, %v1673
        %v1687 = vcombine.low %v1648, %v1680
        %v1688 = vcombine.high %v1648, %v1680
        %v1689 = vcombine.low %v1474, %v1478
        %v1690 = vcombine.high %v1474, %v1478
        %v1692 = vunpack.c.l.s4 1983009808
        %v1693 = vunpack.c.0.s8 %v1692
        %v1694 = vlaneseq
        %v1695 = vshrl.u32 %v1694, 7
        %v1696 = vsub.s32 %v1693, %v1695
        %v1697 = vrot.slane %v1689, %v1696
        %v1699 = vunpack.c.l.s4 1983009808
        %v1700 = vunpack.c.0.s8 %v1699
        %v1701 = vlaneseq
        %v1702 = vshrl.u32 %v1701, 7
        %v1703 = vsub.s32 %v1700, %v1702
        %v1704 = vrot.slane %v1690, %v1703
        %v1705 = vcombine.low %v1476, %v1480
        %v1706 = vcombine.high %v1476, %v1480
        %v1708 = vunpack.c.l.s4 1983009808
        %v1709 = vunpack.c.0.s8 %v1708
        %v1710 = vlaneseq
        %v1711 = vshrl.u32 %v1710, 7
        %v1712 = vsub.s32 %v1709, %v1711
        %v1713 = vrot.slane %v1705, %v1712
        %v1715 = vunpack.c.l.s4 1983009808
        %v1716 = vunpack.c.0.s8 %v1715
        %v1717 = vlaneseq
        %v1718 = vshrl.u32 %v1717, 7
        %v1719 = vsub.s32 %v1716, %v1718
        %v1720 = vrot.slane %v1706, %v1719
        %v1721 = vcombine.low %v1482, %v1486
        %v1722 = vcombine.high %v1482, %v1486
        %v1724 = vunpack.c.l.s4 1983009808
        %v1725 = vunpack.c.0.s8 %v1724
        %v1726 = vlaneseq
        %v1727 = vshrl.u32 %v1726, 7
        %v1728 = vsub.s32 %v1725, %v1727
        %v1729 = vrot.slane %v1721, %v1728
        %v1731 = vunpack.c.l.s4 1983009808
        %v1732 = vunpack.c.0.s8 %v1731
        %v1733 = vlaneseq
        %v1734 = vshrl.u32 %v1733, 7
        %v1735 = vsub.s32 %v1732, %v1734
        %v1736 = vrot.slane %v1722, %v1735
        %v1737 = vcombine.low %v1484, %v1488
        %v1738 = vcombine.high %v1484, %v1488
        %v1740 = vunpack.c.l.s4 1983009808
        %v1741 = vunpack.c.0.s8 %v1740
        %v1742 = vlaneseq
        %v1743 = vshrl.u32 %v1742, 7
        %v1744 = vsub.s32 %v1741, %v1743
        %v1745 = vrot.slane %v1737, %v1744
        %v1747 = vunpack.c.l.s4 1983009808
        %v1748 = vunpack.c.0.s8 %v1747
        %v1749 = vlaneseq
        %v1750 = vshrl.u32 %v1749, 7
        %v1751 = vsub.s32 %v1748, %v1750
        %v1752 = vrot.slane %v1738, %v1751
        %v1753 = vcombine.low %v1697, %v1713
        %v1754 = vcombine.high %v1697, %v1713
        %v1756 = vunpack.c.l.s4 1934713408
        %v1757 = vunpack.c.0.s8 %v1756
        %v1758 = vlaneseq
        %v1759 = vshrl.u32 %v1758, 7
        %v1760 = vsub.s32 %v1757, %v1759
        %v1761 = vrot.slane %v1753, %v1760
        %v1763 = vunpack.c.l.s4 1934713408
        %v1764 = vunpack.c.0.s8 %v1763
        %v1765 = vlaneseq
        %v1766 = vshrl.u32 %v1765, 7
        %v1767 = vsub.s32 %v1764, %v1766
        %v1768 = vrot.slane %v1754, %v1767
        %v1769 = vcombine.low %v1704, %v1720
        %v1770 = vcombine.high %v1704, %v1720
        %v1772 = vunpack.c.l.s4 1934713408
        %v1773 = vunpack.c.0.s8 %v1772
        %v1774 = vlaneseq
        %v1775 = vshrl.u32 %v1774, 7
        %v1776 = vsub.s32 %v1773, %v1775
        %v1777 = vrot.slane %v1769, %v1776
        %v1779 = vunpack.c.l.s4 1934713408
        %v1780 = vunpack.c.0.s8 %v1779
        %v1781 = vlaneseq
        %v1782 = vshrl.u32 %v1781, 7
        %v1783 = vsub.s32 %v1780, %v1782
        %v1784 = vrot.slane %v1770, %v1783
        %v1785 = vcombine.low %v1729, %v1745
        %v1786 = vcombine.high %v1729, %v1745
        %v1788 = vunpack.c.l.s4 1934713408
        %v1789 = vunpack.c.0.s8 %v1788
        %v1790 = vlaneseq
        %v1791 = vshrl.u32 %v1790, 7
        %v1792 = vsub.s32 %v1789, %v1791
        %v1793 = vrot.slane %v1785, %v1792
        %v1795 = vunpack.c.l.s4 1934713408
        %v1796 = vunpack.c.0.s8 %v1795
        %v1797 = vlaneseq
        %v1798 = vshrl.u32 %v1797, 7
        %v1799 = vsub.s32 %v1796, %v1798
        %v1800 = vrot.slane %v1786, %v1799
        %v1801 = vcombine.low %v1736, %v1752
        %v1802 = vcombine.high %v1736, %v1752
        %v1804 = vunpack.c.l.s4 1934713408
        %v1805 = vunpack.c.0.s8 %v1804
        %v1806 = vlaneseq
        %v1807 = vshrl.u32 %v1806, 7
        %v1808 = vsub.s32 %v1805, %v1807
        %v1809 = vrot.slane %v1801, %v1808
        %v1811 = vunpack.c.l.s4 1934713408
        %v1812 = vunpack.c.0.s8 %v1811
        %v1813 = vlaneseq
        %v1814 = vshrl.u32 %v1813, 7
        %v1815 = vsub.s32 %v1812, %v1814
        %v1816 = vrot.slane %v1802, %v1815
        %v1817 = vcombine.low %v1761, %v1793
        %v1818 = vcombine.high %v1761, %v1793
        %v1819 = vcombine.low %v1768, %v1800
        %v1820 = vcombine.high %v1768, %v1800
        %v1821 = vcombine.low %v1777, %v1809
        %v1822 = vcombine.high %v1777, %v1809
        %v1823 = vcombine.low %v1784, %v1816
        %v1824 = vcombine.high %v1784, %v1816
        %v1825 = vcombine.low %v1490, %v1494
        %v1826 = vcombine.high %v1490, %v1494
        %v1828 = vunpack.c.l.s4 1983009808
        %v1829 = vunpack.c.0.s8 %v1828
        %v1830 = vlaneseq
        %v1831 = vshrl.u32 %v1830, 7
        %v1832 = vsub.s32 %v1829, %v1831
        %v1833 = vrot.slane %v1825, %v1832
        %v1835 = vunpack.c.l.s4 1983009808
        %v1836 = vunpack.c.0.s8 %v1835
        %v1837 = vlaneseq
        %v1838 = vshrl.u32 %v1837, 7
        %v1839 = vsub.s32 %v1836, %v1838
        %v1840 = vrot.slane %v1826, %v1839
        %v1841 = vcombine.low %v1492, %v1496
        %v1842 = vcombine.high %v1492, %v1496
        %v1844 = vunpack.c.l.s4 1983009808
        %v1845 = vunpack.c.0.s8 %v1844
        %v1846 = vlaneseq
        %v1847 = vshrl.u32 %v1846, 7
        %v1848 = vsub.s32 %v1845, %v1847
        %v1849 = vrot.slane %v1841, %v1848
        %v1851 = vunpack.c.l.s4 1983009808
        %v1852 = vunpack.c.0.s8 %v1851
        %v1853 = vlaneseq
        %v1854 = vshrl.u32 %v1853, 7
        %v1855 = vsub.s32 %v1852, %v1854
        %v1856 = vrot.slane %v1842, %v1855
        %v1857 = vcombine.low %v1498, %v1502
        %v1858 = vcombine.high %v1498, %v1502
        %v1860 = vunpack.c.l.s4 1983009808
        %v1861 = vunpack.c.0.s8 %v1860
        %v1862 = vlaneseq
        %v1863 = vshrl.u32 %v1862, 7
        %v1864 = vsub.s32 %v1861, %v1863
        %v1865 = vrot.slane %v1857, %v1864
        %v1867 = vunpack.c.l.s4 1983009808
        %v1868 = vunpack.c.0.s8 %v1867
        %v1869 = vlaneseq
        %v1870 = vshrl.u32 %v1869, 7
        %v1871 = vsub.s32 %v1868, %v1870
        %v1872 = vrot.slane %v1858, %v1871
        %v1873 = vcombine.low %v1500, %v1504
        %v1874 = vcombine.high %v1500, %v1504
        %v1876 = vunpack.c.l.s4 1983009808
        %v1877 = vunpack.c.0.s8 %v1876
        %v1878 = vlaneseq
        %v1879 = vshrl.u32 %v1878, 7
        %v1880 = vsub.s32 %v1877, %v1879
        %v1881 = vrot.slane %v1873, %v1880
        %v1883 = vunpack.c.l.s4 1983009808
        %v1884 = vunpack.c.0.s8 %v1883
        %v1885 = vlaneseq
        %v1886 = vshrl.u32 %v1885, 7
        %v1887 = vsub.s32 %v1884, %v1886
        %v1888 = vrot.slane %v1874, %v1887
        %v1889 = vcombine.low %v1833, %v1849
        %v1890 = vcombine.high %v1833, %v1849
        %v1892 = vunpack.c.l.s4 1934713408
        %v1893 = vunpack.c.0.s8 %v1892
        %v1894 = vlaneseq
        %v1895 = vshrl.u32 %v1894, 7
        %v1896 = vsub.s32 %v1893, %v1895
        %v1897 = vrot.slane %v1889, %v1896
        %v1899 = vunpack.c.l.s4 1934713408
        %v1900 = vunpack.c.0.s8 %v1899
        %v1901 = vlaneseq
        %v1902 = vshrl.u32 %v1901, 7
        %v1903 = vsub.s32 %v1900, %v1902
        %v1904 = vrot.slane %v1890, %v1903
        %v1905 = vcombine.low %v1840, %v1856
        %v1906 = vcombine.high %v1840, %v1856
        %v1908 = vunpack.c.l.s4 1934713408
        %v1909 = vunpack.c.0.s8 %v1908
        %v1910 = vlaneseq
        %v1911 = vshrl.u32 %v1910, 7
        %v1912 = vsub.s32 %v1909, %v1911
        %v1913 = vrot.slane %v1905, %v1912
        %v1915 = vunpack.c.l.s4 1934713408
        %v1916 = vunpack.c.0.s8 %v1915
        %v1917 = vlaneseq
        %v1918 = vshrl.u32 %v1917, 7
        %v1919 = vsub.s32 %v1916, %v1918
        %v1920 = vrot.slane %v1906, %v1919
        %v1921 = vcombine.low %v1865, %v1881
        %v1922 = vcombine.high %v1865, %v1881
        %v1924 = vunpack.c.l.s4 1934713408
        %v1925 = vunpack.c.0.s8 %v1924
        %v1926 = vlaneseq
        %v1927 = vshrl.u32 %v1926, 7
        %v1928 = vsub.s32 %v1925, %v1927
        %v1929 = vrot.slane %v1921, %v1928
        %v1931 = vunpack.c.l.s4 1934713408
        %v1932 = vunpack.c.0.s8 %v1931
        %v1933 = vlaneseq
        %v1934 = vshrl.u32 %v1933, 7
        %v1935 = vsub.s32 %v1932, %v1934
        %v1936 = vrot.slane %v1922, %v1935
        %v1937 = vcombine.low %v1872, %v1888
        %v1938 = vcombine.high %v1872, %v1888
        %v1940 = vunpack.c.l.s4 1934713408
        %v1941 = vunpack.c.0.s8 %v1940
        %v1942 = vlaneseq
        %v1943 = vshrl.u32 %v1942, 7
        %v1944 = vsub.s32 %v1941, %v1943
        %v1945 = vrot.slane %v1937, %v1944
        %v1947 = vunpack.c.l.s4 1934713408
        %v1948 = vunpack.c.0.s8 %v1947
        %v1949 = vlaneseq
        %v1950 = vshrl.u32 %v1949, 7
        %v1951 = vsub.s32 %v1948, %v1950
        %v1952 = vrot.slane %v1938, %v1951
        %v1953 = vcombine.low %v1897, %v1929
        %v1954 = vcombine.high %v1897, %v1929
        %v1955 = vcombine.low %v1904, %v1936
        %v1956 = vcombine.high %v1904, %v1936
        %v1957 = vcombine.low %v1913, %v1945
        %v1958 = vcombine.high %v1913, %v1945
        %v1959 = vcombine.low %v1920, %v1952
        %v1960 = vcombine.high %v1920, %v1952
        %v1961 = vcombine.low %v1506, %v1510
        %v1962 = vcombine.high %v1506, %v1510
        %v1964 = vunpack.c.l.s4 1983009808
        %v1965 = vunpack.c.0.s8 %v1964
        %v1966 = vlaneseq
        %v1967 = vshrl.u32 %v1966, 7
        %v1968 = vsub.s32 %v1965, %v1967
        %v1969 = vrot.slane %v1961, %v1968
        %v1971 = vunpack.c.l.s4 1983009808
        %v1972 = vunpack.c.0.s8 %v1971
        %v1973 = vlaneseq
        %v1974 = vshrl.u32 %v1973, 7
        %v1975 = vsub.s32 %v1972, %v1974
        %v1976 = vrot.slane %v1962, %v1975
        %v1977 = vcombine.low %v1508, %v1512
        %v1978 = vcombine.high %v1508, %v1512
        %v1980 = vunpack.c.l.s4 1983009808
        %v1981 = vunpack.c.0.s8 %v1980
        %v1982 = vlaneseq
        %v1983 = vshrl.u32 %v1982, 7
        %v1984 = vsub.s32 %v1981, %v1983
        %v1985 = vrot.slane %v1977, %v1984
        %v1987 = vunpack.c.l.s4 1983009808
        %v1988 = vunpack.c.0.s8 %v1987
        %v1989 = vlaneseq
        %v1990 = vshrl.u32 %v1989, 7
        %v1991 = vsub.s32 %v1988, %v1990
        %v1992 = vrot.slane %v1978, %v1991
        %v1993 = vcombine.low %v1514, %v1518
        %v1994 = vcombine.high %v1514, %v1518
        %v1996 = vunpack.c.l.s4 1983009808
        %v1997 = vunpack.c.0.s8 %v1996
        %v1998 = vlaneseq
        %v1999 = vshrl.u32 %v1998, 7
        %v2000 = vsub.s32 %v1997, %v1999
        %v2001 = vrot.slane %v1993, %v2000
        %v2003 = vunpack.c.l.s4 1983009808
        %v2004 = vunpack.c.0.s8 %v2003
        %v2005 = vlaneseq
        %v2006 = vshrl.u32 %v2005, 7
        %v2007 = vsub.s32 %v2004, %v2006
        %v2008 = vrot.slane %v1994, %v2007
        %v2009 = vcombine.low %v1516, %v1520
        %v2010 = vcombine.high %v1516, %v1520
        %v2012 = vunpack.c.l.s4 1983009808
        %v2013 = vunpack.c.0.s8 %v2012
        %v2014 = vlaneseq
        %v2015 = vshrl.u32 %v2014, 7
        %v2016 = vsub.s32 %v2013, %v2015
        %v2017 = vrot.slane %v2009, %v2016
        %v2019 = vunpack.c.l.s4 1983009808
        %v2020 = vunpack.c.0.s8 %v2019
        %v2021 = vlaneseq
        %v2022 = vshrl.u32 %v2021, 7
        %v2023 = vsub.s32 %v2020, %v2022
        %v2024 = vrot.slane %v2010, %v2023
        %v2025 = vcombine.low %v1969, %v1985
        %v2026 = vcombine.high %v1969, %v1985
        %v2028 = vunpack.c.l.s4 1934713408
        %v2029 = vunpack.c.0.s8 %v2028
        %v2030 = vlaneseq
        %v2031 = vshrl.u32 %v2030, 7
        %v2032 = vsub.s32 %v2029, %v2031
        %v2033 = vrot.slane %v2025, %v2032
        %v2035 = vunpack.c.l.s4 1934713408
        %v2036 = vunpack.c.0.s8 %v2035
        %v2037 = vlaneseq
        %v2038 = vshrl.u32 %v2037, 7
        %v2039 = vsub.s32 %v2036, %v2038
        %v2040 = vrot.slane %v2026, %v2039
        %v2041 = vcombine.low %v1976, %v1992
        %v2042 = vcombine.high %v1976, %v1992
        %v2044 = vunpack.c.l.s4 1934713408
        %v2045 = vunpack.c.0.s8 %v2044
        %v2046 = vlaneseq
        %v2047 = vshrl.u32 %v2046, 7
        %v2048 = vsub.s32 %v2045, %v2047
        %v2049 = vrot.slane %v2041, %v2048
        %v2051 = vunpack.c.l.s4 1934713408
        %v2052 = vunpack.c.0.s8 %v2051
        %v2053 = vlaneseq
        %v2054 = vshrl.u32 %v2053, 7
        %v2055 = vsub.s32 %v2052, %v2054
        %v2056 = vrot.slane %v2042, %v2055
        %v2057 = vcombine.low %v2001, %v2017
        %v2058 = vcombine.high %v2001, %v2017
        %v2060 = vunpack.c.l.s4 1934713408
        %v2061 = vunpack.c.0.s8 %v2060
        %v2062 = vlaneseq
        %v2063 = vshrl.u32 %v2062, 7
        %v2064 = vsub.s32 %v2061, %v2063
        %v2065 = vrot.slane %v2057, %v2064
        %v2067 = vunpack.c.l.s4 1934713408
        %v2068 = vunpack.c.0.s8 %v2067
        %v2069 = vlaneseq
        %v2070 = vshrl.u32 %v2069, 7
        %v2071 = vsub.s32 %v2068, %v2070
        %v2072 = vrot.slane %v2058, %v2071
        %v2073 = vcombine.low %v2008, %v2024
        %v2074 = vcombine.high %v2008, %v2024
        %v2076 = vunpack.c.l.s4 1934713408
        %v2077 = vunpack.c.0.s8 %v2076
        %v2078 = vlaneseq
        %v2079 = vshrl.u32 %v2078, 7
        %v2080 = vsub.s32 %v2077, %v2079
        %v2081 = vrot.slane %v2073, %v2080
        %v2083 = vunpack.c.l.s4 1934713408
        %v2084 = vunpack.c.0.s8 %v2083
        %v2085 = vlaneseq
        %v2086 = vshrl.u32 %v2085, 7
        %v2087 = vsub.s32 %v2084, %v2086
        %v2088 = vrot.slane %v2074, %v2087
        %v2089 = vcombine.low %v2033, %v2065
        %v2090 = vcombine.high %v2033, %v2065
        %v2091 = vcombine.low %v2040, %v2072
        %v2092 = vcombine.high %v2040, %v2072
        %v2093 = vcombine.low %v2049, %v2081
        %v2094 = vcombine.high %v2049, %v2081
        %v2095 = vcombine.low %v2056, %v2088
        %v2096 = vcombine.high %v2056, %v2088
        %2101 = vrot.lane.b32.xlu0 %v1682, 16
        %v2102 = vpop.permute.xlu0 %2101
        %2103 = vrot.lane.b32.xlu0 %v1818, 16
        %v2104 = vpop.permute.xlu0 %2103
        %2105 = vrot.lane.b32.xlu0 %v1954, 16
        %v2106 = vpop.permute.xlu0 %2105
        %2107 = vrot.lane.b32.xlu0 %v2090, 16
        %v2108 = vpop.permute.xlu0 %2107
        %2117 = vrot.lane.b32.xlu0 %v1683, 32
        %v2118 = vpop.permute.xlu0 %2117
        %2119 = vrot.lane.b32.xlu0 %v1819, 32
        %v2120 = vpop.permute.xlu0 %2119
        %2121 = vrot.lane.b32.xlu0 %v1955, 32
        %v2122 = vpop.permute.xlu0 %2121
        %2123 = vrot.lane.b32.xlu0 %v2091, 32
        %v2124 = vpop.permute.xlu0 %2123
        %2133 = vrot.lane.b32.xlu0 %v1684, 48
        %v2134 = vpop.permute.xlu0 %2133
        %2135 = vrot.lane.b32.xlu0 %v1820, 48
        %v2136 = vpop.permute.xlu0 %2135
        %2137 = vrot.lane.b32.xlu0 %v1956, 48
        %v2138 = vpop.permute.xlu0 %2137
        %2139 = vrot.lane.b32.xlu0 %v2092, 48
        %v2140 = vpop.permute.xlu0 %2139
        %2149 = vrot.lane.b32.xlu0 %v1685, 64
        %v2150 = vpop.permute.xlu0 %2149
        %2151 = vrot.lane.b32.xlu0 %v1821, 64
        %v2152 = vpop.permute.xlu0 %2151
        %2153 = vrot.lane.b32.xlu0 %v1957, 64
        %v2154 = vpop.permute.xlu0 %2153
        %2155 = vrot.lane.b32.xlu0 %v2093, 64
        %v2156 = vpop.permute.xlu0 %2155
        %2165 = vrot.lane.b32.xlu0 %v1686, 80
        %v2166 = vpop.permute.xlu0 %2165
        %2167 = vrot.lane.b32.xlu0 %v1822, 80
        %v2168 = vpop.permute.xlu0 %2167
        %2169 = vrot.lane.b32.xlu0 %v1958, 80
        %v2170 = vpop.permute.xlu0 %2169
        %2171 = vrot.lane.b32.xlu0 %v2094, 80
        %v2172 = vpop.permute.xlu0 %2171
        %2181 = vrot.lane.b32.xlu0 %v1687, 96
        %v2182 = vpop.permute.xlu0 %2181
        %2183 = vrot.lane.b32.xlu0 %v1823, 96
        %v2184 = vpop.permute.xlu0 %2183
        %2185 = vrot.lane.b32.xlu0 %v1959, 96
        %v2186 = vpop.permute.xlu0 %2185
        %2187 = vrot.lane.b32.xlu0 %v2095, 96
        %v2188 = vpop.permute.xlu0 %2187
        %2197 = vrot.lane.b32.xlu0 %v1688, 112
        %v2198 = vpop.permute.xlu0 %2197
        %2199 = vrot.lane.b32.xlu0 %v1824, 112
        %v2200 = vpop.permute.xlu0 %2199
        %2201 = vrot.lane.b32.xlu0 %v1960, 112
        %v2202 = vpop.permute.xlu0 %2201
        %2203 = vrot.lane.b32.xlu0 %v2096, 112
        %v2204 = vpop.permute.xlu0 %2203
        %v2209 = vsel %vm1390, %v1681, %v2102
        %v2210 = vsel %vm1390, %v1817, %v2104
        %v2211 = vsel %vm1390, %v1953, %v2106
        %v2212 = vsel %vm1390, %v2089, %v2108
        %v2213 = vsel %vm1395, %v2209, %v2118
        %v2214 = vsel %vm1395, %v2210, %v2120
        %v2215 = vsel %vm1395, %v2211, %v2122
        %v2216 = vsel %vm1395, %v2212, %v2124
        %v2217 = vsel %vm1400, %v2213, %v2134
        %v2218 = vsel %vm1400, %v2214, %v2136
        %v2219 = vsel %vm1400, %v2215, %v2138
        %v2220 = vsel %vm1400, %v2216, %v2140
        %v2221 = vsel %vm1405, %v2217, %v2150
        %v2222 = vsel %vm1405, %v2218, %v2152
        %v2223 = vsel %vm1405, %v2219, %v2154
        %v2224 = vsel %vm1405, %v2220, %v2156
        %v2225 = vsel %vm1410, %v2221, %v2166
        %v2226 = vsel %vm1410, %v2222, %v2168
        %v2227 = vsel %vm1410, %v2223, %v2170
        %v2228 = vsel %vm1410, %v2224, %v2172
        %v2229 = vsel %vm1415, %v2225, %v2182
        %v2230 = vsel %vm1415, %v2226, %v2184
        %v2231 = vsel %vm1415, %v2227, %v2186
        %v2232 = vsel %vm1415, %v2228, %v2188
        %v2233 = vsel %vm1420, %v2229, %v2198
        %v2234 = vsel %vm1420, %v2230, %v2200
        %v2235 = vsel %vm1420, %v2231, %v2202
        %v2236 = vsel %vm1420, %v2232, %v2204
        %2237 = vrot.lane.b32.xlu0 %v702, 126
        %v2238 = vpop.permute.xlu0 %2237
        %2239 = vrot.lane.b32.xlu0 %v703, 126
        %v2240 = vpop.permute.xlu0 %2239
        %2241 = vrot.lane.b32.xlu0 %v704, 126
        %v2242 = vpop.permute.xlu0 %2241
        %2243 = vrot.lane.b32.xlu0 %v705, 126
        %v2244 = vpop.permute.xlu0 %2243
        %2245 = vrot.lane.b32.xlu0 %v706, 126
        %v2246 = vpop.permute.xlu0 %2245
        %2247 = vrot.lane.b32.xlu0 %v707, 126
        %v2248 = vpop.permute.xlu0 %2247
        %2249 = vrot.lane.b32.xlu0 %v708, 126
        %v2250 = vpop.permute.xlu0 %2249
        %2251 = vrot.lane.b32.xlu0 %v709, 126
        %v2252 = vpop.permute.xlu0 %2251
        %2253 = vrot.lane.b32.xlu0 %v710, 126
        %v2254 = vpop.permute.xlu0 %2253
        %2255 = vrot.lane.b32.xlu0 %v711, 126
        %v2256 = vpop.permute.xlu0 %2255
        %2257 = vrot.lane.b32.xlu0 %v712, 126
        %v2258 = vpop.permute.xlu0 %2257
        %2259 = vrot.lane.b32.xlu0 %v713, 126
        %v2260 = vpop.permute.xlu0 %2259
        %2261 = vrot.lane.b32.xlu0 %v714, 126
        %v2262 = vpop.permute.xlu0 %2261
        %2263 = vrot.lane.b32.xlu0 %v715, 126
        %v2264 = vpop.permute.xlu0 %2263
        %2265 = vrot.lane.b32.xlu0 %v716, 126
        %v2266 = vpop.permute.xlu0 %2265
        %2267 = vrot.lane.b32.xlu0 %v717, 126
        %v2268 = vpop.permute.xlu0 %2267
        %2269 = vrot.lane.b32.xlu0 %v718, 126
        %v2270 = vpop.permute.xlu0 %2269
        %2271 = vrot.lane.b32.xlu0 %v719, 126
        %v2272 = vpop.permute.xlu0 %2271
        %2273 = vrot.lane.b32.xlu0 %v720, 126
        %v2274 = vpop.permute.xlu0 %2273
        %2275 = vrot.lane.b32.xlu0 %v721, 126
        %v2276 = vpop.permute.xlu0 %2275
        %2277 = vrot.lane.b32.xlu0 %v722, 126
        %v2278 = vpop.permute.xlu0 %2277
        %2279 = vrot.lane.b32.xlu0 %v723, 126
        %v2280 = vpop.permute.xlu0 %2279
        %2281 = vrot.lane.b32.xlu0 %v724, 126
        %v2282 = vpop.permute.xlu0 %2281
        %2283 = vrot.lane.b32.xlu0 %v725, 126
        %v2284 = vpop.permute.xlu0 %2283
        %2285 = vrot.lane.b32.xlu0 %v726, 126
        %v2286 = vpop.permute.xlu0 %2285
        %2287 = vrot.lane.b32.xlu0 %v727, 126
        %v2288 = vpop.permute.xlu0 %2287
        %2289 = vrot.lane.b32.xlu0 %v728, 126
        %v2290 = vpop.permute.xlu0 %2289
        %2291 = vrot.lane.b32.xlu0 %v729, 126
        %v2292 = vpop.permute.xlu0 %2291
        %2293 = vrot.lane.b32.xlu0 %v730, 126
        %v2294 = vpop.permute.xlu0 %2293
        %2295 = vrot.lane.b32.xlu0 %v731, 126
        %v2296 = vpop.permute.xlu0 %2295
        %2297 = vrot.lane.b32.xlu0 %v732, 126
        %v2298 = vpop.permute.xlu0 %2297
        %2299 = vrot.lane.b32.xlu0 %v733, 126
        %v2300 = vpop.permute.xlu0 %2299
        %v2333 = vcombine.low %v2238, %v2242
        %v2334 = vcombine.high %v2238, %v2242
        %v2336 = vunpack.c.l.s4 1983009808
        %v2337 = vunpack.c.0.s8 %v2336
        %v2338 = vlaneseq
        %v2339 = vshrl.u32 %v2338, 7
        %v2340 = vsub.s32 %v2337, %v2339
        %v2341 = vrot.slane %v2333, %v2340
        %v2343 = vunpack.c.l.s4 1983009808
        %v2344 = vunpack.c.0.s8 %v2343
        %v2345 = vlaneseq
        %v2346 = vshrl.u32 %v2345, 7
        %v2347 = vsub.s32 %v2344, %v2346
        %v2348 = vrot.slane %v2334, %v2347
        %v2349 = vcombine.low %v2240, %v2244
        %v2350 = vcombine.high %v2240, %v2244
        %v2352 = vunpack.c.l.s4 1983009808
        %v2353 = vunpack.c.0.s8 %v2352
        %v2354 = vlaneseq
        %v2355 = vshrl.u32 %v2354, 7
        %v2356 = vsub.s32 %v2353, %v2355
        %v2357 = vrot.slane %v2349, %v2356
        %v2359 = vunpack.c.l.s4 1983009808
        %v2360 = vunpack.c.0.s8 %v2359
        %v2361 = vlaneseq
        %v2362 = vshrl.u32 %v2361, 7
        %v2363 = vsub.s32 %v2360, %v2362
        %v2364 = vrot.slane %v2350, %v2363
        %v2365 = vcombine.low %v2246, %v2250
        %v2366 = vcombine.high %v2246, %v2250
        %v2368 = vunpack.c.l.s4 1983009808
        %v2369 = vunpack.c.0.s8 %v2368
        %v2370 = vlaneseq
        %v2371 = vshrl.u32 %v2370, 7
        %v2372 = vsub.s32 %v2369, %v2371
        %v2373 = vrot.slane %v2365, %v2372
        %v2375 = vunpack.c.l.s4 1983009808
        %v2376 = vunpack.c.0.s8 %v2375
        %v2377 = vlaneseq
        %v2378 = vshrl.u32 %v2377, 7
        %v2379 = vsub.s32 %v2376, %v2378
        %v2380 = vrot.slane %v2366, %v2379
        %v2381 = vcombine.low %v2248, %v2252
        %v2382 = vcombine.high %v2248, %v2252
        %v2384 = vunpack.c.l.s4 1983009808
        %v2385 = vunpack.c.0.s8 %v2384
        %v2386 = vlaneseq
        %v2387 = vshrl.u32 %v2386, 7
        %v2388 = vsub.s32 %v2385, %v2387
        %v2389 = vrot.slane %v2381, %v2388
        %v2391 = vunpack.c.l.s4 1983009808
        %v2392 = vunpack.c.0.s8 %v2391
        %v2393 = vlaneseq
        %v2394 = vshrl.u32 %v2393, 7
        %v2395 = vsub.s32 %v2392, %v2394
        %v2396 = vrot.slane %v2382, %v2395
        %v2397 = vcombine.low %v2341, %v2357
        %v2398 = vcombine.high %v2341, %v2357
        %v2400 = vunpack.c.l.s4 1934713408
        %v2401 = vunpack.c.0.s8 %v2400
        %v2402 = vlaneseq
        %v2403 = vshrl.u32 %v2402, 7
        %v2404 = vsub.s32 %v2401, %v2403
        %v2405 = vrot.slane %v2397, %v2404
        %v2407 = vunpack.c.l.s4 1934713408
        %v2408 = vunpack.c.0.s8 %v2407
        %v2409 = vlaneseq
        %v2410 = vshrl.u32 %v2409, 7
        %v2411 = vsub.s32 %v2408, %v2410
        %v2412 = vrot.slane %v2398, %v2411
        %v2413 = vcombine.low %v2348, %v2364
        %v2414 = vcombine.high %v2348, %v2364
        %v2416 = vunpack.c.l.s4 1934713408
        %v2417 = vunpack.c.0.s8 %v2416
        %v2418 = vlaneseq
        %v2419 = vshrl.u32 %v2418, 7
        %v2420 = vsub.s32 %v2417, %v2419
        %v2421 = vrot.slane %v2413, %v2420
        %v2423 = vunpack.c.l.s4 1934713408
        %v2424 = vunpack.c.0.s8 %v2423
        %v2425 = vlaneseq
        %v2426 = vshrl.u32 %v2425, 7
        %v2427 = vsub.s32 %v2424, %v2426
        %v2428 = vrot.slane %v2414, %v2427
        %v2429 = vcombine.low %v2373, %v2389
        %v2430 = vcombine.high %v2373, %v2389
        %v2432 = vunpack.c.l.s4 1934713408
        %v2433 = vunpack.c.0.s8 %v2432
        %v2434 = vlaneseq
        %v2435 = vshrl.u32 %v2434, 7
        %v2436 = vsub.s32 %v2433, %v2435
        %v2437 = vrot.slane %v2429, %v2436
        %v2439 = vunpack.c.l.s4 1934713408
        %v2440 = vunpack.c.0.s8 %v2439
        %v2441 = vlaneseq
        %v2442 = vshrl.u32 %v2441, 7
        %v2443 = vsub.s32 %v2440, %v2442
        %v2444 = vrot.slane %v2430, %v2443
        %v2445 = vcombine.low %v2380, %v2396
        %v2446 = vcombine.high %v2380, %v2396
        %v2448 = vunpack.c.l.s4 1934713408
        %v2449 = vunpack.c.0.s8 %v2448
        %v2450 = vlaneseq
        %v2451 = vshrl.u32 %v2450, 7
        %v2452 = vsub.s32 %v2449, %v2451
        %v2453 = vrot.slane %v2445, %v2452
        %v2455 = vunpack.c.l.s4 1934713408
        %v2456 = vunpack.c.0.s8 %v2455
        %v2457 = vlaneseq
        %v2458 = vshrl.u32 %v2457, 7
        %v2459 = vsub.s32 %v2456, %v2458
        %v2460 = vrot.slane %v2446, %v2459
        %v2461 = vcombine.low %v2405, %v2437
        %v2462 = vcombine.high %v2405, %v2437
        %v2463 = vcombine.low %v2412, %v2444
        %v2464 = vcombine.high %v2412, %v2444
        %v2465 = vcombine.low %v2421, %v2453
        %v2466 = vcombine.high %v2421, %v2453
        %v2467 = vcombine.low %v2428, %v2460
        %v2468 = vcombine.high %v2428, %v2460
        %v2469 = vcombine.low %v2254, %v2258
        %v2470 = vcombine.high %v2254, %v2258
        %v2472 = vunpack.c.l.s4 1983009808
        %v2473 = vunpack.c.0.s8 %v2472
        %v2474 = vlaneseq
        %v2475 = vshrl.u32 %v2474, 7
        %v2476 = vsub.s32 %v2473, %v2475
        %v2477 = vrot.slane %v2469, %v2476
        %v2479 = vunpack.c.l.s4 1983009808
        %v2480 = vunpack.c.0.s8 %v2479
        %v2481 = vlaneseq
        %v2482 = vshrl.u32 %v2481, 7
        %v2483 = vsub.s32 %v2480, %v2482
        %v2484 = vrot.slane %v2470, %v2483
        %v2485 = vcombine.low %v2256, %v2260
        %v2486 = vcombine.high %v2256, %v2260
        %v2488 = vunpack.c.l.s4 1983009808
        %v2489 = vunpack.c.0.s8 %v2488
        %v2490 = vlaneseq
        %v2491 = vshrl.u32 %v2490, 7
        %v2492 = vsub.s32 %v2489, %v2491
        %v2493 = vrot.slane %v2485, %v2492
        %v2495 = vunpack.c.l.s4 1983009808
        %v2496 = vunpack.c.0.s8 %v2495
        %v2497 = vlaneseq
        %v2498 = vshrl.u32 %v2497, 7
        %v2499 = vsub.s32 %v2496, %v2498
        %v2500 = vrot.slane %v2486, %v2499
        %v2501 = vcombine.low %v2262, %v2266
        %v2502 = vcombine.high %v2262, %v2266
        %v2504 = vunpack.c.l.s4 1983009808
        %v2505 = vunpack.c.0.s8 %v2504
        %v2506 = vlaneseq
        %v2507 = vshrl.u32 %v2506, 7
        %v2508 = vsub.s32 %v2505, %v2507
        %v2509 = vrot.slane %v2501, %v2508
        %v2511 = vunpack.c.l.s4 1983009808
        %v2512 = vunpack.c.0.s8 %v2511
        %v2513 = vlaneseq
        %v2514 = vshrl.u32 %v2513, 7
        %v2515 = vsub.s32 %v2512, %v2514
        %v2516 = vrot.slane %v2502, %v2515
        %v2517 = vcombine.low %v2264, %v2268
        %v2518 = vcombine.high %v2264, %v2268
        %v2520 = vunpack.c.l.s4 1983009808
        %v2521 = vunpack.c.0.s8 %v2520
        %v2522 = vlaneseq
        %v2523 = vshrl.u32 %v2522, 7
        %v2524 = vsub.s32 %v2521, %v2523
        %v2525 = vrot.slane %v2517, %v2524
        %v2527 = vunpack.c.l.s4 1983009808
        %v2528 = vunpack.c.0.s8 %v2527
        %v2529 = vlaneseq
        %v2530 = vshrl.u32 %v2529, 7
        %v2531 = vsub.s32 %v2528, %v2530
        %v2532 = vrot.slane %v2518, %v2531
        %v2533 = vcombine.low %v2477, %v2493
        %v2534 = vcombine.high %v2477, %v2493
        %v2536 = vunpack.c.l.s4 1934713408
        %v2537 = vunpack.c.0.s8 %v2536
        %v2538 = vlaneseq
        %v2539 = vshrl.u32 %v2538, 7
        %v2540 = vsub.s32 %v2537, %v2539
        %v2541 = vrot.slane %v2533, %v2540
        %v2543 = vunpack.c.l.s4 1934713408
        %v2544 = vunpack.c.0.s8 %v2543
        %v2545 = vlaneseq
        %v2546 = vshrl.u32 %v2545, 7
        %v2547 = vsub.s32 %v2544, %v2546
        %v2548 = vrot.slane %v2534, %v2547
        %v2549 = vcombine.low %v2484, %v2500
        %v2550 = vcombine.high %v2484, %v2500
        %v2552 = vunpack.c.l.s4 1934713408
        %v2553 = vunpack.c.0.s8 %v2552
        %v2554 = vlaneseq
        %v2555 = vshrl.u32 %v2554, 7
        %v2556 = vsub.s32 %v2553, %v2555
        %v2557 = vrot.slane %v2549, %v2556
        %v2559 = vunpack.c.l.s4 1934713408
        %v2560 = vunpack.c.0.s8 %v2559
        %v2561 = vlaneseq
        %v2562 = vshrl.u32 %v2561, 7
        %v2563 = vsub.s32 %v2560, %v2562
        %v2564 = vrot.slane %v2550, %v2563
        %v2565 = vcombine.low %v2509, %v2525
        %v2566 = vcombine.high %v2509, %v2525
        %v2568 = vunpack.c.l.s4 1934713408
        %v2569 = vunpack.c.0.s8 %v2568
        %v2570 = vlaneseq
        %v2571 = vshrl.u32 %v2570, 7
        %v2572 = vsub.s32 %v2569, %v2571
        %v2573 = vrot.slane %v2565, %v2572
        %v2575 = vunpack.c.l.s4 1934713408
        %v2576 = vunpack.c.0.s8 %v2575
        %v2577 = vlaneseq
        %v2578 = vshrl.u32 %v2577, 7
        %v2579 = vsub.s32 %v2576, %v2578
        %v2580 = vrot.slane %v2566, %v2579
        %v2581 = vcombine.low %v2516, %v2532
        %v2582 = vcombine.high %v2516, %v2532
        %v2584 = vunpack.c.l.s4 1934713408
        %v2585 = vunpack.c.0.s8 %v2584
        %v2586 = vlaneseq
        %v2587 = vshrl.u32 %v2586, 7
        %v2588 = vsub.s32 %v2585, %v2587
        %v2589 = vrot.slane %v2581, %v2588
        %v2591 = vunpack.c.l.s4 1934713408
        %v2592 = vunpack.c.0.s8 %v2591
        %v2593 = vlaneseq
        %v2594 = vshrl.u32 %v2593, 7
        %v2595 = vsub.s32 %v2592, %v2594
        %v2596 = vrot.slane %v2582, %v2595
        %v2597 = vcombine.low %v2541, %v2573
        %v2598 = vcombine.high %v2541, %v2573
        %v2599 = vcombine.low %v2548, %v2580
        %v2600 = vcombine.high %v2548, %v2580
        %v2601 = vcombine.low %v2557, %v2589
        %v2602 = vcombine.high %v2557, %v2589
        %v2603 = vcombine.low %v2564, %v2596
        %v2604 = vcombine.high %v2564, %v2596
        %v2605 = vcombine.low %v2270, %v2274
        %v2606 = vcombine.high %v2270, %v2274
        %v2608 = vunpack.c.l.s4 1983009808
        %v2609 = vunpack.c.0.s8 %v2608
        %v2610 = vlaneseq
        %v2611 = vshrl.u32 %v2610, 7
        %v2612 = vsub.s32 %v2609, %v2611
        %v2613 = vrot.slane %v2605, %v2612
        %v2615 = vunpack.c.l.s4 1983009808
        %v2616 = vunpack.c.0.s8 %v2615
        %v2617 = vlaneseq
        %v2618 = vshrl.u32 %v2617, 7
        %v2619 = vsub.s32 %v2616, %v2618
        %v2620 = vrot.slane %v2606, %v2619
        %v2621 = vcombine.low %v2272, %v2276
        %v2622 = vcombine.high %v2272, %v2276
        %v2624 = vunpack.c.l.s4 1983009808
        %v2625 = vunpack.c.0.s8 %v2624
        %v2626 = vlaneseq
        %v2627 = vshrl.u32 %v2626, 7
        %v2628 = vsub.s32 %v2625, %v2627
        %v2629 = vrot.slane %v2621, %v2628
        %v2631 = vunpack.c.l.s4 1983009808
        %v2632 = vunpack.c.0.s8 %v2631
        %v2633 = vlaneseq
        %v2634 = vshrl.u32 %v2633, 7
        %v2635 = vsub.s32 %v2632, %v2634
        %v2636 = vrot.slane %v2622, %v2635
        %v2637 = vcombine.low %v2278, %v2282
        %v2638 = vcombine.high %v2278, %v2282
        %v2640 = vunpack.c.l.s4 1983009808
        %v2641 = vunpack.c.0.s8 %v2640
        %v2642 = vlaneseq
        %v2643 = vshrl.u32 %v2642, 7
        %v2644 = vsub.s32 %v2641, %v2643
        %v2645 = vrot.slane %v2637, %v2644
        %v2647 = vunpack.c.l.s4 1983009808
        %v2648 = vunpack.c.0.s8 %v2647
        %v2649 = vlaneseq
        %v2650 = vshrl.u32 %v2649, 7
        %v2651 = vsub.s32 %v2648, %v2650
        %v2652 = vrot.slane %v2638, %v2651
        %v2653 = vcombine.low %v2280, %v2284
        %v2654 = vcombine.high %v2280, %v2284
        %v2656 = vunpack.c.l.s4 1983009808
        %v2657 = vunpack.c.0.s8 %v2656
        %v2658 = vlaneseq
        %v2659 = vshrl.u32 %v2658, 7
        %v2660 = vsub.s32 %v2657, %v2659
        %v2661 = vrot.slane %v2653, %v2660
        %v2663 = vunpack.c.l.s4 1983009808
        %v2664 = vunpack.c.0.s8 %v2663
        %v2665 = vlaneseq
        %v2666 = vshrl.u32 %v2665, 7
        %v2667 = vsub.s32 %v2664, %v2666
        %v2668 = vrot.slane %v2654, %v2667
        %v2669 = vcombine.low %v2613, %v2629
        %v2670 = vcombine.high %v2613, %v2629
        %v2672 = vunpack.c.l.s4 1934713408
        %v2673 = vunpack.c.0.s8 %v2672
        %v2674 = vlaneseq
        %v2675 = vshrl.u32 %v2674, 7
        %v2676 = vsub.s32 %v2673, %v2675
        %v2677 = vrot.slane %v2669, %v2676
        %v2679 = vunpack.c.l.s4 1934713408
        %v2680 = vunpack.c.0.s8 %v2679
        %v2681 = vlaneseq
        %v2682 = vshrl.u32 %v2681, 7
        %v2683 = vsub.s32 %v2680, %v2682
        %v2684 = vrot.slane %v2670, %v2683
        %v2685 = vcombine.low %v2620, %v2636
        %v2686 = vcombine.high %v2620, %v2636
        %v2688 = vunpack.c.l.s4 1934713408
        %v2689 = vunpack.c.0.s8 %v2688
        %v2690 = vlaneseq
        %v2691 = vshrl.u32 %v2690, 7
        %v2692 = vsub.s32 %v2689, %v2691
        %v2693 = vrot.slane %v2685, %v2692
        %v2695 = vunpack.c.l.s4 1934713408
        %v2696 = vunpack.c.0.s8 %v2695
        %v2697 = vlaneseq
        %v2698 = vshrl.u32 %v2697, 7
        %v2699 = vsub.s32 %v2696, %v2698
        %v2700 = vrot.slane %v2686, %v2699
        %v2701 = vcombine.low %v2645, %v2661
        %v2702 = vcombine.high %v2645, %v2661
        %v2704 = vunpack.c.l.s4 1934713408
        %v2705 = vunpack.c.0.s8 %v2704
        %v2706 = vlaneseq
        %v2707 = vshrl.u32 %v2706, 7
        %v2708 = vsub.s32 %v2705, %v2707
        %v2709 = vrot.slane %v2701, %v2708
        %v2711 = vunpack.c.l.s4 1934713408
        %v2712 = vunpack.c.0.s8 %v2711
        %v2713 = vlaneseq
        %v2714 = vshrl.u32 %v2713, 7
        %v2715 = vsub.s32 %v2712, %v2714
        %v2716 = vrot.slane %v2702, %v2715
        %v2717 = vcombine.low %v2652, %v2668
        %v2718 = vcombine.high %v2652, %v2668
        %v2720 = vunpack.c.l.s4 1934713408
        %v2721 = vunpack.c.0.s8 %v2720
        %v2722 = vlaneseq
        %v2723 = vshrl.u32 %v2722, 7
        %v2724 = vsub.s32 %v2721, %v2723
        %v2725 = vrot.slane %v2717, %v2724
        %v2727 = vunpack.c.l.s4 1934713408
        %v2728 = vunpack.c.0.s8 %v2727
        %v2729 = vlaneseq
        %v2730 = vshrl.u32 %v2729, 7
        %v2731 = vsub.s32 %v2728, %v2730
        %v2732 = vrot.slane %v2718, %v2731
        %v2733 = vcombine.low %v2677, %v2709
        %v2734 = vcombine.high %v2677, %v2709
        %v2735 = vcombine.low %v2684, %v2716
        %v2736 = vcombine.high %v2684, %v2716
        %v2737 = vcombine.low %v2693, %v2725
        %v2738 = vcombine.high %v2693, %v2725
        %v2739 = vcombine.low %v2700, %v2732
        %v2740 = vcombine.high %v2700, %v2732
        %v2741 = vcombine.low %v2286, %v2290
        %v2742 = vcombine.high %v2286, %v2290
        %v2744 = vunpack.c.l.s4 1983009808
        %v2745 = vunpack.c.0.s8 %v2744
        %v2746 = vlaneseq
        %v2747 = vshrl.u32 %v2746, 7
        %v2748 = vsub.s32 %v2745, %v2747
        %v2749 = vrot.slane %v2741, %v2748
        %v2751 = vunpack.c.l.s4 1983009808
        %v2752 = vunpack.c.0.s8 %v2751
        %v2753 = vlaneseq
        %v2754 = vshrl.u32 %v2753, 7
        %v2755 = vsub.s32 %v2752, %v2754
        %v2756 = vrot.slane %v2742, %v2755
        %v2757 = vcombine.low %v2288, %v2292
        %v2758 = vcombine.high %v2288, %v2292
        %v2760 = vunpack.c.l.s4 1983009808
        %v2761 = vunpack.c.0.s8 %v2760
        %v2762 = vlaneseq
        %v2763 = vshrl.u32 %v2762, 7
        %v2764 = vsub.s32 %v2761, %v2763
        %v2765 = vrot.slane %v2757, %v2764
        %v2767 = vunpack.c.l.s4 1983009808
        %v2768 = vunpack.c.0.s8 %v2767
        %v2769 = vlaneseq
        %v2770 = vshrl.u32 %v2769, 7
        %v2771 = vsub.s32 %v2768, %v2770
        %v2772 = vrot.slane %v2758, %v2771
        %v2773 = vcombine.low %v2294, %v2298
        %v2774 = vcombine.high %v2294, %v2298
        %v2776 = vunpack.c.l.s4 1983009808
        %v2777 = vunpack.c.0.s8 %v2776
        %v2778 = vlaneseq
        %v2779 = vshrl.u32 %v2778, 7
        %v2780 = vsub.s32 %v2777, %v2779
        %v2781 = vrot.slane %v2773, %v2780
        %v2783 = vunpack.c.l.s4 1983009808
        %v2784 = vunpack.c.0.s8 %v2783
        %v2785 = vlaneseq
        %v2786 = vshrl.u32 %v2785, 7
        %v2787 = vsub.s32 %v2784, %v2786
        %v2788 = vrot.slane %v2774, %v2787
        %v2789 = vcombine.low %v2296, %v2300
        %v2790 = vcombine.high %v2296, %v2300
        %v2792 = vunpack.c.l.s4 1983009808
        %v2793 = vunpack.c.0.s8 %v2792
        %v2794 = vlaneseq
        %v2795 = vshrl.u32 %v2794, 7
        %v2796 = vsub.s32 %v2793, %v2795
        %v2797 = vrot.slane %v2789, %v2796
        %v2799 = vunpack.c.l.s4 1983009808
        %v2800 = vunpack.c.0.s8 %v2799
        %v2801 = vlaneseq
        %v2802 = vshrl.u32 %v2801, 7
        %v2803 = vsub.s32 %v2800, %v2802
        %v2804 = vrot.slane %v2790, %v2803
        %v2805 = vcombine.low %v2749, %v2765
        %v2806 = vcombine.high %v2749, %v2765
        %v2808 = vunpack.c.l.s4 1934713408
        %v2809 = vunpack.c.0.s8 %v2808
        %v2810 = vlaneseq
        %v2811 = vshrl.u32 %v2810, 7
        %v2812 = vsub.s32 %v2809, %v2811
        %v2813 = vrot.slane %v2805, %v2812
        %v2815 = vunpack.c.l.s4 1934713408
        %v2816 = vunpack.c.0.s8 %v2815
        %v2817 = vlaneseq
        %v2818 = vshrl.u32 %v2817, 7
        %v2819 = vsub.s32 %v2816, %v2818
        %v2820 = vrot.slane %v2806, %v2819
        %v2821 = vcombine.low %v2756, %v2772
        %v2822 = vcombine.high %v2756, %v2772
        %v2824 = vunpack.c.l.s4 1934713408
        %v2825 = vunpack.c.0.s8 %v2824
        %v2826 = vlaneseq
        %v2827 = vshrl.u32 %v2826, 7
        %v2828 = vsub.s32 %v2825, %v2827
        %v2829 = vrot.slane %v2821, %v2828
        %v2831 = vunpack.c.l.s4 1934713408
        %v2832 = vunpack.c.0.s8 %v2831
        %v2833 = vlaneseq
        %v2834 = vshrl.u32 %v2833, 7
        %v2835 = vsub.s32 %v2832, %v2834
        %v2836 = vrot.slane %v2822, %v2835
        %v2837 = vcombine.low %v2781, %v2797
        %v2838 = vcombine.high %v2781, %v2797
        %v2840 = vunpack.c.l.s4 1934713408
        %v2841 = vunpack.c.0.s8 %v2840
        %v2842 = vlaneseq
        %v2843 = vshrl.u32 %v2842, 7
        %v2844 = vsub.s32 %v2841, %v2843
        %v2845 = vrot.slane %v2837, %v2844
        %v2847 = vunpack.c.l.s4 1934713408
        %v2848 = vunpack.c.0.s8 %v2847
        %v2849 = vlaneseq
        %v2850 = vshrl.u32 %v2849, 7
        %v2851 = vsub.s32 %v2848, %v2850
        %v2852 = vrot.slane %v2838, %v2851
        %v2853 = vcombine.low %v2788, %v2804
        %v2854 = vcombine.high %v2788, %v2804
        %v2856 = vunpack.c.l.s4 1934713408
        %v2857 = vunpack.c.0.s8 %v2856
        %v2858 = vlaneseq
        %v2859 = vshrl.u32 %v2858, 7
        %v2860 = vsub.s32 %v2857, %v2859
        %v2861 = vrot.slane %v2853, %v2860
        %v2863 = vunpack.c.l.s4 1934713408
        %v2864 = vunpack.c.0.s8 %v2863
        %v2865 = vlaneseq
        %v2866 = vshrl.u32 %v2865, 7
        %v2867 = vsub.s32 %v2864, %v2866
        %v2868 = vrot.slane %v2854, %v2867
        %v2869 = vcombine.low %v2813, %v2845
        %v2870 = vcombine.high %v2813, %v2845
        %v2871 = vcombine.low %v2820, %v2852
        %v2872 = vcombine.high %v2820, %v2852
        %v2873 = vcombine.low %v2829, %v2861
        %v2874 = vcombine.high %v2829, %v2861
        %v2875 = vcombine.low %v2836, %v2868
        %v2876 = vcombine.high %v2836, %v2868
        %2881 = vrot.lane.b32.xlu0 %v2462, 16
        %v2882 = vpop.permute.xlu0 %2881
        %2883 = vrot.lane.b32.xlu0 %v2598, 16
        %v2884 = vpop.permute.xlu0 %2883
        %2885 = vrot.lane.b32.xlu0 %v2734, 16
        %v2886 = vpop.permute.xlu0 %2885
        %2887 = vrot.lane.b32.xlu0 %v2870, 16
        %v2888 = vpop.permute.xlu0 %2887
        %2897 = vrot.lane.b32.xlu0 %v2463, 32
        %v2898 = vpop.permute.xlu0 %2897
        %2899 = vrot.lane.b32.xlu0 %v2599, 32
        %v2900 = vpop.permute.xlu0 %2899
        %2901 = vrot.lane.b32.xlu0 %v2735, 32
        %v2902 = vpop.permute.xlu0 %2901
        %2903 = vrot.lane.b32.xlu0 %v2871, 32
        %v2904 = vpop.permute.xlu0 %2903
        %2913 = vrot.lane.b32.xlu0 %v2464, 48
        %v2914 = vpop.permute.xlu0 %2913
        %2915 = vrot.lane.b32.xlu0 %v2600, 48
        %v2916 = vpop.permute.xlu0 %2915
        %2917 = vrot.lane.b32.xlu0 %v2736, 48
        %v2918 = vpop.permute.xlu0 %2917
        %2919 = vrot.lane.b32.xlu0 %v2872, 48
        %v2920 = vpop.permute.xlu0 %2919
        %2929 = vrot.lane.b32.xlu0 %v2465, 64
        %v2930 = vpop.permute.xlu0 %2929
        %2931 = vrot.lane.b32.xlu0 %v2601, 64
        %v2932 = vpop.permute.xlu0 %2931
        %2933 = vrot.lane.b32.xlu0 %v2737, 64
        %v2934 = vpop.permute.xlu0 %2933
        %2935 = vrot.lane.b32.xlu0 %v2873, 64
        %v2936 = vpop.permute.xlu0 %2935
        %2945 = vrot.lane.b32.xlu0 %v2466, 80
        %v2946 = vpop.permute.xlu0 %2945
        %2947 = vrot.lane.b32.xlu0 %v2602, 80
        %v2948 = vpop.permute.xlu0 %2947
        %2949 = vrot.lane.b32.xlu0 %v2738, 80
        %v2950 = vpop.permute.xlu0 %2949
        %2951 = vrot.lane.b32.xlu0 %v2874, 80
        %v2952 = vpop.permute.xlu0 %2951
        %2961 = vrot.lane.b32.xlu0 %v2467, 96
        %v2962 = vpop.permute.xlu0 %2961
        %2963 = vrot.lane.b32.xlu0 %v2603, 96
        %v2964 = vpop.permute.xlu0 %2963
        %2965 = vrot.lane.b32.xlu0 %v2739, 96
        %v2966 = vpop.permute.xlu0 %2965
        %2967 = vrot.lane.b32.xlu0 %v2875, 96
        %v2968 = vpop.permute.xlu0 %2967
        %2977 = vrot.lane.b32.xlu0 %v2468, 112
        %v2978 = vpop.permute.xlu0 %2977
        %2979 = vrot.lane.b32.xlu0 %v2604, 112
        %v2980 = vpop.permute.xlu0 %2979
        %2981 = vrot.lane.b32.xlu0 %v2740, 112
        %v2982 = vpop.permute.xlu0 %2981
        %2983 = vrot.lane.b32.xlu0 %v2876, 112
        %v2984 = vpop.permute.xlu0 %2983
        %v2989 = vsel %vm1390, %v2461, %v2882
        %v2990 = vsel %vm1390, %v2597, %v2884
        %v2991 = vsel %vm1390, %v2733, %v2886
        %v2992 = vsel %vm1390, %v2869, %v2888
        %v2993 = vsel %vm1395, %v2989, %v2898
        %v2994 = vsel %vm1395, %v2990, %v2900
        %v2995 = vsel %vm1395, %v2991, %v2902
        %v2996 = vsel %vm1395, %v2992, %v2904
        %v2997 = vsel %vm1400, %v2993, %v2914
        %v2998 = vsel %vm1400, %v2994, %v2916
        %v2999 = vsel %vm1400, %v2995, %v2918
        %v3000 = vsel %vm1400, %v2996, %v2920
        %v3001 = vsel %vm1405, %v2997, %v2930
        %v3002 = vsel %vm1405, %v2998, %v2932
        %v3003 = vsel %vm1405, %v2999, %v2934
        %v3004 = vsel %vm1405, %v3000, %v2936
        %v3005 = vsel %vm1410, %v3001, %v2946
        %v3006 = vsel %vm1410, %v3002, %v2948
        %v3007 = vsel %vm1410, %v3003, %v2950
        %v3008 = vsel %vm1410, %v3004, %v2952
        %v3009 = vsel %vm1415, %v3005, %v2962
        %v3010 = vsel %vm1415, %v3006, %v2964
        %v3011 = vsel %vm1415, %v3007, %v2966
        %v3012 = vsel %vm1415, %v3008, %v2968
        %v3013 = vsel %vm1420, %v3009, %v2978
        %v3014 = vsel %vm1420, %v3010, %v2980
        %v3015 = vsel %vm1420, %v3011, %v2982
        %v3016 = vsel %vm1420, %v3012, %v2984
        %s3017 = sadd.s32 %s217, 1
        %s3018 = scalar_lea.vmem [#allocation2], %s3017
        %v3019 = vld [vmem:[%s3018] sm:$0xff]
        %v3020 = vld [vmem:[%s3018 + $0x18] sm:$0xff]
        %v3021 = vld [vmem:[%s3018 + $0x30] sm:$0xff]
        %v3022 = vld [vmem:[%s3018 + $0x48] sm:$0xff]
        %v3023 = vld [vmem:[%s3018 + $0x60] sm:$0xff]
        %v3024 = vld [vmem:[%s3018 + $0x78] sm:$0xff]
        %v3025 = vld [vmem:[%s3018 + $0x90] sm:$0xff]
        %v3026 = vld [vmem:[%s3018 + $0xa8] sm:$0xff]
        %v3027 = vld [vmem:[%s3018 + $0xc0] sm:$0xff]
        %v3028 = vld [vmem:[%s3018 + $0xd8] sm:$0xff]
        %v3029 = vld [vmem:[%s3018 + $0xf0] sm:$0xff]
        %v3030 = vld [vmem:[%s3018 + $0x108] sm:$0xff]
        %v3031 = vld [vmem:[%s3018 + $0x120] sm:$0xff]
        %v3032 = vld [vmem:[%s3018 + $0x138] sm:$0xff]
        %v3033 = vld [vmem:[%s3018 + $0x150] sm:$0xff]
        %v3034 = vld [vmem:[%s3018 + $0x168] sm:$0xff]
        %v3035 = vld [vmem:[%s3018 + $0x180] sm:$0xff]
        %v3036 = vld [vmem:[%s3018 + $0x198] sm:$0xff]
        %v3037 = vld [vmem:[%s3018 + $0x1b0] sm:$0xff]
        %v3038 = vld [vmem:[%s3018 + $0x1c8] sm:$0xff]
        %v3039 = vld [vmem:[%s3018 + $0x1e0] sm:$0xff]
        %v3040 = vld [vmem:[%s3018 + $0x1f8] sm:$0xff]
        %v3041 = vld [vmem:[%s3018 + $0x210] sm:$0xff]
        %v3042 = vld [vmem:[%s3018 + $0x228] sm:$0xff]
        %v3043 = vld [vmem:[%s3018 + $0x240] sm:$0xff]
        %v3044 = vld [vmem:[%s3018 + $0x258] sm:$0xff]
        %v3045 = vld [vmem:[%s3018 + $0x270] sm:$0xff]
        %v3046 = vld [vmem:[%s3018 + $0x288] sm:$0xff]
        %v3047 = vld [vmem:[%s3018 + $0x2a0] sm:$0xff]
        %v3048 = vld [vmem:[%s3018 + $0x2b8] sm:$0xff]
        %v3049 = vld [vmem:[%s3018 + $0x2d0] sm:$0xff]
        %v3050 = vld [vmem:[%s3018 + $0x2e8] sm:$0xff]
        %v3051 = vcombine.low %v3019, %v3021
        %v3052 = vcombine.high %v3019, %v3021
        %v3054 = vunpack.c.l.s4 1983009808
        %v3055 = vunpack.c.0.s8 %v3054
        %v3056 = vlaneseq
        %v3057 = vshrl.u32 %v3056, 7
        %v3058 = vsub.s32 %v3055, %v3057
        %v3059 = vrot.slane %v3051, %v3058
        %v3061 = vunpack.c.l.s4 1983009808
        %v3062 = vunpack.c.0.s8 %v3061
        %v3063 = vlaneseq
        %v3064 = vshrl.u32 %v3063, 7
        %v3065 = vsub.s32 %v3062, %v3064
        %v3066 = vrot.slane %v3052, %v3065
        %v3067 = vcombine.low %v3020, %v3022
        %v3068 = vcombine.high %v3020, %v3022
        %v3070 = vunpack.c.l.s4 1983009808
        %v3071 = vunpack.c.0.s8 %v3070
        %v3072 = vlaneseq
        %v3073 = vshrl.u32 %v3072, 7
        %v3074 = vsub.s32 %v3071, %v3073
        %v3075 = vrot.slane %v3067, %v3074
        %v3077 = vunpack.c.l.s4 1983009808
        %v3078 = vunpack.c.0.s8 %v3077
        %v3079 = vlaneseq
        %v3080 = vshrl.u32 %v3079, 7
        %v3081 = vsub.s32 %v3078, %v3080
        %v3082 = vrot.slane %v3068, %v3081
        %v3083 = vcombine.low %v3023, %v3025
        %v3084 = vcombine.high %v3023, %v3025
        %v3086 = vunpack.c.l.s4 1983009808
        %v3087 = vunpack.c.0.s8 %v3086
        %v3088 = vlaneseq
        %v3089 = vshrl.u32 %v3088, 7
        %v3090 = vsub.s32 %v3087, %v3089
        %v3091 = vrot.slane %v3083, %v3090
        %v3093 = vunpack.c.l.s4 1983009808
        %v3094 = vunpack.c.0.s8 %v3093
        %v3095 = vlaneseq
        %v3096 = vshrl.u32 %v3095, 7
        %v3097 = vsub.s32 %v3094, %v3096
        %v3098 = vrot.slane %v3084, %v3097
        %v3099 = vcombine.low %v3024, %v3026
        %v3100 = vcombine.high %v3024, %v3026
        %v3102 = vunpack.c.l.s4 1983009808
        %v3103 = vunpack.c.0.s8 %v3102
        %v3104 = vlaneseq
        %v3105 = vshrl.u32 %v3104, 7
        %v3106 = vsub.s32 %v3103, %v3105
        %v3107 = vrot.slane %v3099, %v3106
        %v3109 = vunpack.c.l.s4 1983009808
        %v3110 = vunpack.c.0.s8 %v3109
        %v3111 = vlaneseq
        %v3112 = vshrl.u32 %v3111, 7
        %v3113 = vsub.s32 %v3110, %v3112
        %v3114 = vrot.slane %v3100, %v3113
        %v3115 = vcombine.low %v3059, %v3075
        %v3116 = vcombine.high %v3059, %v3075
        %v3118 = vunpack.c.l.s4 1934713408
        %v3119 = vunpack.c.0.s8 %v3118
        %v3120 = vlaneseq
        %v3121 = vshrl.u32 %v3120, 7
        %v3122 = vsub.s32 %v3119, %v3121
        %v3123 = vrot.slane %v3115, %v3122
        %v3125 = vunpack.c.l.s4 1934713408
        %v3126 = vunpack.c.0.s8 %v3125
        %v3127 = vlaneseq
        %v3128 = vshrl.u32 %v3127, 7
        %v3129 = vsub.s32 %v3126, %v3128
        %v3130 = vrot.slane %v3116, %v3129
        %v3131 = vcombine.low %v3066, %v3082
        %v3132 = vcombine.high %v3066, %v3082
        %v3134 = vunpack.c.l.s4 1934713408
        %v3135 = vunpack.c.0.s8 %v3134
        %v3136 = vlaneseq
        %v3137 = vshrl.u32 %v3136, 7
        %v3138 = vsub.s32 %v3135, %v3137
        %v3139 = vrot.slane %v3131, %v3138
        %v3141 = vunpack.c.l.s4 1934713408
        %v3142 = vunpack.c.0.s8 %v3141
        %v3143 = vlaneseq
        %v3144 = vshrl.u32 %v3143, 7
        %v3145 = vsub.s32 %v3142, %v3144
        %v3146 = vrot.slane %v3132, %v3145
        %v3147 = vcombine.low %v3091, %v3107
        %v3148 = vcombine.high %v3091, %v3107
        %v3150 = vunpack.c.l.s4 1934713408
        %v3151 = vunpack.c.0.s8 %v3150
        %v3152 = vlaneseq
        %v3153 = vshrl.u32 %v3152, 7
        %v3154 = vsub.s32 %v3151, %v3153
        %v3155 = vrot.slane %v3147, %v3154
        %v3157 = vunpack.c.l.s4 1934713408
        %v3158 = vunpack.c.0.s8 %v3157
        %v3159 = vlaneseq
        %v3160 = vshrl.u32 %v3159, 7
        %v3161 = vsub.s32 %v3158, %v3160
        %v3162 = vrot.slane %v3148, %v3161
        %v3163 = vcombine.low %v3098, %v3114
        %v3164 = vcombine.high %v3098, %v3114
        %v3166 = vunpack.c.l.s4 1934713408
        %v3167 = vunpack.c.0.s8 %v3166
        %v3168 = vlaneseq
        %v3169 = vshrl.u32 %v3168, 7
        %v3170 = vsub.s32 %v3167, %v3169
        %v3171 = vrot.slane %v3163, %v3170
        %v3173 = vunpack.c.l.s4 1934713408
        %v3174 = vunpack.c.0.s8 %v3173
        %v3175 = vlaneseq
        %v3176 = vshrl.u32 %v3175, 7
        %v3177 = vsub.s32 %v3174, %v3176
        %v3178 = vrot.slane %v3164, %v3177
        %v3179 = vcombine.low %v3123, %v3155
        %v3180 = vcombine.high %v3123, %v3155
        %v3181 = vcombine.low %v3130, %v3162
        %v3182 = vcombine.high %v3130, %v3162
        %v3183 = vcombine.low %v3139, %v3171
        %v3184 = vcombine.high %v3139, %v3171
        %v3185 = vcombine.low %v3146, %v3178
        %v3186 = vcombine.high %v3146, %v3178
        %v3187 = vcombine.low %v3027, %v3029
        %v3188 = vcombine.high %v3027, %v3029
        %v3190 = vunpack.c.l.s4 1983009808
        %v3191 = vunpack.c.0.s8 %v3190
        %v3192 = vlaneseq
        %v3193 = vshrl.u32 %v3192, 7
        %v3194 = vsub.s32 %v3191, %v3193
        %v3195 = vrot.slane %v3187, %v3194
        %v3197 = vunpack.c.l.s4 1983009808
        %v3198 = vunpack.c.0.s8 %v3197
        %v3199 = vlaneseq
        %v3200 = vshrl.u32 %v3199, 7
        %v3201 = vsub.s32 %v3198, %v3200
        %v3202 = vrot.slane %v3188, %v3201
        %v3203 = vcombine.low %v3028, %v3030
        %v3204 = vcombine.high %v3028, %v3030
        %v3206 = vunpack.c.l.s4 1983009808
        %v3207 = vunpack.c.0.s8 %v3206
        %v3208 = vlaneseq
        %v3209 = vshrl.u32 %v3208, 7
        %v3210 = vsub.s32 %v3207, %v3209
        %v3211 = vrot.slane %v3203, %v3210
        %v3213 = vunpack.c.l.s4 1983009808
        %v3214 = vunpack.c.0.s8 %v3213
        %v3215 = vlaneseq
        %v3216 = vshrl.u32 %v3215, 7
        %v3217 = vsub.s32 %v3214, %v3216
        %v3218 = vrot.slane %v3204, %v3217
        %v3219 = vcombine.low %v3031, %v3033
        %v3220 = vcombine.high %v3031, %v3033
        %v3222 = vunpack.c.l.s4 1983009808
        %v3223 = vunpack.c.0.s8 %v3222
        %v3224 = vlaneseq
        %v3225 = vshrl.u32 %v3224, 7
        %v3226 = vsub.s32 %v3223, %v3225
        %v3227 = vrot.slane %v3219, %v3226
        %v3229 = vunpack.c.l.s4 1983009808
        %v3230 = vunpack.c.0.s8 %v3229
        %v3231 = vlaneseq
        %v3232 = vshrl.u32 %v3231, 7
        %v3233 = vsub.s32 %v3230, %v3232
        %v3234 = vrot.slane %v3220, %v3233
        %v3235 = vcombine.low %v3032, %v3034
        %v3236 = vcombine.high %v3032, %v3034
        %v3238 = vunpack.c.l.s4 1983009808
        %v3239 = vunpack.c.0.s8 %v3238
        %v3240 = vlaneseq
        %v3241 = vshrl.u32 %v3240, 7
        %v3242 = vsub.s32 %v3239, %v3241
        %v3243 = vrot.slane %v3235, %v3242
        %v3245 = vunpack.c.l.s4 1983009808
        %v3246 = vunpack.c.0.s8 %v3245
        %v3247 = vlaneseq
        %v3248 = vshrl.u32 %v3247, 7
        %v3249 = vsub.s32 %v3246, %v3248
        %v3250 = vrot.slane %v3236, %v3249
        %v3251 = vcombine.low %v3195, %v3211
        %v3252 = vcombine.high %v3195, %v3211
        %v3254 = vunpack.c.l.s4 1934713408
        %v3255 = vunpack.c.0.s8 %v3254
        %v3256 = vlaneseq
        %v3257 = vshrl.u32 %v3256, 7
        %v3258 = vsub.s32 %v3255, %v3257
        %v3259 = vrot.slane %v3251, %v3258
        %v3261 = vunpack.c.l.s4 1934713408
        %v3262 = vunpack.c.0.s8 %v3261
        %v3263 = vlaneseq
        %v3264 = vshrl.u32 %v3263, 7
        %v3265 = vsub.s32 %v3262, %v3264
        %v3266 = vrot.slane %v3252, %v3265
        %v3267 = vcombine.low %v3202, %v3218
        %v3268 = vcombine.high %v3202, %v3218
        %v3270 = vunpack.c.l.s4 1934713408
        %v3271 = vunpack.c.0.s8 %v3270
        %v3272 = vlaneseq
        %v3273 = vshrl.u32 %v3272, 7
        %v3274 = vsub.s32 %v3271, %v3273
        %v3275 = vrot.slane %v3267, %v3274
        %v3277 = vunpack.c.l.s4 1934713408
        %v3278 = vunpack.c.0.s8 %v3277
        %v3279 = vlaneseq
        %v3280 = vshrl.u32 %v3279, 7
        %v3281 = vsub.s32 %v3278, %v3280
        %v3282 = vrot.slane %v3268, %v3281
        %v3283 = vcombine.low %v3227, %v3243
        %v3284 = vcombine.high %v3227, %v3243
        %v3286 = vunpack.c.l.s4 1934713408
        %v3287 = vunpack.c.0.s8 %v3286
        %v3288 = vlaneseq
        %v3289 = vshrl.u32 %v3288, 7
        %v3290 = vsub.s32 %v3287, %v3289
        %v3291 = vrot.slane %v3283, %v3290
        %v3293 = vunpack.c.l.s4 1934713408
        %v3294 = vunpack.c.0.s8 %v3293
        %v3295 = vlaneseq
        %v3296 = vshrl.u32 %v3295, 7
        %v3297 = vsub.s32 %v3294, %v3296
        %v3298 = vrot.slane %v3284, %v3297
        %v3299 = vcombine.low %v3234, %v3250
        %v3300 = vcombine.high %v3234, %v3250
        %v3302 = vunpack.c.l.s4 1934713408
        %v3303 = vunpack.c.0.s8 %v3302
        %v3304 = vlaneseq
        %v3305 = vshrl.u32 %v3304, 7
        %v3306 = vsub.s32 %v3303, %v3305
        %v3307 = vrot.slane %v3299, %v3306
        %v3309 = vunpack.c.l.s4 1934713408
        %v3310 = vunpack.c.0.s8 %v3309
        %v3311 = vlaneseq
        %v3312 = vshrl.u32 %v3311, 7
        %v3313 = vsub.s32 %v3310, %v3312
        %v3314 = vrot.slane %v3300, %v3313
        %v3315 = vcombine.low %v3259, %v3291
        %v3316 = vcombine.high %v3259, %v3291
        %v3317 = vcombine.low %v3266, %v3298
        %v3318 = vcombine.high %v3266, %v3298
        %v3319 = vcombine.low %v3275, %v3307
        %v3320 = vcombine.high %v3275, %v3307
        %v3321 = vcombine.low %v3282, %v3314
        %v3322 = vcombine.high %v3282, %v3314
        %v3323 = vcombine.low %v3035, %v3037
        %v3324 = vcombine.high %v3035, %v3037
        %v3326 = vunpack.c.l.s4 1983009808
        %v3327 = vunpack.c.0.s8 %v3326
        %v3328 = vlaneseq
        %v3329 = vshrl.u32 %v3328, 7
        %v3330 = vsub.s32 %v3327, %v3329
        %v3331 = vrot.slane %v3323, %v3330
        %v3333 = vunpack.c.l.s4 1983009808
        %v3334 = vunpack.c.0.s8 %v3333
        %v3335 = vlaneseq
        %v3336 = vshrl.u32 %v3335, 7
        %v3337 = vsub.s32 %v3334, %v3336
        %v3338 = vrot.slane %v3324, %v3337
        %v3339 = vcombine.low %v3036, %v3038
        %v3340 = vcombine.high %v3036, %v3038
        %v3342 = vunpack.c.l.s4 1983009808
        %v3343 = vunpack.c.0.s8 %v3342
        %v3344 = vlaneseq
        %v3345 = vshrl.u32 %v3344, 7
        %v3346 = vsub.s32 %v3343, %v3345
        %v3347 = vrot.slane %v3339, %v3346
        %v3349 = vunpack.c.l.s4 1983009808
        %v3350 = vunpack.c.0.s8 %v3349
        %v3351 = vlaneseq
        %v3352 = vshrl.u32 %v3351, 7
        %v3353 = vsub.s32 %v3350, %v3352
        %v3354 = vrot.slane %v3340, %v3353
        %v3355 = vcombine.low %v3039, %v3041
        %v3356 = vcombine.high %v3039, %v3041
        %v3358 = vunpack.c.l.s4 1983009808
        %v3359 = vunpack.c.0.s8 %v3358
        %v3360 = vlaneseq
        %v3361 = vshrl.u32 %v3360, 7
        %v3362 = vsub.s32 %v3359, %v3361
        %v3363 = vrot.slane %v3355, %v3362
        %v3365 = vunpack.c.l.s4 1983009808
        %v3366 = vunpack.c.0.s8 %v3365
        %v3367 = vlaneseq
        %v3368 = vshrl.u32 %v3367, 7
        %v3369 = vsub.s32 %v3366, %v3368
        %v3370 = vrot.slane %v3356, %v3369
        %v3371 = vcombine.low %v3040, %v3042
        %v3372 = vcombine.high %v3040, %v3042
        %v3374 = vunpack.c.l.s4 1983009808
        %v3375 = vunpack.c.0.s8 %v3374
        %v3376 = vlaneseq
        %v3377 = vshrl.u32 %v3376, 7
        %v3378 = vsub.s32 %v3375, %v3377
        %v3379 = vrot.slane %v3371, %v3378
        %v3381 = vunpack.c.l.s4 1983009808
        %v3382 = vunpack.c.0.s8 %v3381
        %v3383 = vlaneseq
        %v3384 = vshrl.u32 %v3383, 7
        %v3385 = vsub.s32 %v3382, %v3384
        %v3386 = vrot.slane %v3372, %v3385
        %v3387 = vcombine.low %v3331, %v3347
        %v3388 = vcombine.high %v3331, %v3347
        %v3390 = vunpack.c.l.s4 1934713408
        %v3391 = vunpack.c.0.s8 %v3390
        %v3392 = vlaneseq
        %v3393 = vshrl.u32 %v3392, 7
        %v3394 = vsub.s32 %v3391, %v3393
        %v3395 = vrot.slane %v3387, %v3394
        %v3397 = vunpack.c.l.s4 1934713408
        %v3398 = vunpack.c.0.s8 %v3397
        %v3399 = vlaneseq
        %v3400 = vshrl.u32 %v3399, 7
        %v3401 = vsub.s32 %v3398, %v3400
        %v3402 = vrot.slane %v3388, %v3401
        %v3403 = vcombine.low %v3338, %v3354
        %v3404 = vcombine.high %v3338, %v3354
        %v3406 = vunpack.c.l.s4 1934713408
        %v3407 = vunpack.c.0.s8 %v3406
        %v3408 = vlaneseq
        %v3409 = vshrl.u32 %v3408, 7
        %v3410 = vsub.s32 %v3407, %v3409
        %v3411 = vrot.slane %v3403, %v3410
        %v3413 = vunpack.c.l.s4 1934713408
        %v3414 = vunpack.c.0.s8 %v3413
        %v3415 = vlaneseq
        %v3416 = vshrl.u32 %v3415, 7
        %v3417 = vsub.s32 %v3414, %v3416
        %v3418 = vrot.slane %v3404, %v3417
        %v3419 = vcombine.low %v3363, %v3379
        %v3420 = vcombine.high %v3363, %v3379
        %v3422 = vunpack.c.l.s4 1934713408
        %v3423 = vunpack.c.0.s8 %v3422
        %v3424 = vlaneseq
        %v3425 = vshrl.u32 %v3424, 7
        %v3426 = vsub.s32 %v3423, %v3425
        %v3427 = vrot.slane %v3419, %v3426
        %v3429 = vunpack.c.l.s4 1934713408
        %v3430 = vunpack.c.0.s8 %v3429
        %v3431 = vlaneseq
        %v3432 = vshrl.u32 %v3431, 7
        %v3433 = vsub.s32 %v3430, %v3432
        %v3434 = vrot.slane %v3420, %v3433
        %v3435 = vcombine.low %v3370, %v3386
        %v3436 = vcombine.high %v3370, %v3386
        %v3438 = vunpack.c.l.s4 1934713408
        %v3439 = vunpack.c.0.s8 %v3438
        %v3440 = vlaneseq
        %v3441 = vshrl.u32 %v3440, 7
        %v3442 = vsub.s32 %v3439, %v3441
        %v3443 = vrot.slane %v3435, %v3442
        %v3445 = vunpack.c.l.s4 1934713408
        %v3446 = vunpack.c.0.s8 %v3445
        %v3447 = vlaneseq
        %v3448 = vshrl.u32 %v3447, 7
        %v3449 = vsub.s32 %v3446, %v3448
        %v3450 = vrot.slane %v3436, %v3449
        %v3451 = vcombine.low %v3395, %v3427
        %v3452 = vcombine.high %v3395, %v3427
        %v3453 = vcombine.low %v3402, %v3434
        %v3454 = vcombine.high %v3402, %v3434
        %v3455 = vcombine.low %v3411, %v3443
        %v3456 = vcombine.high %v3411, %v3443
        %v3457 = vcombine.low %v3418, %v3450
        %v3458 = vcombine.high %v3418, %v3450
        %v3459 = vcombine.low %v3043, %v3045
        %v3460 = vcombine.high %v3043, %v3045
        %v3462 = vunpack.c.l.s4 1983009808
        %v3463 = vunpack.c.0.s8 %v3462
        %v3464 = vlaneseq
        %v3465 = vshrl.u32 %v3464, 7
        %v3466 = vsub.s32 %v3463, %v3465
        %v3467 = vrot.slane %v3459, %v3466
        %v3469 = vunpack.c.l.s4 1983009808
        %v3470 = vunpack.c.0.s8 %v3469
        %v3471 = vlaneseq
        %v3472 = vshrl.u32 %v3471, 7
        %v3473 = vsub.s32 %v3470, %v3472
        %v3474 = vrot.slane %v3460, %v3473
        %v3475 = vcombine.low %v3044, %v3046
        %v3476 = vcombine.high %v3044, %v3046
        %v3478 = vunpack.c.l.s4 1983009808
        %v3479 = vunpack.c.0.s8 %v3478
        %v3480 = vlaneseq
        %v3481 = vshrl.u32 %v3480, 7
        %v3482 = vsub.s32 %v3479, %v3481
        %v3483 = vrot.slane %v3475, %v3482
        %v3485 = vunpack.c.l.s4 1983009808
        %v3486 = vunpack.c.0.s8 %v3485
        %v3487 = vlaneseq
        %v3488 = vshrl.u32 %v3487, 7
        %v3489 = vsub.s32 %v3486, %v3488
        %v3490 = vrot.slane %v3476, %v3489
        %v3491 = vcombine.low %v3047, %v3049
        %v3492 = vcombine.high %v3047, %v3049
        %v3494 = vunpack.c.l.s4 1983009808
        %v3495 = vunpack.c.0.s8 %v3494
        %v3496 = vlaneseq
        %v3497 = vshrl.u32 %v3496, 7
        %v3498 = vsub.s32 %v3495, %v3497
        %v3499 = vrot.slane %v3491, %v3498
        %v3501 = vunpack.c.l.s4 1983009808
        %v3502 = vunpack.c.0.s8 %v3501
        %v3503 = vlaneseq
        %v3504 = vshrl.u32 %v3503, 7
        %v3505 = vsub.s32 %v3502, %v3504
        %v3506 = vrot.slane %v3492, %v3505
        %v3507 = vcombine.low %v3048, %v3050
        %v3508 = vcombine.high %v3048, %v3050
        %v3510 = vunpack.c.l.s4 1983009808
        %v3511 = vunpack.c.0.s8 %v3510
        %v3512 = vlaneseq
        %v3513 = vshrl.u32 %v3512, 7
        %v3514 = vsub.s32 %v3511, %v3513
        %v3515 = vrot.slane %v3507, %v3514
        %v3517 = vunpack.c.l.s4 1983009808
        %v3518 = vunpack.c.0.s8 %v3517
        %v3519 = vlaneseq
        %v3520 = vshrl.u32 %v3519, 7
        %v3521 = vsub.s32 %v3518, %v3520
        %v3522 = vrot.slane %v3508, %v3521
        %v3523 = vcombine.low %v3467, %v3483
        %v3524 = vcombine.high %v3467, %v3483
        %v3526 = vunpack.c.l.s4 1934713408
        %v3527 = vunpack.c.0.s8 %v3526
        %v3528 = vlaneseq
        %v3529 = vshrl.u32 %v3528, 7
        %v3530 = vsub.s32 %v3527, %v3529
        %v3531 = vrot.slane %v3523, %v3530
        %v3533 = vunpack.c.l.s4 1934713408
        %v3534 = vunpack.c.0.s8 %v3533
        %v3535 = vlaneseq
        %v3536 = vshrl.u32 %v3535, 7
        %v3537 = vsub.s32 %v3534, %v3536
        %v3538 = vrot.slane %v3524, %v3537
        %v3539 = vcombine.low %v3474, %v3490
        %v3540 = vcombine.high %v3474, %v3490
        %v3542 = vunpack.c.l.s4 1934713408
        %v3543 = vunpack.c.0.s8 %v3542
        %v3544 = vlaneseq
        %v3545 = vshrl.u32 %v3544, 7
        %v3546 = vsub.s32 %v3543, %v3545
        %v3547 = vrot.slane %v3539, %v3546
        %v3549 = vunpack.c.l.s4 1934713408
        %v3550 = vunpack.c.0.s8 %v3549
        %v3551 = vlaneseq
        %v3552 = vshrl.u32 %v3551, 7
        %v3553 = vsub.s32 %v3550, %v3552
        %v3554 = vrot.slane %v3540, %v3553
        %v3555 = vcombine.low %v3499, %v3515
        %v3556 = vcombine.high %v3499, %v3515
        %v3558 = vunpack.c.l.s4 1934713408
        %v3559 = vunpack.c.0.s8 %v3558
        %v3560 = vlaneseq
        %v3561 = vshrl.u32 %v3560, 7
        %v3562 = vsub.s32 %v3559, %v3561
        %v3563 = vrot.slane %v3555, %v3562
        %v3565 = vunpack.c.l.s4 1934713408
        %v3566 = vunpack.c.0.s8 %v3565
        %v3567 = vlaneseq
        %v3568 = vshrl.u32 %v3567, 7
        %v3569 = vsub.s32 %v3566, %v3568
        %v3570 = vrot.slane %v3556, %v3569
        %v3571 = vcombine.low %v3506, %v3522
        %v3572 = vcombine.high %v3506, %v3522
        %v3574 = vunpack.c.l.s4 1934713408
        %v3575 = vunpack.c.0.s8 %v3574
        %v3576 = vlaneseq
        %v3577 = vshrl.u32 %v3576, 7
        %v3578 = vsub.s32 %v3575, %v3577
        %v3579 = vrot.slane %v3571, %v3578
        %v3581 = vunpack.c.l.s4 1934713408
        %v3582 = vunpack.c.0.s8 %v3581
        %v3583 = vlaneseq
        %v3584 = vshrl.u32 %v3583, 7
        %v3585 = vsub.s32 %v3582, %v3584
        %v3586 = vrot.slane %v3572, %v3585
        %v3587 = vcombine.low %v3531, %v3563
        %v3588 = vcombine.high %v3531, %v3563
        %v3589 = vcombine.low %v3538, %v3570
        %v3590 = vcombine.high %v3538, %v3570
        %v3591 = vcombine.low %v3547, %v3579
        %v3592 = vcombine.high %v3547, %v3579
        %v3593 = vcombine.low %v3554, %v3586
        %v3594 = vcombine.high %v3554, %v3586
        %3599 = vrot.lane.b32.xlu0 %v3180, 16
        %v3600 = vpop.permute.xlu0 %3599
        %3601 = vrot.lane.b32.xlu0 %v3316, 16
        %v3602 = vpop.permute.xlu0 %3601
        %3603 = vrot.lane.b32.xlu0 %v3452, 16
        %v3604 = vpop.permute.xlu0 %3603
        %3605 = vrot.lane.b32.xlu0 %v3588, 16
        %v3606 = vpop.permute.xlu0 %3605
        %3615 = vrot.lane.b32.xlu0 %v3181, 32
        %v3616 = vpop.permute.xlu0 %3615
        %3617 = vrot.lane.b32.xlu0 %v3317, 32
        %v3618 = vpop.permute.xlu0 %3617
        %3619 = vrot.lane.b32.xlu0 %v3453, 32
        %v3620 = vpop.permute.xlu0 %3619
        %3621 = vrot.lane.b32.xlu0 %v3589, 32
        %v3622 = vpop.permute.xlu0 %3621
        %3631 = vrot.lane.b32.xlu0 %v3182, 48
        %v3632 = vpop.permute.xlu0 %3631
        %3633 = vrot.lane.b32.xlu0 %v3318, 48
        %v3634 = vpop.permute.xlu0 %3633
        %3635 = vrot.lane.b32.xlu0 %v3454, 48
        %v3636 = vpop.permute.xlu0 %3635
        %3637 = vrot.lane.b32.xlu0 %v3590, 48
        %v3638 = vpop.permute.xlu0 %3637
        %3647 = vrot.lane.b32.xlu0 %v3183, 64
        %v3648 = vpop.permute.xlu0 %3647
        %3649 = vrot.lane.b32.xlu0 %v3319, 64
        %v3650 = vpop.permute.xlu0 %3649
        %3651 = vrot.lane.b32.xlu0 %v3455, 64
        %v3652 = vpop.permute.xlu0 %3651
        %3653 = vrot.lane.b32.xlu0 %v3591, 64
        %v3654 = vpop.permute.xlu0 %3653
        %3663 = vrot.lane.b32.xlu0 %v3184, 80
        %v3664 = vpop.permute.xlu0 %3663
        %3665 = vrot.lane.b32.xlu0 %v3320, 80
        %v3666 = vpop.permute.xlu0 %3665
        %3667 = vrot.lane.b32.xlu0 %v3456, 80
        %v3668 = vpop.permute.xlu0 %3667
        %3669 = vrot.lane.b32.xlu0 %v3592, 80
        %v3670 = vpop.permute.xlu0 %3669
        %3679 = vrot.lane.b32.xlu0 %v3185, 96
        %v3680 = vpop.permute.xlu0 %3679
        %3681 = vrot.lane.b32.xlu0 %v3321, 96
        %v3682 = vpop.permute.xlu0 %3681
        %3683 = vrot.lane.b32.xlu0 %v3457, 96
        %v3684 = vpop.permute.xlu0 %3683
        %3685 = vrot.lane.b32.xlu0 %v3593, 96
        %v3686 = vpop.permute.xlu0 %3685
        %3695 = vrot.lane.b32.xlu0 %v3186, 112
        %v3696 = vpop.permute.xlu0 %3695
        %3697 = vrot.lane.b32.xlu0 %v3322, 112
        %v3698 = vpop.permute.xlu0 %3697
        %3699 = vrot.lane.b32.xlu0 %v3458, 112
        %v3700 = vpop.permute.xlu0 %3699
        %3701 = vrot.lane.b32.xlu0 %v3594, 112
        %v3702 = vpop.permute.xlu0 %3701
        %v3707 = vsel %vm1390, %v3179, %v3600
        %v3708 = vsel %vm1390, %v3315, %v3602
        %v3709 = vsel %vm1390, %v3451, %v3604
        %v3710 = vsel %vm1390, %v3587, %v3606
        %v3711 = vsel %vm1395, %v3707, %v3616
        %v3712 = vsel %vm1395, %v3708, %v3618
        %v3713 = vsel %vm1395, %v3709, %v3620
        %v3714 = vsel %vm1395, %v3710, %v3622
        %v3715 = vsel %vm1400, %v3711, %v3632
        %v3716 = vsel %vm1400, %v3712, %v3634
        %v3717 = vsel %vm1400, %v3713, %v3636
        %v3718 = vsel %vm1400, %v3714, %v3638
        %v3719 = vsel %vm1405, %v3715, %v3648
        %v3720 = vsel %vm1405, %v3716, %v3650
        %v3721 = vsel %vm1405, %v3717, %v3652
        %v3722 = vsel %vm1405, %v3718, %v3654
        %v3723 = vsel %vm1410, %v3719, %v3664
        %v3724 = vsel %vm1410, %v3720, %v3666
        %v3725 = vsel %vm1410, %v3721, %v3668
        %v3726 = vsel %vm1410, %v3722, %v3670
        %v3727 = vsel %vm1415, %v3723, %v3680
        %v3728 = vsel %vm1415, %v3724, %v3682
        %v3729 = vsel %vm1415, %v3725, %v3684
        %v3730 = vsel %vm1415, %v3726, %v3686
        %v3731 = vsel %vm1420, %v3727, %v3696
        %v3732 = vsel %vm1420, %v3728, %v3698
        %v3733 = vsel %vm1420, %v3729, %v3700
        %v3734 = vsel %vm1420, %v3730, %v3702
        %3767 = vrot.lane.b32.xlu0 %v3019, 127
        %v3768 = vpop.permute.xlu0 %3767
        %3769 = vrot.lane.b32.xlu0 %v3020, 127
        %v3770 = vpop.permute.xlu0 %3769
        %3771 = vrot.lane.b32.xlu0 %v3021, 127
        %v3772 = vpop.permute.xlu0 %3771
        %3773 = vrot.lane.b32.xlu0 %v3022, 127
        %v3774 = vpop.permute.xlu0 %3773
        %3775 = vrot.lane.b32.xlu0 %v3023, 127
        %v3776 = vpop.permute.xlu0 %3775
        %3777 = vrot.lane.b32.xlu0 %v3024, 127
        %v3778 = vpop.permute.xlu0 %3777
        %3779 = vrot.lane.b32.xlu0 %v3025, 127
        %v3780 = vpop.permute.xlu0 %3779
        %3781 = vrot.lane.b32.xlu0 %v3026, 127
        %v3782 = vpop.permute.xlu0 %3781
        %3783 = vrot.lane.b32.xlu0 %v3027, 127
        %v3784 = vpop.permute.xlu0 %3783
        %3785 = vrot.lane.b32.xlu0 %v3028, 127
        %v3786 = vpop.permute.xlu0 %3785
        %3787 = vrot.lane.b32.xlu0 %v3029, 127
        %v3788 = vpop.permute.xlu0 %3787
        %3789 = vrot.lane.b32.xlu0 %v3030, 127
        %v3790 = vpop.permute.xlu0 %3789
        %3791 = vrot.lane.b32.xlu0 %v3031, 127
        %v3792 = vpop.permute.xlu0 %3791
        %3793 = vrot.lane.b32.xlu0 %v3032, 127
        %v3794 = vpop.permute.xlu0 %3793
        %3795 = vrot.lane.b32.xlu0 %v3033, 127
        %v3796 = vpop.permute.xlu0 %3795
        %3797 = vrot.lane.b32.xlu0 %v3034, 127
        %v3798 = vpop.permute.xlu0 %3797
        %3799 = vrot.lane.b32.xlu0 %v3035, 127
        %v3800 = vpop.permute.xlu0 %3799
        %3801 = vrot.lane.b32.xlu0 %v3036, 127
        %v3802 = vpop.permute.xlu0 %3801
        %3803 = vrot.lane.b32.xlu0 %v3037, 127
        %v3804 = vpop.permute.xlu0 %3803
        %3805 = vrot.lane.b32.xlu0 %v3038, 127
        %v3806 = vpop.permute.xlu0 %3805
        %3807 = vrot.lane.b32.xlu0 %v3039, 127
        %v3808 = vpop.permute.xlu0 %3807
        %3809 = vrot.lane.b32.xlu0 %v3040, 127
        %v3810 = vpop.permute.xlu0 %3809
        %3811 = vrot.lane.b32.xlu0 %v3041, 127
        %v3812 = vpop.permute.xlu0 %3811
        %3813 = vrot.lane.b32.xlu0 %v3042, 127
        %v3814 = vpop.permute.xlu0 %3813
        %3815 = vrot.lane.b32.xlu0 %v3043, 127
        %v3816 = vpop.permute.xlu0 %3815
        %3817 = vrot.lane.b32.xlu0 %v3044, 127
        %v3818 = vpop.permute.xlu0 %3817
        %3819 = vrot.lane.b32.xlu0 %v3045, 127
        %v3820 = vpop.permute.xlu0 %3819
        %3821 = vrot.lane.b32.xlu0 %v3046, 127
        %v3822 = vpop.permute.xlu0 %3821
        %3823 = vrot.lane.b32.xlu0 %v3047, 127
        %v3824 = vpop.permute.xlu0 %3823
        %3825 = vrot.lane.b32.xlu0 %v3048, 127
        %v3826 = vpop.permute.xlu0 %3825
        %3827 = vrot.lane.b32.xlu0 %v3049, 127
        %v3828 = vpop.permute.xlu0 %3827
        %3829 = vrot.lane.b32.xlu0 %v3050, 127
        %v3830 = vpop.permute.xlu0 %3829
        %v3863 = vcombine.low %v3768, %v3772
        %v3864 = vcombine.high %v3768, %v3772
        %v3866 = vunpack.c.l.s4 1983009808
        %v3867 = vunpack.c.0.s8 %v3866
        %v3868 = vlaneseq
        %v3869 = vshrl.u32 %v3868, 7
        %v3870 = vsub.s32 %v3867, %v3869
        %v3871 = vrot.slane %v3863, %v3870
        %v3873 = vunpack.c.l.s4 1983009808
        %v3874 = vunpack.c.0.s8 %v3873
        %v3875 = vlaneseq
        %v3876 = vshrl.u32 %v3875, 7
        %v3877 = vsub.s32 %v3874, %v3876
        %v3878 = vrot.slane %v3864, %v3877
        %v3879 = vcombine.low %v3770, %v3774
        %v3880 = vcombine.high %v3770, %v3774
        %v3882 = vunpack.c.l.s4 1983009808
        %v3883 = vunpack.c.0.s8 %v3882
        %v3884 = vlaneseq
        %v3885 = vshrl.u32 %v3884, 7
        %v3886 = vsub.s32 %v3883, %v3885
        %v3887 = vrot.slane %v3879, %v3886
        %v3889 = vunpack.c.l.s4 1983009808
        %v3890 = vunpack.c.0.s8 %v3889
        %v3891 = vlaneseq
        %v3892 = vshrl.u32 %v3891, 7
        %v3893 = vsub.s32 %v3890, %v3892
        %v3894 = vrot.slane %v3880, %v3893
        %v3895 = vcombine.low %v3776, %v3780
        %v3896 = vcombine.high %v3776, %v3780
        %v3898 = vunpack.c.l.s4 1983009808
        %v3899 = vunpack.c.0.s8 %v3898
        %v3900 = vlaneseq
        %v3901 = vshrl.u32 %v3900, 7
        %v3902 = vsub.s32 %v3899, %v3901
        %v3903 = vrot.slane %v3895, %v3902
        %v3905 = vunpack.c.l.s4 1983009808
        %v3906 = vunpack.c.0.s8 %v3905
        %v3907 = vlaneseq
        %v3908 = vshrl.u32 %v3907, 7
        %v3909 = vsub.s32 %v3906, %v3908
        %v3910 = vrot.slane %v3896, %v3909
        %v3911 = vcombine.low %v3778, %v3782
        %v3912 = vcombine.high %v3778, %v3782
        %v3914 = vunpack.c.l.s4 1983009808
        %v3915 = vunpack.c.0.s8 %v3914
        %v3916 = vlaneseq
        %v3917 = vshrl.u32 %v3916, 7
        %v3918 = vsub.s32 %v3915, %v3917
        %v3919 = vrot.slane %v3911, %v3918
        %v3921 = vunpack.c.l.s4 1983009808
        %v3922 = vunpack.c.0.s8 %v3921
        %v3923 = vlaneseq
        %v3924 = vshrl.u32 %v3923, 7
        %v3925 = vsub.s32 %v3922, %v3924
        %v3926 = vrot.slane %v3912, %v3925
        %v3927 = vcombine.low %v3871, %v3887
        %v3928 = vcombine.high %v3871, %v3887
        %v3930 = vunpack.c.l.s4 1934713408
        %v3931 = vunpack.c.0.s8 %v3930
        %v3932 = vlaneseq
        %v3933 = vshrl.u32 %v3932, 7
        %v3934 = vsub.s32 %v3931, %v3933
        %v3935 = vrot.slane %v3927, %v3934
        %v3937 = vunpack.c.l.s4 1934713408
        %v3938 = vunpack.c.0.s8 %v3937
        %v3939 = vlaneseq
        %v3940 = vshrl.u32 %v3939, 7
        %v3941 = vsub.s32 %v3938, %v3940
        %v3942 = vrot.slane %v3928, %v3941
        %v3943 = vcombine.low %v3878, %v3894
        %v3944 = vcombine.high %v3878, %v3894
        %v3946 = vunpack.c.l.s4 1934713408
        %v3947 = vunpack.c.0.s8 %v3946
        %v3948 = vlaneseq
        %v3949 = vshrl.u32 %v3948, 7
        %v3950 = vsub.s32 %v3947, %v3949
        %v3951 = vrot.slane %v3943, %v3950
        %v3953 = vunpack.c.l.s4 1934713408
        %v3954 = vunpack.c.0.s8 %v3953
        %v3955 = vlaneseq
        %v3956 = vshrl.u32 %v3955, 7
        %v3957 = vsub.s32 %v3954, %v3956
        %v3958 = vrot.slane %v3944, %v3957
        %v3959 = vcombine.low %v3903, %v3919
        %v3960 = vcombine.high %v3903, %v3919
        %v3962 = vunpack.c.l.s4 1934713408
        %v3963 = vunpack.c.0.s8 %v3962
        %v3964 = vlaneseq
        %v3965 = vshrl.u32 %v3964, 7
        %v3966 = vsub.s32 %v3963, %v3965
        %v3967 = vrot.slane %v3959, %v3966
        %v3969 = vunpack.c.l.s4 1934713408
        %v3970 = vunpack.c.0.s8 %v3969
        %v3971 = vlaneseq
        %v3972 = vshrl.u32 %v3971, 7
        %v3973 = vsub.s32 %v3970, %v3972
        %v3974 = vrot.slane %v3960, %v3973
        %v3975 = vcombine.low %v3910, %v3926
        %v3976 = vcombine.high %v3910, %v3926
        %v3978 = vunpack.c.l.s4 1934713408
        %v3979 = vunpack.c.0.s8 %v3978
        %v3980 = vlaneseq
        %v3981 = vshrl.u32 %v3980, 7
        %v3982 = vsub.s32 %v3979, %v3981
        %v3983 = vrot.slane %v3975, %v3982
        %v3985 = vunpack.c.l.s4 1934713408
        %v3986 = vunpack.c.0.s8 %v3985
        %v3987 = vlaneseq
        %v3988 = vshrl.u32 %v3987, 7
        %v3989 = vsub.s32 %v3986, %v3988
        %v3990 = vrot.slane %v3976, %v3989
        %v3991 = vcombine.low %v3935, %v3967
        %v3992 = vcombine.high %v3935, %v3967
        %v3993 = vcombine.low %v3942, %v3974
        %v3994 = vcombine.high %v3942, %v3974
        %v3995 = vcombine.low %v3951, %v3983
        %v3996 = vcombine.high %v3951, %v3983
        %v3997 = vcombine.low %v3958, %v3990
        %v3998 = vcombine.high %v3958, %v3990
        %v3999 = vcombine.low %v3784, %v3788
        %v4000 = vcombine.high %v3784, %v3788
        %v4002 = vunpack.c.l.s4 1983009808
        %v4003 = vunpack.c.0.s8 %v4002
        %v4004 = vlaneseq
        %v4005 = vshrl.u32 %v4004, 7
        %v4006 = vsub.s32 %v4003, %v4005
        %v4007 = vrot.slane %v3999, %v4006
        %v4009 = vunpack.c.l.s4 1983009808
        %v4010 = vunpack.c.0.s8 %v4009
        %v4011 = vlaneseq
        %v4012 = vshrl.u32 %v4011, 7
        %v4013 = vsub.s32 %v4010, %v4012
        %v4014 = vrot.slane %v4000, %v4013
        %v4015 = vcombine.low %v3786, %v3790
        %v4016 = vcombine.high %v3786, %v3790
        %v4018 = vunpack.c.l.s4 1983009808
        %v4019 = vunpack.c.0.s8 %v4018
        %v4020 = vlaneseq
        %v4021 = vshrl.u32 %v4020, 7
        %v4022 = vsub.s32 %v4019, %v4021
        %v4023 = vrot.slane %v4015, %v4022
        %v4025 = vunpack.c.l.s4 1983009808
        %v4026 = vunpack.c.0.s8 %v4025
        %v4027 = vlaneseq
        %v4028 = vshrl.u32 %v4027, 7
        %v4029 = vsub.s32 %v4026, %v4028
        %v4030 = vrot.slane %v4016, %v4029
        %v4031 = vcombine.low %v3792, %v3796
        %v4032 = vcombine.high %v3792, %v3796
        %v4034 = vunpack.c.l.s4 1983009808
        %v4035 = vunpack.c.0.s8 %v4034
        %v4036 = vlaneseq
        %v4037 = vshrl.u32 %v4036, 7
        %v4038 = vsub.s32 %v4035, %v4037
        %v4039 = vrot.slane %v4031, %v4038
        %v4041 = vunpack.c.l.s4 1983009808
        %v4042 = vunpack.c.0.s8 %v4041
        %v4043 = vlaneseq
        %v4044 = vshrl.u32 %v4043, 7
        %v4045 = vsub.s32 %v4042, %v4044
        %v4046 = vrot.slane %v4032, %v4045
        %v4047 = vcombine.low %v3794, %v3798
        %v4048 = vcombine.high %v3794, %v3798
        %v4050 = vunpack.c.l.s4 1983009808
        %v4051 = vunpack.c.0.s8 %v4050
        %v4052 = vlaneseq
        %v4053 = vshrl.u32 %v4052, 7
        %v4054 = vsub.s32 %v4051, %v4053
        %v4055 = vrot.slane %v4047, %v4054
        %v4057 = vunpack.c.l.s4 1983009808
        %v4058 = vunpack.c.0.s8 %v4057
        %v4059 = vlaneseq
        %v4060 = vshrl.u32 %v4059, 7
        %v4061 = vsub.s32 %v4058, %v4060
        %v4062 = vrot.slane %v4048, %v4061
        %v4063 = vcombine.low %v4007, %v4023
        %v4064 = vcombine.high %v4007, %v4023
        %v4066 = vunpack.c.l.s4 1934713408
        %v4067 = vunpack.c.0.s8 %v4066
        %v4068 = vlaneseq
        %v4069 = vshrl.u32 %v4068, 7
        %v4070 = vsub.s32 %v4067, %v4069
        %v4071 = vrot.slane %v4063, %v4070
        %v4073 = vunpack.c.l.s4 1934713408
        %v4074 = vunpack.c.0.s8 %v4073
        %v4075 = vlaneseq
        %v4076 = vshrl.u32 %v4075, 7
        %v4077 = vsub.s32 %v4074, %v4076
        %v4078 = vrot.slane %v4064, %v4077
        %v4079 = vcombine.low %v4014, %v4030
        %v4080 = vcombine.high %v4014, %v4030
        %v4082 = vunpack.c.l.s4 1934713408
        %v4083 = vunpack.c.0.s8 %v4082
        %v4084 = vlaneseq
        %v4085 = vshrl.u32 %v4084, 7
        %v4086 = vsub.s32 %v4083, %v4085
        %v4087 = vrot.slane %v4079, %v4086
        %v4089 = vunpack.c.l.s4 1934713408
        %v4090 = vunpack.c.0.s8 %v4089
        %v4091 = vlaneseq
        %v4092 = vshrl.u32 %v4091, 7
        %v4093 = vsub.s32 %v4090, %v4092
        %v4094 = vrot.slane %v4080, %v4093
        %v4095 = vcombine.low %v4039, %v4055
        %v4096 = vcombine.high %v4039, %v4055
        %v4098 = vunpack.c.l.s4 1934713408
        %v4099 = vunpack.c.0.s8 %v4098
        %v4100 = vlaneseq
        %v4101 = vshrl.u32 %v4100, 7
        %v4102 = vsub.s32 %v4099, %v4101
        %v4103 = vrot.slane %v4095, %v4102
        %v4105 = vunpack.c.l.s4 1934713408
        %v4106 = vunpack.c.0.s8 %v4105
        %v4107 = vlaneseq
        %v4108 = vshrl.u32 %v4107, 7
        %v4109 = vsub.s32 %v4106, %v4108
        %v4110 = vrot.slane %v4096, %v4109
        %v4111 = vcombine.low %v4046, %v4062
        %v4112 = vcombine.high %v4046, %v4062
        %v4114 = vunpack.c.l.s4 1934713408
        %v4115 = vunpack.c.0.s8 %v4114
        %v4116 = vlaneseq
        %v4117 = vshrl.u32 %v4116, 7
        %v4118 = vsub.s32 %v4115, %v4117
        %v4119 = vrot.slane %v4111, %v4118
        %v4121 = vunpack.c.l.s4 1934713408
        %v4122 = vunpack.c.0.s8 %v4121
        %v4123 = vlaneseq
        %v4124 = vshrl.u32 %v4123, 7
        %v4125 = vsub.s32 %v4122, %v4124
        %v4126 = vrot.slane %v4112, %v4125
        %v4127 = vcombine.low %v4071, %v4103
        %v4128 = vcombine.high %v4071, %v4103
        %v4129 = vcombine.low %v4078, %v4110
        %v4130 = vcombine.high %v4078, %v4110
        %v4131 = vcombine.low %v4087, %v4119
        %v4132 = vcombine.high %v4087, %v4119
        %v4133 = vcombine.low %v4094, %v4126
        %v4134 = vcombine.high %v4094, %v4126
        %v4135 = vcombine.low %v3800, %v3804
        %v4136 = vcombine.high %v3800, %v3804
        %v4138 = vunpack.c.l.s4 1983009808
        %v4139 = vunpack.c.0.s8 %v4138
        %v4140 = vlaneseq
        %v4141 = vshrl.u32 %v4140, 7
        %v4142 = vsub.s32 %v4139, %v4141
        %v4143 = vrot.slane %v4135, %v4142
        %v4145 = vunpack.c.l.s4 1983009808
        %v4146 = vunpack.c.0.s8 %v4145
        %v4147 = vlaneseq
        %v4148 = vshrl.u32 %v4147, 7
        %v4149 = vsub.s32 %v4146, %v4148
        %v4150 = vrot.slane %v4136, %v4149
        %v4151 = vcombine.low %v3802, %v3806
        %v4152 = vcombine.high %v3802, %v3806
        %v4154 = vunpack.c.l.s4 1983009808
        %v4155 = vunpack.c.0.s8 %v4154
        %v4156 = vlaneseq
        %v4157 = vshrl.u32 %v4156, 7
        %v4158 = vsub.s32 %v4155, %v4157
        %v4159 = vrot.slane %v4151, %v4158
        %v4161 = vunpack.c.l.s4 1983009808
        %v4162 = vunpack.c.0.s8 %v4161
        %v4163 = vlaneseq
        %v4164 = vshrl.u32 %v4163, 7
        %v4165 = vsub.s32 %v4162, %v4164
        %v4166 = vrot.slane %v4152, %v4165
        %v4167 = vcombine.low %v3808, %v3812
        %v4168 = vcombine.high %v3808, %v3812
        %v4170 = vunpack.c.l.s4 1983009808
        %v4171 = vunpack.c.0.s8 %v4170
        %v4172 = vlaneseq
        %v4173 = vshrl.u32 %v4172, 7
        %v4174 = vsub.s32 %v4171, %v4173
        %v4175 = vrot.slane %v4167, %v4174
        %v4177 = vunpack.c.l.s4 1983009808
        %v4178 = vunpack.c.0.s8 %v4177
        %v4179 = vlaneseq
        %v4180 = vshrl.u32 %v4179, 7
        %v4181 = vsub.s32 %v4178, %v4180
        %v4182 = vrot.slane %v4168, %v4181
        %v4183 = vcombine.low %v3810, %v3814
        %v4184 = vcombine.high %v3810, %v3814
        %v4186 = vunpack.c.l.s4 1983009808
        %v4187 = vunpack.c.0.s8 %v4186
        %v4188 = vlaneseq
        %v4189 = vshrl.u32 %v4188, 7
        %v4190 = vsub.s32 %v4187, %v4189
        %v4191 = vrot.slane %v4183, %v4190
        %v4193 = vunpack.c.l.s4 1983009808
        %v4194 = vunpack.c.0.s8 %v4193
        %v4195 = vlaneseq
        %v4196 = vshrl.u32 %v4195, 7
        %v4197 = vsub.s32 %v4194, %v4196
        %v4198 = vrot.slane %v4184, %v4197
        %v4199 = vcombine.low %v4143, %v4159
        %v4200 = vcombine.high %v4143, %v4159
        %v4202 = vunpack.c.l.s4 1934713408
        %v4203 = vunpack.c.0.s8 %v4202
        %v4204 = vlaneseq
        %v4205 = vshrl.u32 %v4204, 7
        %v4206 = vsub.s32 %v4203, %v4205
        %v4207 = vrot.slane %v4199, %v4206
        %v4209 = vunpack.c.l.s4 1934713408
        %v4210 = vunpack.c.0.s8 %v4209
        %v4211 = vlaneseq
        %v4212 = vshrl.u32 %v4211, 7
        %v4213 = vsub.s32 %v4210, %v4212
        %v4214 = vrot.slane %v4200, %v4213
        %v4215 = vcombine.low %v4150, %v4166
        %v4216 = vcombine.high %v4150, %v4166
        %v4218 = vunpack.c.l.s4 1934713408
        %v4219 = vunpack.c.0.s8 %v4218
        %v4220 = vlaneseq
        %v4221 = vshrl.u32 %v4220, 7
        %v4222 = vsub.s32 %v4219, %v4221
        %v4223 = vrot.slane %v4215, %v4222
        %v4225 = vunpack.c.l.s4 1934713408
        %v4226 = vunpack.c.0.s8 %v4225
        %v4227 = vlaneseq
        %v4228 = vshrl.u32 %v4227, 7
        %v4229 = vsub.s32 %v4226, %v4228
        %v4230 = vrot.slane %v4216, %v4229
        %v4231 = vcombine.low %v4175, %v4191
        %v4232 = vcombine.high %v4175, %v4191
        %v4234 = vunpack.c.l.s4 1934713408
        %v4235 = vunpack.c.0.s8 %v4234
        %v4236 = vlaneseq
        %v4237 = vshrl.u32 %v4236, 7
        %v4238 = vsub.s32 %v4235, %v4237
        %v4239 = vrot.slane %v4231, %v4238
        %v4241 = vunpack.c.l.s4 1934713408
        %v4242 = vunpack.c.0.s8 %v4241
        %v4243 = vlaneseq
        %v4244 = vshrl.u32 %v4243, 7
        %v4245 = vsub.s32 %v4242, %v4244
        %v4246 = vrot.slane %v4232, %v4245
        %v4247 = vcombine.low %v4182, %v4198
        %v4248 = vcombine.high %v4182, %v4198
        %v4250 = vunpack.c.l.s4 1934713408
        %v4251 = vunpack.c.0.s8 %v4250
        %v4252 = vlaneseq
        %v4253 = vshrl.u32 %v4252, 7
        %v4254 = vsub.s32 %v4251, %v4253
        %v4255 = vrot.slane %v4247, %v4254
        %v4257 = vunpack.c.l.s4 1934713408
        %v4258 = vunpack.c.0.s8 %v4257
        %v4259 = vlaneseq
        %v4260 = vshrl.u32 %v4259, 7
        %v4261 = vsub.s32 %v4258, %v4260
        %v4262 = vrot.slane %v4248, %v4261
        %v4263 = vcombine.low %v4207, %v4239
        %v4264 = vcombine.high %v4207, %v4239
        %v4265 = vcombine.low %v4214, %v4246
        %v4266 = vcombine.high %v4214, %v4246
        %v4267 = vcombine.low %v4223, %v4255
        %v4268 = vcombine.high %v4223, %v4255
        %v4269 = vcombine.low %v4230, %v4262
        %v4270 = vcombine.high %v4230, %v4262
        %v4271 = vcombine.low %v3816, %v3820
        %v4272 = vcombine.high %v3816, %v3820
        %v4274 = vunpack.c.l.s4 1983009808
        %v4275 = vunpack.c.0.s8 %v4274
        %v4276 = vlaneseq
        %v4277 = vshrl.u32 %v4276, 7
        %v4278 = vsub.s32 %v4275, %v4277
        %v4279 = vrot.slane %v4271, %v4278
        %v4281 = vunpack.c.l.s4 1983009808
        %v4282 = vunpack.c.0.s8 %v4281
        %v4283 = vlaneseq
        %v4284 = vshrl.u32 %v4283, 7
        %v4285 = vsub.s32 %v4282, %v4284
        %v4286 = vrot.slane %v4272, %v4285
        %v4287 = vcombine.low %v3818, %v3822
        %v4288 = vcombine.high %v3818, %v3822
        %v4290 = vunpack.c.l.s4 1983009808
        %v4291 = vunpack.c.0.s8 %v4290
        %v4292 = vlaneseq
        %v4293 = vshrl.u32 %v4292, 7
        %v4294 = vsub.s32 %v4291, %v4293
        %v4295 = vrot.slane %v4287, %v4294
        %v4297 = vunpack.c.l.s4 1983009808
        %v4298 = vunpack.c.0.s8 %v4297
        %v4299 = vlaneseq
        %v4300 = vshrl.u32 %v4299, 7
        %v4301 = vsub.s32 %v4298, %v4300
        %v4302 = vrot.slane %v4288, %v4301
        %v4303 = vcombine.low %v3824, %v3828
        %v4304 = vcombine.high %v3824, %v3828
        %v4306 = vunpack.c.l.s4 1983009808
        %v4307 = vunpack.c.0.s8 %v4306
        %v4308 = vlaneseq
        %v4309 = vshrl.u32 %v4308, 7
        %v4310 = vsub.s32 %v4307, %v4309
        %v4311 = vrot.slane %v4303, %v4310
        %v4313 = vunpack.c.l.s4 1983009808
        %v4314 = vunpack.c.0.s8 %v4313
        %v4315 = vlaneseq
        %v4316 = vshrl.u32 %v4315, 7
        %v4317 = vsub.s32 %v4314, %v4316
        %v4318 = vrot.slane %v4304, %v4317
        %v4319 = vcombine.low %v3826, %v3830
        %v4320 = vcombine.high %v3826, %v3830
        %v4322 = vunpack.c.l.s4 1983009808
        %v4323 = vunpack.c.0.s8 %v4322
        %v4324 = vlaneseq
        %v4325 = vshrl.u32 %v4324, 7
        %v4326 = vsub.s32 %v4323, %v4325
        %v4327 = vrot.slane %v4319, %v4326
        %v4329 = vunpack.c.l.s4 1983009808
        %v4330 = vunpack.c.0.s8 %v4329
        %v4331 = vlaneseq
        %v4332 = vshrl.u32 %v4331, 7
        %v4333 = vsub.s32 %v4330, %v4332
        %v4334 = vrot.slane %v4320, %v4333
        %v4335 = vcombine.low %v4279, %v4295
        %v4336 = vcombine.high %v4279, %v4295
        %v4338 = vunpack.c.l.s4 1934713408
        %v4339 = vunpack.c.0.s8 %v4338
        %v4340 = vlaneseq
        %v4341 = vshrl.u32 %v4340, 7
        %v4342 = vsub.s32 %v4339, %v4341
        %v4343 = vrot.slane %v4335, %v4342
        %v4345 = vunpack.c.l.s4 1934713408
        %v4346 = vunpack.c.0.s8 %v4345
        %v4347 = vlaneseq
        %v4348 = vshrl.u32 %v4347, 7
        %v4349 = vsub.s32 %v4346, %v4348
        %v4350 = vrot.slane %v4336, %v4349
        %v4351 = vcombine.low %v4286, %v4302
        %v4352 = vcombine.high %v4286, %v4302
        %v4354 = vunpack.c.l.s4 1934713408
        %v4355 = vunpack.c.0.s8 %v4354
        %v4356 = vlaneseq
        %v4357 = vshrl.u32 %v4356, 7
        %v4358 = vsub.s32 %v4355, %v4357
        %v4359 = vrot.slane %v4351, %v4358
        %v4361 = vunpack.c.l.s4 1934713408
        %v4362 = vunpack.c.0.s8 %v4361
        %v4363 = vlaneseq
        %v4364 = vshrl.u32 %v4363, 7
        %v4365 = vsub.s32 %v4362, %v4364
        %v4366 = vrot.slane %v4352, %v4365
        %v4367 = vcombine.low %v4311, %v4327
        %v4368 = vcombine.high %v4311, %v4327
        %v4370 = vunpack.c.l.s4 1934713408
        %v4371 = vunpack.c.0.s8 %v4370
        %v4372 = vlaneseq
        %v4373 = vshrl.u32 %v4372, 7
        %v4374 = vsub.s32 %v4371, %v4373
        %v4375 = vrot.slane %v4367, %v4374
        %v4377 = vunpack.c.l.s4 1934713408
        %v4378 = vunpack.c.0.s8 %v4377
        %v4379 = vlaneseq
        %v4380 = vshrl.u32 %v4379, 7
        %v4381 = vsub.s32 %v4378, %v4380
        %v4382 = vrot.slane %v4368, %v4381
        %v4383 = vcombine.low %v4318, %v4334
        %v4384 = vcombine.high %v4318, %v4334
        %v4386 = vunpack.c.l.s4 1934713408
        %v4387 = vunpack.c.0.s8 %v4386
        %v4388 = vlaneseq
        %v4389 = vshrl.u32 %v4388, 7
        %v4390 = vsub.s32 %v4387, %v4389
        %v4391 = vrot.slane %v4383, %v4390
        %v4393 = vunpack.c.l.s4 1934713408
        %v4394 = vunpack.c.0.s8 %v4393
        %v4395 = vlaneseq
        %v4396 = vshrl.u32 %v4395, 7
        %v4397 = vsub.s32 %v4394, %v4396
        %v4398 = vrot.slane %v4384, %v4397
        %v4399 = vcombine.low %v4343, %v4375
        %v4400 = vcombine.high %v4343, %v4375
        %v4401 = vcombine.low %v4350, %v4382
        %v4402 = vcombine.high %v4350, %v4382
        %v4403 = vcombine.low %v4359, %v4391
        %v4404 = vcombine.high %v4359, %v4391
        %v4405 = vcombine.low %v4366, %v4398
        %v4406 = vcombine.high %v4366, %v4398
        %4411 = vrot.lane.b32.xlu0 %v3992, 16
        %v4412 = vpop.permute.xlu0 %4411
        %4413 = vrot.lane.b32.xlu0 %v4128, 16
        %v4414 = vpop.permute.xlu0 %4413
        %4415 = vrot.lane.b32.xlu0 %v4264, 16
        %v4416 = vpop.permute.xlu0 %4415
        %4417 = vrot.lane.b32.xlu0 %v4400, 16
        %v4418 = vpop.permute.xlu0 %4417
        %4427 = vrot.lane.b32.xlu0 %v3993, 32
        %v4428 = vpop.permute.xlu0 %4427
        %4429 = vrot.lane.b32.xlu0 %v4129, 32
        %v4430 = vpop.permute.xlu0 %4429
        %4431 = vrot.lane.b32.xlu0 %v4265, 32
        %v4432 = vpop.permute.xlu0 %4431
        %4433 = vrot.lane.b32.xlu0 %v4401, 32
        %v4434 = vpop.permute.xlu0 %4433
        %4443 = vrot.lane.b32.xlu0 %v3994, 48
        %v4444 = vpop.permute.xlu0 %4443
        %4445 = vrot.lane.b32.xlu0 %v4130, 48
        %v4446 = vpop.permute.xlu0 %4445
        %4447 = vrot.lane.b32.xlu0 %v4266, 48
        %v4448 = vpop.permute.xlu0 %4447
        %4449 = vrot.lane.b32.xlu0 %v4402, 48
        %v4450 = vpop.permute.xlu0 %4449
        %4459 = vrot.lane.b32.xlu0 %v3995, 64
        %v4460 = vpop.permute.xlu0 %4459
        %4461 = vrot.lane.b32.xlu0 %v4131, 64
        %v4462 = vpop.permute.xlu0 %4461
        %4463 = vrot.lane.b32.xlu0 %v4267, 64
        %v4464 = vpop.permute.xlu0 %4463
        %4465 = vrot.lane.b32.xlu0 %v4403, 64
        %v4466 = vpop.permute.xlu0 %4465
        %4475 = vrot.lane.b32.xlu0 %v3996, 80
        %v4476 = vpop.permute.xlu0 %4475
        %4477 = vrot.lane.b32.xlu0 %v4132, 80
        %v4478 = vpop.permute.xlu0 %4477
        %4479 = vrot.lane.b32.xlu0 %v4268, 80
        %v4480 = vpop.permute.xlu0 %4479
        %4481 = vrot.lane.b32.xlu0 %v4404, 80
        %v4482 = vpop.permute.xlu0 %4481
        %4491 = vrot.lane.b32.xlu0 %v3997, 96
        %v4492 = vpop.permute.xlu0 %4491
        %4493 = vrot.lane.b32.xlu0 %v4133, 96
        %v4494 = vpop.permute.xlu0 %4493
        %4495 = vrot.lane.b32.xlu0 %v4269, 96
        %v4496 = vpop.permute.xlu0 %4495
        %4497 = vrot.lane.b32.xlu0 %v4405, 96
        %v4498 = vpop.permute.xlu0 %4497
        %4507 = vrot.lane.b32.xlu0 %v3998, 112
        %v4508 = vpop.permute.xlu0 %4507
        %4509 = vrot.lane.b32.xlu0 %v4134, 112
        %v4510 = vpop.permute.xlu0 %4509
        %4511 = vrot.lane.b32.xlu0 %v4270, 112
        %v4512 = vpop.permute.xlu0 %4511
        %4513 = vrot.lane.b32.xlu0 %v4406, 112
        %v4514 = vpop.permute.xlu0 %4513
        %v4519 = vsel %vm1390, %v3991, %v4412
        %v4520 = vsel %vm1390, %v4127, %v4414
        %v4521 = vsel %vm1390, %v4263, %v4416
        %v4522 = vsel %vm1390, %v4399, %v4418
        %v4523 = vsel %vm1395, %v4519, %v4428
        %v4524 = vsel %vm1395, %v4520, %v4430
        %v4525 = vsel %vm1395, %v4521, %v4432
        %v4526 = vsel %vm1395, %v4522, %v4434
        %v4527 = vsel %vm1400, %v4523, %v4444
        %v4528 = vsel %vm1400, %v4524, %v4446
        %v4529 = vsel %vm1400, %v4525, %v4448
        %v4530 = vsel %vm1400, %v4526, %v4450
        %v4531 = vsel %vm1405, %v4527, %v4460
        %v4532 = vsel %vm1405, %v4528, %v4462
        %v4533 = vsel %vm1405, %v4529, %v4464
        %v4534 = vsel %vm1405, %v4530, %v4466
        %v4535 = vsel %vm1410, %v4531, %v4476
        %v4536 = vsel %vm1410, %v4532, %v4478
        %v4537 = vsel %vm1410, %v4533, %v4480
        %v4538 = vsel %vm1410, %v4534, %v4482
        %v4539 = vsel %vm1415, %v4535, %v4492
        %v4540 = vsel %vm1415, %v4536, %v4494
        %v4541 = vsel %vm1415, %v4537, %v4496
        %v4542 = vsel %vm1415, %v4538, %v4498
        %v4543 = vsel %vm1420, %v4539, %v4508
        %v4544 = vsel %vm1420, %v4540, %v4510
        %v4545 = vsel %vm1420, %v4541, %v4512
        %v4546 = vsel %vm1420, %v4542, %v4514
        %4547 = vrot.lane.b32.xlu0 %v3019, 126
        %v4548 = vpop.permute.xlu0 %4547
        %4549 = vrot.lane.b32.xlu0 %v3020, 126
        %v4550 = vpop.permute.xlu0 %4549
        %4551 = vrot.lane.b32.xlu0 %v3021, 126
        %v4552 = vpop.permute.xlu0 %4551
        %4553 = vrot.lane.b32.xlu0 %v3022, 126
        %v4554 = vpop.permute.xlu0 %4553
        %4555 = vrot.lane.b32.xlu0 %v3023, 126
        %v4556 = vpop.permute.xlu0 %4555
        %4557 = vrot.lane.b32.xlu0 %v3024, 126
        %v4558 = vpop.permute.xlu0 %4557
        %4559 = vrot.lane.b32.xlu0 %v3025, 126
        %v4560 = vpop.permute.xlu0 %4559
        %4561 = vrot.lane.b32.xlu0 %v3026, 126
        %v4562 = vpop.permute.xlu0 %4561
        %4563 = vrot.lane.b32.xlu0 %v3027, 126
        %v4564 = vpop.permute.xlu0 %4563
        %4565 = vrot.lane.b32.xlu0 %v3028, 126
        %v4566 = vpop.permute.xlu0 %4565
        %4567 = vrot.lane.b32.xlu0 %v3029, 126
        %v4568 = vpop.permute.xlu0 %4567
        %4569 = vrot.lane.b32.xlu0 %v3030, 126
        %v4570 = vpop.permute.xlu0 %4569
        %4571 = vrot.lane.b32.xlu0 %v3031, 126
        %v4572 = vpop.permute.xlu0 %4571
        %4573 = vrot.lane.b32.xlu0 %v3032, 126
        %v4574 = vpop.permute.xlu0 %4573
        %4575 = vrot.lane.b32.xlu0 %v3033, 126
        %v4576 = vpop.permute.xlu0 %4575
        %4577 = vrot.lane.b32.xlu0 %v3034, 126
        %v4578 = vpop.permute.xlu0 %4577
        %4579 = vrot.lane.b32.xlu0 %v3035, 126
        %v4580 = vpop.permute.xlu0 %4579
        %4581 = vrot.lane.b32.xlu0 %v3036, 126
        %v4582 = vpop.permute.xlu0 %4581
        %4583 = vrot.lane.b32.xlu0 %v3037, 126
        %v4584 = vpop.permute.xlu0 %4583
        %4585 = vrot.lane.b32.xlu0 %v3038, 126
        %v4586 = vpop.permute.xlu0 %4585
        %4587 = vrot.lane.b32.xlu0 %v3039, 126
        %v4588 = vpop.permute.xlu0 %4587
        %4589 = vrot.lane.b32.xlu0 %v3040, 126
        %v4590 = vpop.permute.xlu0 %4589
        %4591 = vrot.lane.b32.xlu0 %v3041, 126
        %v4592 = vpop.permute.xlu0 %4591
        %4593 = vrot.lane.b32.xlu0 %v3042, 126
        %v4594 = vpop.permute.xlu0 %4593
        %4595 = vrot.lane.b32.xlu0 %v3043, 126
        %v4596 = vpop.permute.xlu0 %4595
        %4597 = vrot.lane.b32.xlu0 %v3044, 126
        %v4598 = vpop.permute.xlu0 %4597
        %4599 = vrot.lane.b32.xlu0 %v3045, 126
        %v4600 = vpop.permute.xlu0 %4599
        %4601 = vrot.lane.b32.xlu0 %v3046, 126
        %v4602 = vpop.permute.xlu0 %4601
        %4603 = vrot.lane.b32.xlu0 %v3047, 126
        %v4604 = vpop.permute.xlu0 %4603
        %4605 = vrot.lane.b32.xlu0 %v3048, 126
        %v4606 = vpop.permute.xlu0 %4605
        %4607 = vrot.lane.b32.xlu0 %v3049, 126
        %v4608 = vpop.permute.xlu0 %4607
        %4609 = vrot.lane.b32.xlu0 %v3050, 126
        %v4610 = vpop.permute.xlu0 %4609
        %v4643 = vcombine.low %v4548, %v4552
        %v4644 = vcombine.high %v4548, %v4552
        %v4646 = vunpack.c.l.s4 1983009808
        %v4647 = vunpack.c.0.s8 %v4646
        %v4648 = vlaneseq
        %v4649 = vshrl.u32 %v4648, 7
        %v4650 = vsub.s32 %v4647, %v4649
        %v4651 = vrot.slane %v4643, %v4650
        %v4653 = vunpack.c.l.s4 1983009808
        %v4654 = vunpack.c.0.s8 %v4653
        %v4655 = vlaneseq
        %v4656 = vshrl.u32 %v4655, 7
        %v4657 = vsub.s32 %v4654, %v4656
        %v4658 = vrot.slane %v4644, %v4657
        %v4659 = vcombine.low %v4550, %v4554
        %v4660 = vcombine.high %v4550, %v4554
        %v4662 = vunpack.c.l.s4 1983009808
        %v4663 = vunpack.c.0.s8 %v4662
        %v4664 = vlaneseq
        %v4665 = vshrl.u32 %v4664, 7
        %v4666 = vsub.s32 %v4663, %v4665
        %v4667 = vrot.slane %v4659, %v4666
        %v4669 = vunpack.c.l.s4 1983009808
        %v4670 = vunpack.c.0.s8 %v4669
        %v4671 = vlaneseq
        %v4672 = vshrl.u32 %v4671, 7
        %v4673 = vsub.s32 %v4670, %v4672
        %v4674 = vrot.slane %v4660, %v4673
        %v4675 = vcombine.low %v4556, %v4560
        %v4676 = vcombine.high %v4556, %v4560
        %v4678 = vunpack.c.l.s4 1983009808
        %v4679 = vunpack.c.0.s8 %v4678
        %v4680 = vlaneseq
        %v4681 = vshrl.u32 %v4680, 7
        %v4682 = vsub.s32 %v4679, %v4681
        %v4683 = vrot.slane %v4675, %v4682
        %v4685 = vunpack.c.l.s4 1983009808
        %v4686 = vunpack.c.0.s8 %v4685
        %v4687 = vlaneseq
        %v4688 = vshrl.u32 %v4687, 7
        %v4689 = vsub.s32 %v4686, %v4688
        %v4690 = vrot.slane %v4676, %v4689
        %v4691 = vcombine.low %v4558, %v4562
        %v4692 = vcombine.high %v4558, %v4562
        %v4694 = vunpack.c.l.s4 1983009808
        %v4695 = vunpack.c.0.s8 %v4694
        %v4696 = vlaneseq
        %v4697 = vshrl.u32 %v4696, 7
        %v4698 = vsub.s32 %v4695, %v4697
        %v4699 = vrot.slane %v4691, %v4698
        %v4701 = vunpack.c.l.s4 1983009808
        %v4702 = vunpack.c.0.s8 %v4701
        %v4703 = vlaneseq
        %v4704 = vshrl.u32 %v4703, 7
        %v4705 = vsub.s32 %v4702, %v4704
        %v4706 = vrot.slane %v4692, %v4705
        %v4707 = vcombine.low %v4651, %v4667
        %v4708 = vcombine.high %v4651, %v4667
        %v4710 = vunpack.c.l.s4 1934713408
        %v4711 = vunpack.c.0.s8 %v4710
        %v4712 = vlaneseq
        %v4713 = vshrl.u32 %v4712, 7
        %v4714 = vsub.s32 %v4711, %v4713
        %v4715 = vrot.slane %v4707, %v4714
        %v4717 = vunpack.c.l.s4 1934713408
        %v4718 = vunpack.c.0.s8 %v4717
        %v4719 = vlaneseq
        %v4720 = vshrl.u32 %v4719, 7
        %v4721 = vsub.s32 %v4718, %v4720
        %v4722 = vrot.slane %v4708, %v4721
        %v4723 = vcombine.low %v4658, %v4674
        %v4724 = vcombine.high %v4658, %v4674
        %v4726 = vunpack.c.l.s4 1934713408
        %v4727 = vunpack.c.0.s8 %v4726
        %v4728 = vlaneseq
        %v4729 = vshrl.u32 %v4728, 7
        %v4730 = vsub.s32 %v4727, %v4729
        %v4731 = vrot.slane %v4723, %v4730
        %v4733 = vunpack.c.l.s4 1934713408
        %v4734 = vunpack.c.0.s8 %v4733
        %v4735 = vlaneseq
        %v4736 = vshrl.u32 %v4735, 7
        %v4737 = vsub.s32 %v4734, %v4736
        %v4738 = vrot.slane %v4724, %v4737
        %v4739 = vcombine.low %v4683, %v4699
        %v4740 = vcombine.high %v4683, %v4699
        %v4742 = vunpack.c.l.s4 1934713408
        %v4743 = vunpack.c.0.s8 %v4742
        %v4744 = vlaneseq
        %v4745 = vshrl.u32 %v4744, 7
        %v4746 = vsub.s32 %v4743, %v4745
        %v4747 = vrot.slane %v4739, %v4746
        %v4749 = vunpack.c.l.s4 1934713408
        %v4750 = vunpack.c.0.s8 %v4749
        %v4751 = vlaneseq
        %v4752 = vshrl.u32 %v4751, 7
        %v4753 = vsub.s32 %v4750, %v4752
        %v4754 = vrot.slane %v4740, %v4753
        %v4755 = vcombine.low %v4690, %v4706
        %v4756 = vcombine.high %v4690, %v4706
        %v4758 = vunpack.c.l.s4 1934713408
        %v4759 = vunpack.c.0.s8 %v4758
        %v4760 = vlaneseq
        %v4761 = vshrl.u32 %v4760, 7
        %v4762 = vsub.s32 %v4759, %v4761
        %v4763 = vrot.slane %v4755, %v4762
        %v4765 = vunpack.c.l.s4 1934713408
        %v4766 = vunpack.c.0.s8 %v4765
        %v4767 = vlaneseq
        %v4768 = vshrl.u32 %v4767, 7
        %v4769 = vsub.s32 %v4766, %v4768
        %v4770 = vrot.slane %v4756, %v4769
        %v4771 = vcombine.low %v4715, %v4747
        %v4772 = vcombine.high %v4715, %v4747
        %v4773 = vcombine.low %v4722, %v4754
        %v4774 = vcombine.high %v4722, %v4754
        %v4775 = vcombine.low %v4731, %v4763
        %v4776 = vcombine.high %v4731, %v4763
        %v4777 = vcombine.low %v4738, %v4770
        %v4778 = vcombine.high %v4738, %v4770
        %v4779 = vcombine.low %v4564, %v4568
        %v4780 = vcombine.high %v4564, %v4568
        %v4782 = vunpack.c.l.s4 1983009808
        %v4783 = vunpack.c.0.s8 %v4782
        %v4784 = vlaneseq
        %v4785 = vshrl.u32 %v4784, 7
        %v4786 = vsub.s32 %v4783, %v4785
        %v4787 = vrot.slane %v4779, %v4786
        %v4789 = vunpack.c.l.s4 1983009808
        %v4790 = vunpack.c.0.s8 %v4789
        %v4791 = vlaneseq
        %v4792 = vshrl.u32 %v4791, 7
        %v4793 = vsub.s32 %v4790, %v4792
        %v4794 = vrot.slane %v4780, %v4793
        %v4795 = vcombine.low %v4566, %v4570
        %v4796 = vcombine.high %v4566, %v4570
        %v4798 = vunpack.c.l.s4 1983009808
        %v4799 = vunpack.c.0.s8 %v4798
        %v4800 = vlaneseq
        %v4801 = vshrl.u32 %v4800, 7
        %v4802 = vsub.s32 %v4799, %v4801
        %v4803 = vrot.slane %v4795, %v4802
        %v4805 = vunpack.c.l.s4 1983009808
        %v4806 = vunpack.c.0.s8 %v4805
        %v4807 = vlaneseq
        %v4808 = vshrl.u32 %v4807, 7
        %v4809 = vsub.s32 %v4806, %v4808
        %v4810 = vrot.slane %v4796, %v4809
        %v4811 = vcombine.low %v4572, %v4576
        %v4812 = vcombine.high %v4572, %v4576
        %v4814 = vunpack.c.l.s4 1983009808
        %v4815 = vunpack.c.0.s8 %v4814
        %v4816 = vlaneseq
        %v4817 = vshrl.u32 %v4816, 7
        %v4818 = vsub.s32 %v4815, %v4817
        %v4819 = vrot.slane %v4811, %v4818
        %v4821 = vunpack.c.l.s4 1983009808
        %v4822 = vunpack.c.0.s8 %v4821
        %v4823 = vlaneseq
        %v4824 = vshrl.u32 %v4823, 7
        %v4825 = vsub.s32 %v4822, %v4824
        %v4826 = vrot.slane %v4812, %v4825
        %v4827 = vcombine.low %v4574, %v4578
        %v4828 = vcombine.high %v4574, %v4578
        %v4830 = vunpack.c.l.s4 1983009808
        %v4831 = vunpack.c.0.s8 %v4830
        %v4832 = vlaneseq
        %v4833 = vshrl.u32 %v4832, 7
        %v4834 = vsub.s32 %v4831, %v4833
        %v4835 = vrot.slane %v4827, %v4834
        %v4837 = vunpack.c.l.s4 1983009808
        %v4838 = vunpack.c.0.s8 %v4837
        %v4839 = vlaneseq
        %v4840 = vshrl.u32 %v4839, 7
        %v4841 = vsub.s32 %v4838, %v4840
        %v4842 = vrot.slane %v4828, %v4841
        %v4843 = vcombine.low %v4787, %v4803
        %v4844 = vcombine.high %v4787, %v4803
        %v4846 = vunpack.c.l.s4 1934713408
        %v4847 = vunpack.c.0.s8 %v4846
        %v4848 = vlaneseq
        %v4849 = vshrl.u32 %v4848, 7
        %v4850 = vsub.s32 %v4847, %v4849
        %v4851 = vrot.slane %v4843, %v4850
        %v4853 = vunpack.c.l.s4 1934713408
        %v4854 = vunpack.c.0.s8 %v4853
        %v4855 = vlaneseq
        %v4856 = vshrl.u32 %v4855, 7
        %v4857 = vsub.s32 %v4854, %v4856
        %v4858 = vrot.slane %v4844, %v4857
        %v4859 = vcombine.low %v4794, %v4810
        %v4860 = vcombine.high %v4794, %v4810
        %v4862 = vunpack.c.l.s4 1934713408
        %v4863 = vunpack.c.0.s8 %v4862
        %v4864 = vlaneseq
        %v4865 = vshrl.u32 %v4864, 7
        %v4866 = vsub.s32 %v4863, %v4865
        %v4867 = vrot.slane %v4859, %v4866
        %v4869 = vunpack.c.l.s4 1934713408
        %v4870 = vunpack.c.0.s8 %v4869
        %v4871 = vlaneseq
        %v4872 = vshrl.u32 %v4871, 7
        %v4873 = vsub.s32 %v4870, %v4872
        %v4874 = vrot.slane %v4860, %v4873
        %v4875 = vcombine.low %v4819, %v4835
        %v4876 = vcombine.high %v4819, %v4835
        %v4878 = vunpack.c.l.s4 1934713408
        %v4879 = vunpack.c.0.s8 %v4878
        %v4880 = vlaneseq
        %v4881 = vshrl.u32 %v4880, 7
        %v4882 = vsub.s32 %v4879, %v4881
        %v4883 = vrot.slane %v4875, %v4882
        %v4885 = vunpack.c.l.s4 1934713408
        %v4886 = vunpack.c.0.s8 %v4885
        %v4887 = vlaneseq
        %v4888 = vshrl.u32 %v4887, 7
        %v4889 = vsub.s32 %v4886, %v4888
        %v4890 = vrot.slane %v4876, %v4889
        %v4891 = vcombine.low %v4826, %v4842
        %v4892 = vcombine.high %v4826, %v4842
        %v4894 = vunpack.c.l.s4 1934713408
        %v4895 = vunpack.c.0.s8 %v4894
        %v4896 = vlaneseq
        %v4897 = vshrl.u32 %v4896, 7
        %v4898 = vsub.s32 %v4895, %v4897
        %v4899 = vrot.slane %v4891, %v4898
        %v4901 = vunpack.c.l.s4 1934713408
        %v4902 = vunpack.c.0.s8 %v4901
        %v4903 = vlaneseq
        %v4904 = vshrl.u32 %v4903, 7
        %v4905 = vsub.s32 %v4902, %v4904
        %v4906 = vrot.slane %v4892, %v4905
        %v4907 = vcombine.low %v4851, %v4883
        %v4908 = vcombine.high %v4851, %v4883
        %v4909 = vcombine.low %v4858, %v4890
        %v4910 = vcombine.high %v4858, %v4890
        %v4911 = vcombine.low %v4867, %v4899
        %v4912 = vcombine.high %v4867, %v4899
        %v4913 = vcombine.low %v4874, %v4906
        %v4914 = vcombine.high %v4874, %v4906
        %v4915 = vcombine.low %v4580, %v4584
        %v4916 = vcombine.high %v4580, %v4584
        %v4918 = vunpack.c.l.s4 1983009808
        %v4919 = vunpack.c.0.s8 %v4918
        %v4920 = vlaneseq
        %v4921 = vshrl.u32 %v4920, 7
        %v4922 = vsub.s32 %v4919, %v4921
        %v4923 = vrot.slane %v4915, %v4922
        %v4925 = vunpack.c.l.s4 1983009808
        %v4926 = vunpack.c.0.s8 %v4925
        %v4927 = vlaneseq
        %v4928 = vshrl.u32 %v4927, 7
        %v4929 = vsub.s32 %v4926, %v4928
        %v4930 = vrot.slane %v4916, %v4929
        %v4931 = vcombine.low %v4582, %v4586
        %v4932 = vcombine.high %v4582, %v4586
        %v4934 = vunpack.c.l.s4 1983009808
        %v4935 = vunpack.c.0.s8 %v4934
        %v4936 = vlaneseq
        %v4937 = vshrl.u32 %v4936, 7
        %v4938 = vsub.s32 %v4935, %v4937
        %v4939 = vrot.slane %v4931, %v4938
        %v4941 = vunpack.c.l.s4 1983009808
        %v4942 = vunpack.c.0.s8 %v4941
        %v4943 = vlaneseq
        %v4944 = vshrl.u32 %v4943, 7
        %v4945 = vsub.s32 %v4942, %v4944
        %v4946 = vrot.slane %v4932, %v4945
        %v4947 = vcombine.low %v4588, %v4592
        %v4948 = vcombine.high %v4588, %v4592
        %v4950 = vunpack.c.l.s4 1983009808
        %v4951 = vunpack.c.0.s8 %v4950
        %v4952 = vlaneseq
        %v4953 = vshrl.u32 %v4952, 7
        %v4954 = vsub.s32 %v4951, %v4953
        %v4955 = vrot.slane %v4947, %v4954
        %v4957 = vunpack.c.l.s4 1983009808
        %v4958 = vunpack.c.0.s8 %v4957
        %v4959 = vlaneseq
        %v4960 = vshrl.u32 %v4959, 7
        %v4961 = vsub.s32 %v4958, %v4960
        %v4962 = vrot.slane %v4948, %v4961
        %v4963 = vcombine.low %v4590, %v4594
        %v4964 = vcombine.high %v4590, %v4594
        %v4966 = vunpack.c.l.s4 1983009808
        %v4967 = vunpack.c.0.s8 %v4966
        %v4968 = vlaneseq
        %v4969 = vshrl.u32 %v4968, 7
        %v4970 = vsub.s32 %v4967, %v4969
        %v4971 = vrot.slane %v4963, %v4970
        %v4973 = vunpack.c.l.s4 1983009808
        %v4974 = vunpack.c.0.s8 %v4973
        %v4975 = vlaneseq
        %v4976 = vshrl.u32 %v4975, 7
        %v4977 = vsub.s32 %v4974, %v4976
        %v4978 = vrot.slane %v4964, %v4977
        %v4979 = vcombine.low %v4923, %v4939
        %v4980 = vcombine.high %v4923, %v4939
        %v4982 = vunpack.c.l.s4 1934713408
        %v4983 = vunpack.c.0.s8 %v4982
        %v4984 = vlaneseq
        %v4985 = vshrl.u32 %v4984, 7
        %v4986 = vsub.s32 %v4983, %v4985
        %v4987 = vrot.slane %v4979, %v4986
        %v4989 = vunpack.c.l.s4 1934713408
        %v4990 = vunpack.c.0.s8 %v4989
        %v4991 = vlaneseq
        %v4992 = vshrl.u32 %v4991, 7
        %v4993 = vsub.s32 %v4990, %v4992
        %v4994 = vrot.slane %v4980, %v4993
        %v4995 = vcombine.low %v4930, %v4946
        %v4996 = vcombine.high %v4930, %v4946
        %v4998 = vunpack.c.l.s4 1934713408
        %v4999 = vunpack.c.0.s8 %v4998
        %v5000 = vlaneseq
        %v5001 = vshrl.u32 %v5000, 7
        %v5002 = vsub.s32 %v4999, %v5001
        %v5003 = vrot.slane %v4995, %v5002
        %v5005 = vunpack.c.l.s4 1934713408
        %v5006 = vunpack.c.0.s8 %v5005
        %v5007 = vlaneseq
        %v5008 = vshrl.u32 %v5007, 7
        %v5009 = vsub.s32 %v5006, %v5008
        %v5010 = vrot.slane %v4996, %v5009
        %v5011 = vcombine.low %v4955, %v4971
        %v5012 = vcombine.high %v4955, %v4971
        %v5014 = vunpack.c.l.s4 1934713408
        %v5015 = vunpack.c.0.s8 %v5014
        %v5016 = vlaneseq
        %v5017 = vshrl.u32 %v5016, 7
        %v5018 = vsub.s32 %v5015, %v5017
        %v5019 = vrot.slane %v5011, %v5018
        %v5021 = vunpack.c.l.s4 1934713408
        %v5022 = vunpack.c.0.s8 %v5021
        %v5023 = vlaneseq
        %v5024 = vshrl.u32 %v5023, 7
        %v5025 = vsub.s32 %v5022, %v5024
        %v5026 = vrot.slane %v5012, %v5025
        %v5027 = vcombine.low %v4962, %v4978
        %v5028 = vcombine.high %v4962, %v4978
        %v5030 = vunpack.c.l.s4 1934713408
        %v5031 = vunpack.c.0.s8 %v5030
        %v5032 = vlaneseq
        %v5033 = vshrl.u32 %v5032, 7
        %v5034 = vsub.s32 %v5031, %v5033
        %v5035 = vrot.slane %v5027, %v5034
        %v5037 = vunpack.c.l.s4 1934713408
        %v5038 = vunpack.c.0.s8 %v5037
        %v5039 = vlaneseq
        %v5040 = vshrl.u32 %v5039, 7
        %v5041 = vsub.s32 %v5038, %v5040
        %v5042 = vrot.slane %v5028, %v5041
        %v5043 = vcombine.low %v4987, %v5019
        %v5044 = vcombine.high %v4987, %v5019
        %v5045 = vcombine.low %v4994, %v5026
        %v5046 = vcombine.high %v4994, %v5026
        %v5047 = vcombine.low %v5003, %v5035
        %v5048 = vcombine.high %v5003, %v5035
        %v5049 = vcombine.low %v5010, %v5042
        %v5050 = vcombine.high %v5010, %v5042
        %v5051 = vcombine.low %v4596, %v4600
        %v5052 = vcombine.high %v4596, %v4600
        %v5054 = vunpack.c.l.s4 1983009808
        %v5055 = vunpack.c.0.s8 %v5054
        %v5056 = vlaneseq
        %v5057 = vshrl.u32 %v5056, 7
        %v5058 = vsub.s32 %v5055, %v5057
        %v5059 = vrot.slane %v5051, %v5058
        %v5061 = vunpack.c.l.s4 1983009808
        %v5062 = vunpack.c.0.s8 %v5061
        %v5063 = vlaneseq
        %v5064 = vshrl.u32 %v5063, 7
        %v5065 = vsub.s32 %v5062, %v5064
        %v5066 = vrot.slane %v5052, %v5065
        %v5067 = vcombine.low %v4598, %v4602
        %v5068 = vcombine.high %v4598, %v4602
        %v5070 = vunpack.c.l.s4 1983009808
        %v5071 = vunpack.c.0.s8 %v5070
        %v5072 = vlaneseq
        %v5073 = vshrl.u32 %v5072, 7
        %v5074 = vsub.s32 %v5071, %v5073
        %v5075 = vrot.slane %v5067, %v5074
        %v5077 = vunpack.c.l.s4 1983009808
        %v5078 = vunpack.c.0.s8 %v5077
        %v5079 = vlaneseq
        %v5080 = vshrl.u32 %v5079, 7
        %v5081 = vsub.s32 %v5078, %v5080
        %v5082 = vrot.slane %v5068, %v5081
        %v5083 = vcombine.low %v4604, %v4608
        %v5084 = vcombine.high %v4604, %v4608
        %v5086 = vunpack.c.l.s4 1983009808
        %v5087 = vunpack.c.0.s8 %v5086
        %v5088 = vlaneseq
        %v5089 = vshrl.u32 %v5088, 7
        %v5090 = vsub.s32 %v5087, %v5089
        %v5091 = vrot.slane %v5083, %v5090
        %v5093 = vunpack.c.l.s4 1983009808
        %v5094 = vunpack.c.0.s8 %v5093
        %v5095 = vlaneseq
        %v5096 = vshrl.u32 %v5095, 7
        %v5097 = vsub.s32 %v5094, %v5096
        %v5098 = vrot.slane %v5084, %v5097
        %v5099 = vcombine.low %v4606, %v4610
        %v5100 = vcombine.high %v4606, %v4610
        %v5102 = vunpack.c.l.s4 1983009808
        %v5103 = vunpack.c.0.s8 %v5102
        %v5104 = vlaneseq
        %v5105 = vshrl.u32 %v5104, 7
        %v5106 = vsub.s32 %v5103, %v5105
        %v5107 = vrot.slane %v5099, %v5106
        %v5109 = vunpack.c.l.s4 1983009808
        %v5110 = vunpack.c.0.s8 %v5109
        %v5111 = vlaneseq
        %v5112 = vshrl.u32 %v5111, 7
        %v5113 = vsub.s32 %v5110, %v5112
        %v5114 = vrot.slane %v5100, %v5113
        %v5115 = vcombine.low %v5059, %v5075
        %v5116 = vcombine.high %v5059, %v5075
        %v5118 = vunpack.c.l.s4 1934713408
        %v5119 = vunpack.c.0.s8 %v5118
        %v5120 = vlaneseq
        %v5121 = vshrl.u32 %v5120, 7
        %v5122 = vsub.s32 %v5119, %v5121
        %v5123 = vrot.slane %v5115, %v5122
        %v5125 = vunpack.c.l.s4 1934713408
        %v5126 = vunpack.c.0.s8 %v5125
        %v5127 = vlaneseq
        %v5128 = vshrl.u32 %v5127, 7
        %v5129 = vsub.s32 %v5126, %v5128
        %v5130 = vrot.slane %v5116, %v5129
        %v5131 = vcombine.low %v5066, %v5082
        %v5132 = vcombine.high %v5066, %v5082
        %v5134 = vunpack.c.l.s4 1934713408
        %v5135 = vunpack.c.0.s8 %v5134
        %v5136 = vlaneseq
        %v5137 = vshrl.u32 %v5136, 7
        %v5138 = vsub.s32 %v5135, %v5137
        %v5139 = vrot.slane %v5131, %v5138
        %v5141 = vunpack.c.l.s4 1934713408
        %v5142 = vunpack.c.0.s8 %v5141
        %v5143 = vlaneseq
        %v5144 = vshrl.u32 %v5143, 7
        %v5145 = vsub.s32 %v5142, %v5144
        %v5146 = vrot.slane %v5132, %v5145
        %v5147 = vcombine.low %v5091, %v5107
        %v5148 = vcombine.high %v5091, %v5107
        %v5150 = vunpack.c.l.s4 1934713408
        %v5151 = vunpack.c.0.s8 %v5150
        %v5152 = vlaneseq
        %v5153 = vshrl.u32 %v5152, 7
        %v5154 = vsub.s32 %v5151, %v5153
        %v5155 = vrot.slane %v5147, %v5154
        %v5157 = vunpack.c.l.s4 1934713408
        %v5158 = vunpack.c.0.s8 %v5157
        %v5159 = vlaneseq
        %v5160 = vshrl.u32 %v5159, 7
        %v5161 = vsub.s32 %v5158, %v5160
        %v5162 = vrot.slane %v5148, %v5161
        %v5163 = vcombine.low %v5098, %v5114
        %v5164 = vcombine.high %v5098, %v5114
        %v5166 = vunpack.c.l.s4 1934713408
        %v5167 = vunpack.c.0.s8 %v5166
        %v5168 = vlaneseq
        %v5169 = vshrl.u32 %v5168, 7
        %v5170 = vsub.s32 %v5167, %v5169
        %v5171 = vrot.slane %v5163, %v5170
        %v5173 = vunpack.c.l.s4 1934713408
        %v5174 = vunpack.c.0.s8 %v5173
        %v5175 = vlaneseq
        %v5176 = vshrl.u32 %v5175, 7
        %v5177 = vsub.s32 %v5174, %v5176
        %v5178 = vrot.slane %v5164, %v5177
        %v5179 = vcombine.low %v5123, %v5155
        %v5180 = vcombine.high %v5123, %v5155
        %v5181 = vcombine.low %v5130, %v5162
        %v5182 = vcombine.high %v5130, %v5162
        %v5183 = vcombine.low %v5139, %v5171
        %v5184 = vcombine.high %v5139, %v5171
        %v5185 = vcombine.low %v5146, %v5178
        %v5186 = vcombine.high %v5146, %v5178
        %5191 = vrot.lane.b32.xlu0 %v4772, 16
        %v5192 = vpop.permute.xlu0 %5191
        %5193 = vrot.lane.b32.xlu0 %v4908, 16
        %v5194 = vpop.permute.xlu0 %5193
        %5195 = vrot.lane.b32.xlu0 %v5044, 16
        %v5196 = vpop.permute.xlu0 %5195
        %5197 = vrot.lane.b32.xlu0 %v5180, 16
        %v5198 = vpop.permute.xlu0 %5197
        %5207 = vrot.lane.b32.xlu0 %v4773, 32
        %v5208 = vpop.permute.xlu0 %5207
        %5209 = vrot.lane.b32.xlu0 %v4909, 32
        %v5210 = vpop.permute.xlu0 %5209
        %5211 = vrot.lane.b32.xlu0 %v5045, 32
        %v5212 = vpop.permute.xlu0 %5211
        %5213 = vrot.lane.b32.xlu0 %v5181, 32
        %v5214 = vpop.permute.xlu0 %5213
        %5223 = vrot.lane.b32.xlu0 %v4774, 48
        %v5224 = vpop.permute.xlu0 %5223
        %5225 = vrot.lane.b32.xlu0 %v4910, 48
        %v5226 = vpop.permute.xlu0 %5225
        %5227 = vrot.lane.b32.xlu0 %v5046, 48
        %v5228 = vpop.permute.xlu0 %5227
        %5229 = vrot.lane.b32.xlu0 %v5182, 48
        %v5230 = vpop.permute.xlu0 %5229
        %5239 = vrot.lane.b32.xlu0 %v4775, 64
        %v5240 = vpop.permute.xlu0 %5239
        %5241 = vrot.lane.b32.xlu0 %v4911, 64
        %v5242 = vpop.permute.xlu0 %5241
        %5243 = vrot.lane.b32.xlu0 %v5047, 64
        %v5244 = vpop.permute.xlu0 %5243
        %5245 = vrot.lane.b32.xlu0 %v5183, 64
        %v5246 = vpop.permute.xlu0 %5245
        %5255 = vrot.lane.b32.xlu0 %v4776, 80
        %v5256 = vpop.permute.xlu0 %5255
        %5257 = vrot.lane.b32.xlu0 %v4912, 80
        %v5258 = vpop.permute.xlu0 %5257
        %5259 = vrot.lane.b32.xlu0 %v5048, 80
        %v5260 = vpop.permute.xlu0 %5259
        %5261 = vrot.lane.b32.xlu0 %v5184, 80
        %v5262 = vpop.permute.xlu0 %5261
        %5271 = vrot.lane.b32.xlu0 %v4777, 96
        %v5272 = vpop.permute.xlu0 %5271
        %5273 = vrot.lane.b32.xlu0 %v4913, 96
        %v5274 = vpop.permute.xlu0 %5273
        %5275 = vrot.lane.b32.xlu0 %v5049, 96
        %v5276 = vpop.permute.xlu0 %5275
        %5277 = vrot.lane.b32.xlu0 %v5185, 96
        %v5278 = vpop.permute.xlu0 %5277
        %5287 = vrot.lane.b32.xlu0 %v4778, 112
        %v5288 = vpop.permute.xlu0 %5287
        %5289 = vrot.lane.b32.xlu0 %v4914, 112
        %v5290 = vpop.permute.xlu0 %5289
        %5291 = vrot.lane.b32.xlu0 %v5050, 112
        %v5292 = vpop.permute.xlu0 %5291
        %5293 = vrot.lane.b32.xlu0 %v5186, 112
        %v5294 = vpop.permute.xlu0 %5293
        %v5299 = vsel %vm1390, %v4771, %v5192
        %v5300 = vsel %vm1390, %v4907, %v5194
        %v5301 = vsel %vm1390, %v5043, %v5196
        %v5302 = vsel %vm1390, %v5179, %v5198
        %v5303 = vsel %vm1395, %v5299, %v5208
        %v5304 = vsel %vm1395, %v5300, %v5210
        %v5305 = vsel %vm1395, %v5301, %v5212
        %v5306 = vsel %vm1395, %v5302, %v5214
        %v5307 = vsel %vm1400, %v5303, %v5224
        %v5308 = vsel %vm1400, %v5304, %v5226
        %v5309 = vsel %vm1400, %v5305, %v5228
        %v5310 = vsel %vm1400, %v5306, %v5230
        %v5311 = vsel %vm1405, %v5307, %v5240
        %v5312 = vsel %vm1405, %v5308, %v5242
        %v5313 = vsel %vm1405, %v5309, %v5244
        %v5314 = vsel %vm1405, %v5310, %v5246
        %v5315 = vsel %vm1410, %v5311, %v5256
        %v5316 = vsel %vm1410, %v5312, %v5258
        %v5317 = vsel %vm1410, %v5313, %v5260
        %v5318 = vsel %vm1410, %v5314, %v5262
        %v5319 = vsel %vm1415, %v5315, %v5272
        %v5320 = vsel %vm1415, %v5316, %v5274
        %v5321 = vsel %vm1415, %v5317, %v5276
        %v5322 = vsel %vm1415, %v5318, %v5278
        %v5323 = vsel %vm1420, %v5319, %v5288
        %v5324 = vsel %vm1420, %v5320, %v5290
        %v5325 = vsel %vm1420, %v5321, %v5292
        %v5326 = vsel %vm1420, %v5322, %v5294
        %s5327 = sadd.s32 %s217, 2
        %s5328 = scalar_lea.vmem [#allocation2], %s5327
        %v5329 = vld [vmem:[%s5328] sm:$0xff]
        %v5330 = vld [vmem:[%s5328 + $0x18] sm:$0xff]
        %v5331 = vld [vmem:[%s5328 + $0x30] sm:$0xff]
        %v5332 = vld [vmem:[%s5328 + $0x48] sm:$0xff]
        %v5333 = vld [vmem:[%s5328 + $0x60] sm:$0xff]
        %v5334 = vld [vmem:[%s5328 + $0x78] sm:$0xff]
        %v5335 = vld [vmem:[%s5328 + $0x90] sm:$0xff]
        %v5336 = vld [vmem:[%s5328 + $0xa8] sm:$0xff]
        %v5337 = vld [vmem:[%s5328 + $0xc0] sm:$0xff]
        %v5338 = vld [vmem:[%s5328 + $0xd8] sm:$0xff]
        %v5339 = vld [vmem:[%s5328 + $0xf0] sm:$0xff]
        %v5340 = vld [vmem:[%s5328 + $0x108] sm:$0xff]
        %v5341 = vld [vmem:[%s5328 + $0x120] sm:$0xff]
        %v5342 = vld [vmem:[%s5328 + $0x138] sm:$0xff]
        %v5343 = vld [vmem:[%s5328 + $0x150] sm:$0xff]
        %v5344 = vld [vmem:[%s5328 + $0x168] sm:$0xff]
        %v5345 = vld [vmem:[%s5328 + $0x180] sm:$0xff]
        %v5346 = vld [vmem:[%s5328 + $0x198] sm:$0xff]
        %v5347 = vld [vmem:[%s5328 + $0x1b0] sm:$0xff]
        %v5348 = vld [vmem:[%s5328 + $0x1c8] sm:$0xff]
        %v5349 = vld [vmem:[%s5328 + $0x1e0] sm:$0xff]
        %v5350 = vld [vmem:[%s5328 + $0x1f8] sm:$0xff]
        %v5351 = vld [vmem:[%s5328 + $0x210] sm:$0xff]
        %v5352 = vld [vmem:[%s5328 + $0x228] sm:$0xff]
        %v5353 = vld [vmem:[%s5328 + $0x240] sm:$0xff]
        %v5354 = vld [vmem:[%s5328 + $0x258] sm:$0xff]
        %v5355 = vld [vmem:[%s5328 + $0x270] sm:$0xff]
        %v5356 = vld [vmem:[%s5328 + $0x288] sm:$0xff]
        %v5357 = vld [vmem:[%s5328 + $0x2a0] sm:$0xff]
        %v5358 = vld [vmem:[%s5328 + $0x2b8] sm:$0xff]
        %v5359 = vld [vmem:[%s5328 + $0x2d0] sm:$0xff]
        %v5360 = vld [vmem:[%s5328 + $0x2e8] sm:$0xff]
        %v5361 = vcombine.low %v5329, %v5331
        %v5362 = vcombine.high %v5329, %v5331
        %v5364 = vunpack.c.l.s4 1983009808
        %v5365 = vunpack.c.0.s8 %v5364
        %v5366 = vlaneseq
        %v5367 = vshrl.u32 %v5366, 7
        %v5368 = vsub.s32 %v5365, %v5367
        %v5369 = vrot.slane %v5361, %v5368
        %v5371 = vunpack.c.l.s4 1983009808
        %v5372 = vunpack.c.0.s8 %v5371
        %v5373 = vlaneseq
        %v5374 = vshrl.u32 %v5373, 7
        %v5375 = vsub.s32 %v5372, %v5374
        %v5376 = vrot.slane %v5362, %v5375
        %v5377 = vcombine.low %v5330, %v5332
        %v5378 = vcombine.high %v5330, %v5332
        %v5380 = vunpack.c.l.s4 1983009808
        %v5381 = vunpack.c.0.s8 %v5380
        %v5382 = vlaneseq
        %v5383 = vshrl.u32 %v5382, 7
        %v5384 = vsub.s32 %v5381, %v5383
        %v5385 = vrot.slane %v5377, %v5384
        %v5387 = vunpack.c.l.s4 1983009808
        %v5388 = vunpack.c.0.s8 %v5387
        %v5389 = vlaneseq
        %v5390 = vshrl.u32 %v5389, 7
        %v5391 = vsub.s32 %v5388, %v5390
        %v5392 = vrot.slane %v5378, %v5391
        %v5393 = vcombine.low %v5333, %v5335
        %v5394 = vcombine.high %v5333, %v5335
        %v5396 = vunpack.c.l.s4 1983009808
        %v5397 = vunpack.c.0.s8 %v5396
        %v5398 = vlaneseq
        %v5399 = vshrl.u32 %v5398, 7
        %v5400 = vsub.s32 %v5397, %v5399
        %v5401 = vrot.slane %v5393, %v5400
        %v5403 = vunpack.c.l.s4 1983009808
        %v5404 = vunpack.c.0.s8 %v5403
        %v5405 = vlaneseq
        %v5406 = vshrl.u32 %v5405, 7
        %v5407 = vsub.s32 %v5404, %v5406
        %v5408 = vrot.slane %v5394, %v5407
        %v5409 = vcombine.low %v5334, %v5336
        %v5410 = vcombine.high %v5334, %v5336
        %v5412 = vunpack.c.l.s4 1983009808
        %v5413 = vunpack.c.0.s8 %v5412
        %v5414 = vlaneseq
        %v5415 = vshrl.u32 %v5414, 7
        %v5416 = vsub.s32 %v5413, %v5415
        %v5417 = vrot.slane %v5409, %v5416
        %v5419 = vunpack.c.l.s4 1983009808
        %v5420 = vunpack.c.0.s8 %v5419
        %v5421 = vlaneseq
        %v5422 = vshrl.u32 %v5421, 7
        %v5423 = vsub.s32 %v5420, %v5422
        %v5424 = vrot.slane %v5410, %v5423
        %v5425 = vcombine.low %v5369, %v5385
        %v5426 = vcombine.high %v5369, %v5385
        %v5428 = vunpack.c.l.s4 1934713408
        %v5429 = vunpack.c.0.s8 %v5428
        %v5430 = vlaneseq
        %v5431 = vshrl.u32 %v5430, 7
        %v5432 = vsub.s32 %v5429, %v5431
        %v5433 = vrot.slane %v5425, %v5432
        %v5435 = vunpack.c.l.s4 1934713408
        %v5436 = vunpack.c.0.s8 %v5435
        %v5437 = vlaneseq
        %v5438 = vshrl.u32 %v5437, 7
        %v5439 = vsub.s32 %v5436, %v5438
        %v5440 = vrot.slane %v5426, %v5439
        %v5441 = vcombine.low %v5376, %v5392
        %v5442 = vcombine.high %v5376, %v5392
        %v5444 = vunpack.c.l.s4 1934713408
        %v5445 = vunpack.c.0.s8 %v5444
        %v5446 = vlaneseq
        %v5447 = vshrl.u32 %v5446, 7
        %v5448 = vsub.s32 %v5445, %v5447
        %v5449 = vrot.slane %v5441, %v5448
        %v5451 = vunpack.c.l.s4 1934713408
        %v5452 = vunpack.c.0.s8 %v5451
        %v5453 = vlaneseq
        %v5454 = vshrl.u32 %v5453, 7
        %v5455 = vsub.s32 %v5452, %v5454
        %v5456 = vrot.slane %v5442, %v5455
        %v5457 = vcombine.low %v5401, %v5417
        %v5458 = vcombine.high %v5401, %v5417
        %v5460 = vunpack.c.l.s4 1934713408
        %v5461 = vunpack.c.0.s8 %v5460
        %v5462 = vlaneseq
        %v5463 = vshrl.u32 %v5462, 7
        %v5464 = vsub.s32 %v5461, %v5463
        %v5465 = vrot.slane %v5457, %v5464
        %v5467 = vunpack.c.l.s4 1934713408
        %v5468 = vunpack.c.0.s8 %v5467
        %v5469 = vlaneseq
        %v5470 = vshrl.u32 %v5469, 7
        %v5471 = vsub.s32 %v5468, %v5470
        %v5472 = vrot.slane %v5458, %v5471
        %v5473 = vcombine.low %v5408, %v5424
        %v5474 = vcombine.high %v5408, %v5424
        %v5476 = vunpack.c.l.s4 1934713408
        %v5477 = vunpack.c.0.s8 %v5476
        %v5478 = vlaneseq
        %v5479 = vshrl.u32 %v5478, 7
        %v5480 = vsub.s32 %v5477, %v5479
        %v5481 = vrot.slane %v5473, %v5480
        %v5483 = vunpack.c.l.s4 1934713408
        %v5484 = vunpack.c.0.s8 %v5483
        %v5485 = vlaneseq
        %v5486 = vshrl.u32 %v5485, 7
        %v5487 = vsub.s32 %v5484, %v5486
        %v5488 = vrot.slane %v5474, %v5487
        %v5489 = vcombine.low %v5433, %v5465
        %v5490 = vcombine.high %v5433, %v5465
        %v5491 = vcombine.low %v5440, %v5472
        %v5492 = vcombine.high %v5440, %v5472
        %v5493 = vcombine.low %v5449, %v5481
        %v5494 = vcombine.high %v5449, %v5481
        %v5495 = vcombine.low %v5456, %v5488
        %v5496 = vcombine.high %v5456, %v5488
        %v5497 = vcombine.low %v5337, %v5339
        %v5498 = vcombine.high %v5337, %v5339
        %v5500 = vunpack.c.l.s4 1983009808
        %v5501 = vunpack.c.0.s8 %v5500
        %v5502 = vlaneseq
        %v5503 = vshrl.u32 %v5502, 7
        %v5504 = vsub.s32 %v5501, %v5503
        %v5505 = vrot.slane %v5497, %v5504
        %v5507 = vunpack.c.l.s4 1983009808
        %v5508 = vunpack.c.0.s8 %v5507
        %v5509 = vlaneseq
        %v5510 = vshrl.u32 %v5509, 7
        %v5511 = vsub.s32 %v5508, %v5510
        %v5512 = vrot.slane %v5498, %v5511
        %v5513 = vcombine.low %v5338, %v5340
        %v5514 = vcombine.high %v5338, %v5340
        %v5516 = vunpack.c.l.s4 1983009808
        %v5517 = vunpack.c.0.s8 %v5516
        %v5518 = vlaneseq
        %v5519 = vshrl.u32 %v5518, 7
        %v5520 = vsub.s32 %v5517, %v5519
        %v5521 = vrot.slane %v5513, %v5520
        %v5523 = vunpack.c.l.s4 1983009808
        %v5524 = vunpack.c.0.s8 %v5523
        %v5525 = vlaneseq
        %v5526 = vshrl.u32 %v5525, 7
        %v5527 = vsub.s32 %v5524, %v5526
        %v5528 = vrot.slane %v5514, %v5527
        %v5529 = vcombine.low %v5341, %v5343
        %v5530 = vcombine.high %v5341, %v5343
        %v5532 = vunpack.c.l.s4 1983009808
        %v5533 = vunpack.c.0.s8 %v5532
        %v5534 = vlaneseq
        %v5535 = vshrl.u32 %v5534, 7
        %v5536 = vsub.s32 %v5533, %v5535
        %v5537 = vrot.slane %v5529, %v5536
        %v5539 = vunpack.c.l.s4 1983009808
        %v5540 = vunpack.c.0.s8 %v5539
        %v5541 = vlaneseq
        %v5542 = vshrl.u32 %v5541, 7
        %v5543 = vsub.s32 %v5540, %v5542
        %v5544 = vrot.slane %v5530, %v5543
        %v5545 = vcombine.low %v5342, %v5344
        %v5546 = vcombine.high %v5342, %v5344
        %v5548 = vunpack.c.l.s4 1983009808
        %v5549 = vunpack.c.0.s8 %v5548
        %v5550 = vlaneseq
        %v5551 = vshrl.u32 %v5550, 7
        %v5552 = vsub.s32 %v5549, %v5551
        %v5553 = vrot.slane %v5545, %v5552
        %v5555 = vunpack.c.l.s4 1983009808
        %v5556 = vunpack.c.0.s8 %v5555
        %v5557 = vlaneseq
        %v5558 = vshrl.u32 %v5557, 7
        %v5559 = vsub.s32 %v5556, %v5558
        %v5560 = vrot.slane %v5546, %v5559
        %v5561 = vcombine.low %v5505, %v5521
        %v5562 = vcombine.high %v5505, %v5521
        %v5564 = vunpack.c.l.s4 1934713408
        %v5565 = vunpack.c.0.s8 %v5564
        %v5566 = vlaneseq
        %v5567 = vshrl.u32 %v5566, 7
        %v5568 = vsub.s32 %v5565, %v5567
        %v5569 = vrot.slane %v5561, %v5568
        %v5571 = vunpack.c.l.s4 1934713408
        %v5572 = vunpack.c.0.s8 %v5571
        %v5573 = vlaneseq
        %v5574 = vshrl.u32 %v5573, 7
        %v5575 = vsub.s32 %v5572, %v5574
        %v5576 = vrot.slane %v5562, %v5575
        %v5577 = vcombine.low %v5512, %v5528
        %v5578 = vcombine.high %v5512, %v5528
        %v5580 = vunpack.c.l.s4 1934713408
        %v5581 = vunpack.c.0.s8 %v5580
        %v5582 = vlaneseq
        %v5583 = vshrl.u32 %v5582, 7
        %v5584 = vsub.s32 %v5581, %v5583
        %v5585 = vrot.slane %v5577, %v5584
        %v5587 = vunpack.c.l.s4 1934713408
        %v5588 = vunpack.c.0.s8 %v5587
        %v5589 = vlaneseq
        %v5590 = vshrl.u32 %v5589, 7
        %v5591 = vsub.s32 %v5588, %v5590
        %v5592 = vrot.slane %v5578, %v5591
        %v5593 = vcombine.low %v5537, %v5553
        %v5594 = vcombine.high %v5537, %v5553
        %v5596 = vunpack.c.l.s4 1934713408
        %v5597 = vunpack.c.0.s8 %v5596
        %v5598 = vlaneseq
        %v5599 = vshrl.u32 %v5598, 7
        %v5600 = vsub.s32 %v5597, %v5599
        %v5601 = vrot.slane %v5593, %v5600
        %v5603 = vunpack.c.l.s4 1934713408
        %v5604 = vunpack.c.0.s8 %v5603
        %v5605 = vlaneseq
        %v5606 = vshrl.u32 %v5605, 7
        %v5607 = vsub.s32 %v5604, %v5606
        %v5608 = vrot.slane %v5594, %v5607
        %v5609 = vcombine.low %v5544, %v5560
        %v5610 = vcombine.high %v5544, %v5560
        %v5612 = vunpack.c.l.s4 1934713408
        %v5613 = vunpack.c.0.s8 %v5612
        %v5614 = vlaneseq
        %v5615 = vshrl.u32 %v5614, 7
        %v5616 = vsub.s32 %v5613, %v5615
        %v5617 = vrot.slane %v5609, %v5616
        %v5619 = vunpack.c.l.s4 1934713408
        %v5620 = vunpack.c.0.s8 %v5619
        %v5621 = vlaneseq
        %v5622 = vshrl.u32 %v5621, 7
        %v5623 = vsub.s32 %v5620, %v5622
        %v5624 = vrot.slane %v5610, %v5623
        %v5625 = vcombine.low %v5569, %v5601
        %v5626 = vcombine.high %v5569, %v5601
        %v5627 = vcombine.low %v5576, %v5608
        %v5628 = vcombine.high %v5576, %v5608
        %v5629 = vcombine.low %v5585, %v5617
        %v5630 = vcombine.high %v5585, %v5617
        %v5631 = vcombine.low %v5592, %v5624
        %v5632 = vcombine.high %v5592, %v5624
        %v5633 = vcombine.low %v5345, %v5347
        %v5634 = vcombine.high %v5345, %v5347
        %v5636 = vunpack.c.l.s4 1983009808
        %v5637 = vunpack.c.0.s8 %v5636
        %v5638 = vlaneseq
        %v5639 = vshrl.u32 %v5638, 7
        %v5640 = vsub.s32 %v5637, %v5639
        %v5641 = vrot.slane %v5633, %v5640
        %v5643 = vunpack.c.l.s4 1983009808
        %v5644 = vunpack.c.0.s8 %v5643
        %v5645 = vlaneseq
        %v5646 = vshrl.u32 %v5645, 7
        %v5647 = vsub.s32 %v5644, %v5646
        %v5648 = vrot.slane %v5634, %v5647
        %v5649 = vcombine.low %v5346, %v5348
        %v5650 = vcombine.high %v5346, %v5348
        %v5652 = vunpack.c.l.s4 1983009808
        %v5653 = vunpack.c.0.s8 %v5652
        %v5654 = vlaneseq
        %v5655 = vshrl.u32 %v5654, 7
        %v5656 = vsub.s32 %v5653, %v5655
        %v5657 = vrot.slane %v5649, %v5656
        %v5659 = vunpack.c.l.s4 1983009808
        %v5660 = vunpack.c.0.s8 %v5659
        %v5661 = vlaneseq
        %v5662 = vshrl.u32 %v5661, 7
        %v5663 = vsub.s32 %v5660, %v5662
        %v5664 = vrot.slane %v5650, %v5663
        %v5665 = vcombine.low %v5349, %v5351
        %v5666 = vcombine.high %v5349, %v5351
        %v5668 = vunpack.c.l.s4 1983009808
        %v5669 = vunpack.c.0.s8 %v5668
        %v5670 = vlaneseq
        %v5671 = vshrl.u32 %v5670, 7
        %v5672 = vsub.s32 %v5669, %v5671
        %v5673 = vrot.slane %v5665, %v5672
        %v5675 = vunpack.c.l.s4 1983009808
        %v5676 = vunpack.c.0.s8 %v5675
        %v5677 = vlaneseq
        %v5678 = vshrl.u32 %v5677, 7
        %v5679 = vsub.s32 %v5676, %v5678
        %v5680 = vrot.slane %v5666, %v5679
        %v5681 = vcombine.low %v5350, %v5352
        %v5682 = vcombine.high %v5350, %v5352
        %v5684 = vunpack.c.l.s4 1983009808
        %v5685 = vunpack.c.0.s8 %v5684
        %v5686 = vlaneseq
        %v5687 = vshrl.u32 %v5686, 7
        %v5688 = vsub.s32 %v5685, %v5687
        %v5689 = vrot.slane %v5681, %v5688
        %v5691 = vunpack.c.l.s4 1983009808
        %v5692 = vunpack.c.0.s8 %v5691
        %v5693 = vlaneseq
        %v5694 = vshrl.u32 %v5693, 7
        %v5695 = vsub.s32 %v5692, %v5694
        %v5696 = vrot.slane %v5682, %v5695
        %v5697 = vcombine.low %v5641, %v5657
        %v5698 = vcombine.high %v5641, %v5657
        %v5700 = vunpack.c.l.s4 1934713408
        %v5701 = vunpack.c.0.s8 %v5700
        %v5702 = vlaneseq
        %v5703 = vshrl.u32 %v5702, 7
        %v5704 = vsub.s32 %v5701, %v5703
        %v5705 = vrot.slane %v5697, %v5704
        %v5707 = vunpack.c.l.s4 1934713408
        %v5708 = vunpack.c.0.s8 %v5707
        %v5709 = vlaneseq
        %v5710 = vshrl.u32 %v5709, 7
        %v5711 = vsub.s32 %v5708, %v5710
        %v5712 = vrot.slane %v5698, %v5711
        %v5713 = vcombine.low %v5648, %v5664
        %v5714 = vcombine.high %v5648, %v5664
        %v5716 = vunpack.c.l.s4 1934713408
        %v5717 = vunpack.c.0.s8 %v5716
        %v5718 = vlaneseq
        %v5719 = vshrl.u32 %v5718, 7
        %v5720 = vsub.s32 %v5717, %v5719
        %v5721 = vrot.slane %v5713, %v5720
        %v5723 = vunpack.c.l.s4 1934713408
        %v5724 = vunpack.c.0.s8 %v5723
        %v5725 = vlaneseq
        %v5726 = vshrl.u32 %v5725, 7
        %v5727 = vsub.s32 %v5724, %v5726
        %v5728 = vrot.slane %v5714, %v5727
        %v5729 = vcombine.low %v5673, %v5689
        %v5730 = vcombine.high %v5673, %v5689
        %v5732 = vunpack.c.l.s4 1934713408
        %v5733 = vunpack.c.0.s8 %v5732
        %v5734 = vlaneseq
        %v5735 = vshrl.u32 %v5734, 7
        %v5736 = vsub.s32 %v5733, %v5735
        %v5737 = vrot.slane %v5729, %v5736
        %v5739 = vunpack.c.l.s4 1934713408
        %v5740 = vunpack.c.0.s8 %v5739
        %v5741 = vlaneseq
        %v5742 = vshrl.u32 %v5741, 7
        %v5743 = vsub.s32 %v5740, %v5742
        %v5744 = vrot.slane %v5730, %v5743
        %v5745 = vcombine.low %v5680, %v5696
        %v5746 = vcombine.high %v5680, %v5696
        %v5748 = vunpack.c.l.s4 1934713408
        %v5749 = vunpack.c.0.s8 %v5748
        %v5750 = vlaneseq
        %v5751 = vshrl.u32 %v5750, 7
        %v5752 = vsub.s32 %v5749, %v5751
        %v5753 = vrot.slane %v5745, %v5752
        %v5755 = vunpack.c.l.s4 1934713408
        %v5756 = vunpack.c.0.s8 %v5755
        %v5757 = vlaneseq
        %v5758 = vshrl.u32 %v5757, 7
        %v5759 = vsub.s32 %v5756, %v5758
        %v5760 = vrot.slane %v5746, %v5759
        %v5761 = vcombine.low %v5705, %v5737
        %v5762 = vcombine.high %v5705, %v5737
        %v5763 = vcombine.low %v5712, %v5744
        %v5764 = vcombine.high %v5712, %v5744
        %v5765 = vcombine.low %v5721, %v5753
        %v5766 = vcombine.high %v5721, %v5753
        %v5767 = vcombine.low %v5728, %v5760
        %v5768 = vcombine.high %v5728, %v5760
        %v5769 = vcombine.low %v5353, %v5355
        %v5770 = vcombine.high %v5353, %v5355
        %v5772 = vunpack.c.l.s4 1983009808
        %v5773 = vunpack.c.0.s8 %v5772
        %v5774 = vlaneseq
        %v5775 = vshrl.u32 %v5774, 7
        %v5776 = vsub.s32 %v5773, %v5775
        %v5777 = vrot.slane %v5769, %v5776
        %v5779 = vunpack.c.l.s4 1983009808
        %v5780 = vunpack.c.0.s8 %v5779
        %v5781 = vlaneseq
        %v5782 = vshrl.u32 %v5781, 7
        %v5783 = vsub.s32 %v5780, %v5782
        %v5784 = vrot.slane %v5770, %v5783
        %v5785 = vcombine.low %v5354, %v5356
        %v5786 = vcombine.high %v5354, %v5356
        %v5788 = vunpack.c.l.s4 1983009808
        %v5789 = vunpack.c.0.s8 %v5788
        %v5790 = vlaneseq
        %v5791 = vshrl.u32 %v5790, 7
        %v5792 = vsub.s32 %v5789, %v5791
        %v5793 = vrot.slane %v5785, %v5792
        %v5795 = vunpack.c.l.s4 1983009808
        %v5796 = vunpack.c.0.s8 %v5795
        %v5797 = vlaneseq
        %v5798 = vshrl.u32 %v5797, 7
        %v5799 = vsub.s32 %v5796, %v5798
        %v5800 = vrot.slane %v5786, %v5799
        %v5801 = vcombine.low %v5357, %v5359
        %v5802 = vcombine.high %v5357, %v5359
        %v5804 = vunpack.c.l.s4 1983009808
        %v5805 = vunpack.c.0.s8 %v5804
        %v5806 = vlaneseq
        %v5807 = vshrl.u32 %v5806, 7
        %v5808 = vsub.s32 %v5805, %v5807
        %v5809 = vrot.slane %v5801, %v5808
        %v5811 = vunpack.c.l.s4 1983009808
        %v5812 = vunpack.c.0.s8 %v5811
        %v5813 = vlaneseq
        %v5814 = vshrl.u32 %v5813, 7
        %v5815 = vsub.s32 %v5812, %v5814
        %v5816 = vrot.slane %v5802, %v5815
        %v5817 = vcombine.low %v5358, %v5360
        %v5818 = vcombine.high %v5358, %v5360
        %v5820 = vunpack.c.l.s4 1983009808
        %v5821 = vunpack.c.0.s8 %v5820
        %v5822 = vlaneseq
        %v5823 = vshrl.u32 %v5822, 7
        %v5824 = vsub.s32 %v5821, %v5823
        %v5825 = vrot.slane %v5817, %v5824
        %v5827 = vunpack.c.l.s4 1983009808
        %v5828 = vunpack.c.0.s8 %v5827
        %v5829 = vlaneseq
        %v5830 = vshrl.u32 %v5829, 7
        %v5831 = vsub.s32 %v5828, %v5830
        %v5832 = vrot.slane %v5818, %v5831
        %v5833 = vcombine.low %v5777, %v5793
        %v5834 = vcombine.high %v5777, %v5793
        %v5836 = vunpack.c.l.s4 1934713408
        %v5837 = vunpack.c.0.s8 %v5836
        %v5838 = vlaneseq
        %v5839 = vshrl.u32 %v5838, 7
        %v5840 = vsub.s32 %v5837, %v5839
        %v5841 = vrot.slane %v5833, %v5840
        %v5843 = vunpack.c.l.s4 1934713408
        %v5844 = vunpack.c.0.s8 %v5843
        %v5845 = vlaneseq
        %v5846 = vshrl.u32 %v5845, 7
        %v5847 = vsub.s32 %v5844, %v5846
        %v5848 = vrot.slane %v5834, %v5847
        %v5849 = vcombine.low %v5784, %v5800
        %v5850 = vcombine.high %v5784, %v5800
        %v5852 = vunpack.c.l.s4 1934713408
        %v5853 = vunpack.c.0.s8 %v5852
        %v5854 = vlaneseq
        %v5855 = vshrl.u32 %v5854, 7
        %v5856 = vsub.s32 %v5853, %v5855
        %v5857 = vrot.slane %v5849, %v5856
        %v5859 = vunpack.c.l.s4 1934713408
        %v5860 = vunpack.c.0.s8 %v5859
        %v5861 = vlaneseq
        %v5862 = vshrl.u32 %v5861, 7
        %v5863 = vsub.s32 %v5860, %v5862
        %v5864 = vrot.slane %v5850, %v5863
        %v5865 = vcombine.low %v5809, %v5825
        %v5866 = vcombine.high %v5809, %v5825
        %v5868 = vunpack.c.l.s4 1934713408
        %v5869 = vunpack.c.0.s8 %v5868
        %v5870 = vlaneseq
        %v5871 = vshrl.u32 %v5870, 7
        %v5872 = vsub.s32 %v5869, %v5871
        %v5873 = vrot.slane %v5865, %v5872
        %v5875 = vunpack.c.l.s4 1934713408
        %v5876 = vunpack.c.0.s8 %v5875
        %v5877 = vlaneseq
        %v5878 = vshrl.u32 %v5877, 7
        %v5879 = vsub.s32 %v5876, %v5878
        %v5880 = vrot.slane %v5866, %v5879
        %v5881 = vcombine.low %v5816, %v5832
        %v5882 = vcombine.high %v5816, %v5832
        %v5884 = vunpack.c.l.s4 1934713408
        %v5885 = vunpack.c.0.s8 %v5884
        %v5886 = vlaneseq
        %v5887 = vshrl.u32 %v5886, 7
        %v5888 = vsub.s32 %v5885, %v5887
        %v5889 = vrot.slane %v5881, %v5888
        %v5891 = vunpack.c.l.s4 1934713408
        %v5892 = vunpack.c.0.s8 %v5891
        %v5893 = vlaneseq
        %v5894 = vshrl.u32 %v5893, 7
        %v5895 = vsub.s32 %v5892, %v5894
        %v5896 = vrot.slane %v5882, %v5895
        %v5897 = vcombine.low %v5841, %v5873
        %v5898 = vcombine.high %v5841, %v5873
        %v5899 = vcombine.low %v5848, %v5880
        %v5900 = vcombine.high %v5848, %v5880
        %v5901 = vcombine.low %v5857, %v5889
        %v5902 = vcombine.high %v5857, %v5889
        %v5903 = vcombine.low %v5864, %v5896
        %v5904 = vcombine.high %v5864, %v5896
        %5909 = vrot.lane.b32.xlu0 %v5490, 16
        %v5910 = vpop.permute.xlu0 %5909
        %5911 = vrot.lane.b32.xlu0 %v5626, 16
        %v5912 = vpop.permute.xlu0 %5911
        %5913 = vrot.lane.b32.xlu0 %v5762, 16
        %v5914 = vpop.permute.xlu0 %5913
        %5915 = vrot.lane.b32.xlu0 %v5898, 16
        %v5916 = vpop.permute.xlu0 %5915
        %5925 = vrot.lane.b32.xlu0 %v5491, 32
        %v5926 = vpop.permute.xlu0 %5925
        %5927 = vrot.lane.b32.xlu0 %v5627, 32
        %v5928 = vpop.permute.xlu0 %5927
        %5929 = vrot.lane.b32.xlu0 %v5763, 32
        %v5930 = vpop.permute.xlu0 %5929
        %5931 = vrot.lane.b32.xlu0 %v5899, 32
        %v5932 = vpop.permute.xlu0 %5931
        %5941 = vrot.lane.b32.xlu0 %v5492, 48
        %v5942 = vpop.permute.xlu0 %5941
        %5943 = vrot.lane.b32.xlu0 %v5628, 48
        %v5944 = vpop.permute.xlu0 %5943
        %5945 = vrot.lane.b32.xlu0 %v5764, 48
        %v5946 = vpop.permute.xlu0 %5945
        %5947 = vrot.lane.b32.xlu0 %v5900, 48
        %v5948 = vpop.permute.xlu0 %5947
        %5957 = vrot.lane.b32.xlu0 %v5493, 64
        %v5958 = vpop.permute.xlu0 %5957
        %5959 = vrot.lane.b32.xlu0 %v5629, 64
        %v5960 = vpop.permute.xlu0 %5959
        %5961 = vrot.lane.b32.xlu0 %v5765, 64
        %v5962 = vpop.permute.xlu0 %5961
        %5963 = vrot.lane.b32.xlu0 %v5901, 64
        %v5964 = vpop.permute.xlu0 %5963
        %5973 = vrot.lane.b32.xlu0 %v5494, 80
        %v5974 = vpop.permute.xlu0 %5973
        %5975 = vrot.lane.b32.xlu0 %v5630, 80
        %v5976 = vpop.permute.xlu0 %5975
        %5977 = vrot.lane.b32.xlu0 %v5766, 80
        %v5978 = vpop.permute.xlu0 %5977
        %5979 = vrot.lane.b32.xlu0 %v5902, 80
        %v5980 = vpop.permute.xlu0 %5979
        %5989 = vrot.lane.b32.xlu0 %v5495, 96
        %v5990 = vpop.permute.xlu0 %5989
        %5991 = vrot.lane.b32.xlu0 %v5631, 96
        %v5992 = vpop.permute.xlu0 %5991
        %5993 = vrot.lane.b32.xlu0 %v5767, 96
        %v5994 = vpop.permute.xlu0 %5993
        %5995 = vrot.lane.b32.xlu0 %v5903, 96
        %v5996 = vpop.permute.xlu0 %5995
        %6005 = vrot.lane.b32.xlu0 %v5496, 112
        %v6006 = vpop.permute.xlu0 %6005
        %6007 = vrot.lane.b32.xlu0 %v5632, 112
        %v6008 = vpop.permute.xlu0 %6007
        %6009 = vrot.lane.b32.xlu0 %v5768, 112
        %v6010 = vpop.permute.xlu0 %6009
        %6011 = vrot.lane.b32.xlu0 %v5904, 112
        %v6012 = vpop.permute.xlu0 %6011
        %v6017 = vsel %vm1390, %v5489, %v5910
        %v6018 = vsel %vm1390, %v5625, %v5912
        %v6019 = vsel %vm1390, %v5761, %v5914
        %v6020 = vsel %vm1390, %v5897, %v5916
        %v6021 = vsel %vm1395, %v6017, %v5926
        %v6022 = vsel %vm1395, %v6018, %v5928
        %v6023 = vsel %vm1395, %v6019, %v5930
        %v6024 = vsel %vm1395, %v6020, %v5932
        %v6025 = vsel %vm1400, %v6021, %v5942
        %v6026 = vsel %vm1400, %v6022, %v5944
        %v6027 = vsel %vm1400, %v6023, %v5946
        %v6028 = vsel %vm1400, %v6024, %v5948
        %v6029 = vsel %vm1405, %v6025, %v5958
        %v6030 = vsel %vm1405, %v6026, %v5960
        %v6031 = vsel %vm1405, %v6027, %v5962
        %v6032 = vsel %vm1405, %v6028, %v5964
        %v6033 = vsel %vm1410, %v6029, %v5974
        %v6034 = vsel %vm1410, %v6030, %v5976
        %v6035 = vsel %vm1410, %v6031, %v5978
        %v6036 = vsel %vm1410, %v6032, %v5980
        %v6037 = vsel %vm1415, %v6033, %v5990
        %v6038 = vsel %vm1415, %v6034, %v5992
        %v6039 = vsel %vm1415, %v6035, %v5994
        %v6040 = vsel %vm1415, %v6036, %v5996
        %v6041 = vsel %vm1420, %v6037, %v6006
        %v6042 = vsel %vm1420, %v6038, %v6008
        %v6043 = vsel %vm1420, %v6039, %v6010
        %v6044 = vsel %vm1420, %v6040, %v6012
        %6077 = vrot.lane.b32.xlu0 %v5329, 127
        %v6078 = vpop.permute.xlu0 %6077
        %6079 = vrot.lane.b32.xlu0 %v5330, 127
        %v6080 = vpop.permute.xlu0 %6079
        %6081 = vrot.lane.b32.xlu0 %v5331, 127
        %v6082 = vpop.permute.xlu0 %6081
        %6083 = vrot.lane.b32.xlu0 %v5332, 127
        %v6084 = vpop.permute.xlu0 %6083
        %6085 = vrot.lane.b32.xlu0 %v5333, 127
        %v6086 = vpop.permute.xlu0 %6085
        %6087 = vrot.lane.b32.xlu0 %v5334, 127
        %v6088 = vpop.permute.xlu0 %6087
        %6089 = vrot.lane.b32.xlu0 %v5335, 127
        %v6090 = vpop.permute.xlu0 %6089
        %6091 = vrot.lane.b32.xlu0 %v5336, 127
        %v6092 = vpop.permute.xlu0 %6091
        %6093 = vrot.lane.b32.xlu0 %v5337, 127
        %v6094 = vpop.permute.xlu0 %6093
        %6095 = vrot.lane.b32.xlu0 %v5338, 127
        %v6096 = vpop.permute.xlu0 %6095
        %6097 = vrot.lane.b32.xlu0 %v5339, 127
        %v6098 = vpop.permute.xlu0 %6097
        %6099 = vrot.lane.b32.xlu0 %v5340, 127
        %v6100 = vpop.permute.xlu0 %6099
        %6101 = vrot.lane.b32.xlu0 %v5341, 127
        %v6102 = vpop.permute.xlu0 %6101
        %6103 = vrot.lane.b32.xlu0 %v5342, 127
        %v6104 = vpop.permute.xlu0 %6103
        %6105 = vrot.lane.b32.xlu0 %v5343, 127
        %v6106 = vpop.permute.xlu0 %6105
        %6107 = vrot.lane.b32.xlu0 %v5344, 127
        %v6108 = vpop.permute.xlu0 %6107
        %6109 = vrot.lane.b32.xlu0 %v5345, 127
        %v6110 = vpop.permute.xlu0 %6109
        %6111 = vrot.lane.b32.xlu0 %v5346, 127
        %v6112 = vpop.permute.xlu0 %6111
        %6113 = vrot.lane.b32.xlu0 %v5347, 127
        %v6114 = vpop.permute.xlu0 %6113
        %6115 = vrot.lane.b32.xlu0 %v5348, 127
        %v6116 = vpop.permute.xlu0 %6115
        %6117 = vrot.lane.b32.xlu0 %v5349, 127
        %v6118 = vpop.permute.xlu0 %6117
        %6119 = vrot.lane.b32.xlu0 %v5350, 127
        %v6120 = vpop.permute.xlu0 %6119
        %6121 = vrot.lane.b32.xlu0 %v5351, 127
        %v6122 = vpop.permute.xlu0 %6121
        %6123 = vrot.lane.b32.xlu0 %v5352, 127
        %v6124 = vpop.permute.xlu0 %6123
        %6125 = vrot.lane.b32.xlu0 %v5353, 127
        %v6126 = vpop.permute.xlu0 %6125
        %6127 = vrot.lane.b32.xlu0 %v5354, 127
        %v6128 = vpop.permute.xlu0 %6127
        %6129 = vrot.lane.b32.xlu0 %v5355, 127
        %v6130 = vpop.permute.xlu0 %6129
        %6131 = vrot.lane.b32.xlu0 %v5356, 127
        %v6132 = vpop.permute.xlu0 %6131
        %6133 = vrot.lane.b32.xlu0 %v5357, 127
        %v6134 = vpop.permute.xlu0 %6133
        %6135 = vrot.lane.b32.xlu0 %v5358, 127
        %v6136 = vpop.permute.xlu0 %6135
        %6137 = vrot.lane.b32.xlu0 %v5359, 127
        %v6138 = vpop.permute.xlu0 %6137
        %6139 = vrot.lane.b32.xlu0 %v5360, 127
        %v6140 = vpop.permute.xlu0 %6139
        %v6173 = vcombine.low %v6078, %v6082
        %v6174 = vcombine.high %v6078, %v6082
        %v6176 = vunpack.c.l.s4 1983009808
        %v6177 = vunpack.c.0.s8 %v6176
        %v6178 = vlaneseq
        %v6179 = vshrl.u32 %v6178, 7
        %v6180 = vsub.s32 %v6177, %v6179
        %v6181 = vrot.slane %v6173, %v6180
        %v6183 = vunpack.c.l.s4 1983009808
        %v6184 = vunpack.c.0.s8 %v6183
        %v6185 = vlaneseq
        %v6186 = vshrl.u32 %v6185, 7
        %v6187 = vsub.s32 %v6184, %v6186
        %v6188 = vrot.slane %v6174, %v6187
        %v6189 = vcombine.low %v6080, %v6084
        %v6190 = vcombine.high %v6080, %v6084
        %v6192 = vunpack.c.l.s4 1983009808
        %v6193 = vunpack.c.0.s8 %v6192
        %v6194 = vlaneseq
        %v6195 = vshrl.u32 %v6194, 7
        %v6196 = vsub.s32 %v6193, %v6195
        %v6197 = vrot.slane %v6189, %v6196
        %v6199 = vunpack.c.l.s4 1983009808
        %v6200 = vunpack.c.0.s8 %v6199
        %v6201 = vlaneseq
        %v6202 = vshrl.u32 %v6201, 7
        %v6203 = vsub.s32 %v6200, %v6202
        %v6204 = vrot.slane %v6190, %v6203
        %v6205 = vcombine.low %v6086, %v6090
        %v6206 = vcombine.high %v6086, %v6090
        %v6208 = vunpack.c.l.s4 1983009808
        %v6209 = vunpack.c.0.s8 %v6208
        %v6210 = vlaneseq
        %v6211 = vshrl.u32 %v6210, 7
        %v6212 = vsub.s32 %v6209, %v6211
        %v6213 = vrot.slane %v6205, %v6212
        %v6215 = vunpack.c.l.s4 1983009808
        %v6216 = vunpack.c.0.s8 %v6215
        %v6217 = vlaneseq
        %v6218 = vshrl.u32 %v6217, 7
        %v6219 = vsub.s32 %v6216, %v6218
        %v6220 = vrot.slane %v6206, %v6219
        %v6221 = vcombine.low %v6088, %v6092
        %v6222 = vcombine.high %v6088, %v6092
        %v6224 = vunpack.c.l.s4 1983009808
        %v6225 = vunpack.c.0.s8 %v6224
        %v6226 = vlaneseq
        %v6227 = vshrl.u32 %v6226, 7
        %v6228 = vsub.s32 %v6225, %v6227
        %v6229 = vrot.slane %v6221, %v6228
        %v6231 = vunpack.c.l.s4 1983009808
        %v6232 = vunpack.c.0.s8 %v6231
        %v6233 = vlaneseq
        %v6234 = vshrl.u32 %v6233, 7
        %v6235 = vsub.s32 %v6232, %v6234
        %v6236 = vrot.slane %v6222, %v6235
        %v6237 = vcombine.low %v6181, %v6197
        %v6238 = vcombine.high %v6181, %v6197
        %v6240 = vunpack.c.l.s4 1934713408
        %v6241 = vunpack.c.0.s8 %v6240
        %v6242 = vlaneseq
        %v6243 = vshrl.u32 %v6242, 7
        %v6244 = vsub.s32 %v6241, %v6243
        %v6245 = vrot.slane %v6237, %v6244
        %v6247 = vunpack.c.l.s4 1934713408
        %v6248 = vunpack.c.0.s8 %v6247
        %v6249 = vlaneseq
        %v6250 = vshrl.u32 %v6249, 7
        %v6251 = vsub.s32 %v6248, %v6250
        %v6252 = vrot.slane %v6238, %v6251
        %v6253 = vcombine.low %v6188, %v6204
        %v6254 = vcombine.high %v6188, %v6204
        %v6256 = vunpack.c.l.s4 1934713408
        %v6257 = vunpack.c.0.s8 %v6256
        %v6258 = vlaneseq
        %v6259 = vshrl.u32 %v6258, 7
        %v6260 = vsub.s32 %v6257, %v6259
        %v6261 = vrot.slane %v6253, %v6260
        %v6263 = vunpack.c.l.s4 1934713408
        %v6264 = vunpack.c.0.s8 %v6263
        %v6265 = vlaneseq
        %v6266 = vshrl.u32 %v6265, 7
        %v6267 = vsub.s32 %v6264, %v6266
        %v6268 = vrot.slane %v6254, %v6267
        %v6269 = vcombine.low %v6213, %v6229
        %v6270 = vcombine.high %v6213, %v6229
        %v6272 = vunpack.c.l.s4 1934713408
        %v6273 = vunpack.c.0.s8 %v6272
        %v6274 = vlaneseq
        %v6275 = vshrl.u32 %v6274, 7
        %v6276 = vsub.s32 %v6273, %v6275
        %v6277 = vrot.slane %v6269, %v6276
        %v6279 = vunpack.c.l.s4 1934713408
        %v6280 = vunpack.c.0.s8 %v6279
        %v6281 = vlaneseq
        %v6282 = vshrl.u32 %v6281, 7
        %v6283 = vsub.s32 %v6280, %v6282
        %v6284 = vrot.slane %v6270, %v6283
        %v6285 = vcombine.low %v6220, %v6236
        %v6286 = vcombine.high %v6220, %v6236
        %v6288 = vunpack.c.l.s4 1934713408
        %v6289 = vunpack.c.0.s8 %v6288
        %v6290 = vlaneseq
        %v6291 = vshrl.u32 %v6290, 7
        %v6292 = vsub.s32 %v6289, %v6291
        %v6293 = vrot.slane %v6285, %v6292
        %v6295 = vunpack.c.l.s4 1934713408
        %v6296 = vunpack.c.0.s8 %v6295
        %v6297 = vlaneseq
        %v6298 = vshrl.u32 %v6297, 7
        %v6299 = vsub.s32 %v6296, %v6298
        %v6300 = vrot.slane %v6286, %v6299
        %v6301 = vcombine.low %v6245, %v6277
        %v6302 = vcombine.high %v6245, %v6277
        %v6303 = vcombine.low %v6252, %v6284
        %v6304 = vcombine.high %v6252, %v6284
        %v6305 = vcombine.low %v6261, %v6293
        %v6306 = vcombine.high %v6261, %v6293
        %v6307 = vcombine.low %v6268, %v6300
        %v6308 = vcombine.high %v6268, %v6300
        %v6309 = vcombine.low %v6094, %v6098
        %v6310 = vcombine.high %v6094, %v6098
        %v6312 = vunpack.c.l.s4 1983009808
        %v6313 = vunpack.c.0.s8 %v6312
        %v6314 = vlaneseq
        %v6315 = vshrl.u32 %v6314, 7
        %v6316 = vsub.s32 %v6313, %v6315
        %v6317 = vrot.slane %v6309, %v6316
        %v6319 = vunpack.c.l.s4 1983009808
        %v6320 = vunpack.c.0.s8 %v6319
        %v6321 = vlaneseq
        %v6322 = vshrl.u32 %v6321, 7
        %v6323 = vsub.s32 %v6320, %v6322
        %v6324 = vrot.slane %v6310, %v6323
        %v6325 = vcombine.low %v6096, %v6100
        %v6326 = vcombine.high %v6096, %v6100
        %v6328 = vunpack.c.l.s4 1983009808
        %v6329 = vunpack.c.0.s8 %v6328
        %v6330 = vlaneseq
        %v6331 = vshrl.u32 %v6330, 7
        %v6332 = vsub.s32 %v6329, %v6331
        %v6333 = vrot.slane %v6325, %v6332
        %v6335 = vunpack.c.l.s4 1983009808
        %v6336 = vunpack.c.0.s8 %v6335
        %v6337 = vlaneseq
        %v6338 = vshrl.u32 %v6337, 7
        %v6339 = vsub.s32 %v6336, %v6338
        %v6340 = vrot.slane %v6326, %v6339
        %v6341 = vcombine.low %v6102, %v6106
        %v6342 = vcombine.high %v6102, %v6106
        %v6344 = vunpack.c.l.s4 1983009808
        %v6345 = vunpack.c.0.s8 %v6344
        %v6346 = vlaneseq
        %v6347 = vshrl.u32 %v6346, 7
        %v6348 = vsub.s32 %v6345, %v6347
        %v6349 = vrot.slane %v6341, %v6348
        %v6351 = vunpack.c.l.s4 1983009808
        %v6352 = vunpack.c.0.s8 %v6351
        %v6353 = vlaneseq
        %v6354 = vshrl.u32 %v6353, 7
        %v6355 = vsub.s32 %v6352, %v6354
        %v6356 = vrot.slane %v6342, %v6355
        %v6357 = vcombine.low %v6104, %v6108
        %v6358 = vcombine.high %v6104, %v6108
        %v6360 = vunpack.c.l.s4 1983009808
        %v6361 = vunpack.c.0.s8 %v6360
        %v6362 = vlaneseq
        %v6363 = vshrl.u32 %v6362, 7
        %v6364 = vsub.s32 %v6361, %v6363
        %v6365 = vrot.slane %v6357, %v6364
        %v6367 = vunpack.c.l.s4 1983009808
        %v6368 = vunpack.c.0.s8 %v6367
        %v6369 = vlaneseq
        %v6370 = vshrl.u32 %v6369, 7
        %v6371 = vsub.s32 %v6368, %v6370
        %v6372 = vrot.slane %v6358, %v6371
        %v6373 = vcombine.low %v6317, %v6333
        %v6374 = vcombine.high %v6317, %v6333
        %v6376 = vunpack.c.l.s4 1934713408
        %v6377 = vunpack.c.0.s8 %v6376
        %v6378 = vlaneseq
        %v6379 = vshrl.u32 %v6378, 7
        %v6380 = vsub.s32 %v6377, %v6379
        %v6381 = vrot.slane %v6373, %v6380
        %v6383 = vunpack.c.l.s4 1934713408
        %v6384 = vunpack.c.0.s8 %v6383
        %v6385 = vlaneseq
        %v6386 = vshrl.u32 %v6385, 7
        %v6387 = vsub.s32 %v6384, %v6386
        %v6388 = vrot.slane %v6374, %v6387
        %v6389 = vcombine.low %v6324, %v6340
        %v6390 = vcombine.high %v6324, %v6340
        %v6392 = vunpack.c.l.s4 1934713408
        %v6393 = vunpack.c.0.s8 %v6392
        %v6394 = vlaneseq
        %v6395 = vshrl.u32 %v6394, 7
        %v6396 = vsub.s32 %v6393, %v6395
        %v6397 = vrot.slane %v6389, %v6396
        %v6399 = vunpack.c.l.s4 1934713408
        %v6400 = vunpack.c.0.s8 %v6399
        %v6401 = vlaneseq
        %v6402 = vshrl.u32 %v6401, 7
        %v6403 = vsub.s32 %v6400, %v6402
        %v6404 = vrot.slane %v6390, %v6403
        %v6405 = vcombine.low %v6349, %v6365
        %v6406 = vcombine.high %v6349, %v6365
        %v6408 = vunpack.c.l.s4 1934713408
        %v6409 = vunpack.c.0.s8 %v6408
        %v6410 = vlaneseq
        %v6411 = vshrl.u32 %v6410, 7
        %v6412 = vsub.s32 %v6409, %v6411
        %v6413 = vrot.slane %v6405, %v6412
        %v6415 = vunpack.c.l.s4 1934713408
        %v6416 = vunpack.c.0.s8 %v6415
        %v6417 = vlaneseq
        %v6418 = vshrl.u32 %v6417, 7
        %v6419 = vsub.s32 %v6416, %v6418
        %v6420 = vrot.slane %v6406, %v6419
        %v6421 = vcombine.low %v6356, %v6372
        %v6422 = vcombine.high %v6356, %v6372
        %v6424 = vunpack.c.l.s4 1934713408
        %v6425 = vunpack.c.0.s8 %v6424
        %v6426 = vlaneseq
        %v6427 = vshrl.u32 %v6426, 7
        %v6428 = vsub.s32 %v6425, %v6427
        %v6429 = vrot.slane %v6421, %v6428
        %v6431 = vunpack.c.l.s4 1934713408
        %v6432 = vunpack.c.0.s8 %v6431
        %v6433 = vlaneseq
        %v6434 = vshrl.u32 %v6433, 7
        %v6435 = vsub.s32 %v6432, %v6434
        %v6436 = vrot.slane %v6422, %v6435
        %v6437 = vcombine.low %v6381, %v6413
        %v6438 = vcombine.high %v6381, %v6413
        %v6439 = vcombine.low %v6388, %v6420
        %v6440 = vcombine.high %v6388, %v6420
        %v6441 = vcombine.low %v6397, %v6429
        %v6442 = vcombine.high %v6397, %v6429
        %v6443 = vcombine.low %v6404, %v6436
        %v6444 = vcombine.high %v6404, %v6436
        %v6445 = vcombine.low %v6110, %v6114
        %v6446 = vcombine.high %v6110, %v6114
        %v6448 = vunpack.c.l.s4 1983009808
        %v6449 = vunpack.c.0.s8 %v6448
        %v6450 = vlaneseq
        %v6451 = vshrl.u32 %v6450, 7
        %v6452 = vsub.s32 %v6449, %v6451
        %v6453 = vrot.slane %v6445, %v6452
        %v6455 = vunpack.c.l.s4 1983009808
        %v6456 = vunpack.c.0.s8 %v6455
        %v6457 = vlaneseq
        %v6458 = vshrl.u32 %v6457, 7
        %v6459 = vsub.s32 %v6456, %v6458
        %v6460 = vrot.slane %v6446, %v6459
        %v6461 = vcombine.low %v6112, %v6116
        %v6462 = vcombine.high %v6112, %v6116
        %v6464 = vunpack.c.l.s4 1983009808
        %v6465 = vunpack.c.0.s8 %v6464
        %v6466 = vlaneseq
        %v6467 = vshrl.u32 %v6466, 7
        %v6468 = vsub.s32 %v6465, %v6467
        %v6469 = vrot.slane %v6461, %v6468
        %v6471 = vunpack.c.l.s4 1983009808
        %v6472 = vunpack.c.0.s8 %v6471
        %v6473 = vlaneseq
        %v6474 = vshrl.u32 %v6473, 7
        %v6475 = vsub.s32 %v6472, %v6474
        %v6476 = vrot.slane %v6462, %v6475
        %v6477 = vcombine.low %v6118, %v6122
        %v6478 = vcombine.high %v6118, %v6122
        %v6480 = vunpack.c.l.s4 1983009808
        %v6481 = vunpack.c.0.s8 %v6480
        %v6482 = vlaneseq
        %v6483 = vshrl.u32 %v6482, 7
        %v6484 = vsub.s32 %v6481, %v6483
        %v6485 = vrot.slane %v6477, %v6484
        %v6487 = vunpack.c.l.s4 1983009808
        %v6488 = vunpack.c.0.s8 %v6487
        %v6489 = vlaneseq
        %v6490 = vshrl.u32 %v6489, 7
        %v6491 = vsub.s32 %v6488, %v6490
        %v6492 = vrot.slane %v6478, %v6491
        %v6493 = vcombine.low %v6120, %v6124
        %v6494 = vcombine.high %v6120, %v6124
        %v6496 = vunpack.c.l.s4 1983009808
        %v6497 = vunpack.c.0.s8 %v6496
        %v6498 = vlaneseq
        %v6499 = vshrl.u32 %v6498, 7
        %v6500 = vsub.s32 %v6497, %v6499
        %v6501 = vrot.slane %v6493, %v6500
        %v6503 = vunpack.c.l.s4 1983009808
        %v6504 = vunpack.c.0.s8 %v6503
        %v6505 = vlaneseq
        %v6506 = vshrl.u32 %v6505, 7
        %v6507 = vsub.s32 %v6504, %v6506
        %v6508 = vrot.slane %v6494, %v6507
        %v6509 = vcombine.low %v6453, %v6469
        %v6510 = vcombine.high %v6453, %v6469
        %v6512 = vunpack.c.l.s4 1934713408
        %v6513 = vunpack.c.0.s8 %v6512
        %v6514 = vlaneseq
        %v6515 = vshrl.u32 %v6514, 7
        %v6516 = vsub.s32 %v6513, %v6515
        %v6517 = vrot.slane %v6509, %v6516
        %v6519 = vunpack.c.l.s4 1934713408
        %v6520 = vunpack.c.0.s8 %v6519
        %v6521 = vlaneseq
        %v6522 = vshrl.u32 %v6521, 7
        %v6523 = vsub.s32 %v6520, %v6522
        %v6524 = vrot.slane %v6510, %v6523
        %v6525 = vcombine.low %v6460, %v6476
        %v6526 = vcombine.high %v6460, %v6476
        %v6528 = vunpack.c.l.s4 1934713408
        %v6529 = vunpack.c.0.s8 %v6528
        %v6530 = vlaneseq
        %v6531 = vshrl.u32 %v6530, 7
        %v6532 = vsub.s32 %v6529, %v6531
        %v6533 = vrot.slane %v6525, %v6532
        %v6535 = vunpack.c.l.s4 1934713408
        %v6536 = vunpack.c.0.s8 %v6535
        %v6537 = vlaneseq
        %v6538 = vshrl.u32 %v6537, 7
        %v6539 = vsub.s32 %v6536, %v6538
        %v6540 = vrot.slane %v6526, %v6539
        %v6541 = vcombine.low %v6485, %v6501
        %v6542 = vcombine.high %v6485, %v6501
        %v6544 = vunpack.c.l.s4 1934713408
        %v6545 = vunpack.c.0.s8 %v6544
        %v6546 = vlaneseq
        %v6547 = vshrl.u32 %v6546, 7
        %v6548 = vsub.s32 %v6545, %v6547
        %v6549 = vrot.slane %v6541, %v6548
        %v6551 = vunpack.c.l.s4 1934713408
        %v6552 = vunpack.c.0.s8 %v6551
        %v6553 = vlaneseq
        %v6554 = vshrl.u32 %v6553, 7
        %v6555 = vsub.s32 %v6552, %v6554
        %v6556 = vrot.slane %v6542, %v6555
        %v6557 = vcombine.low %v6492, %v6508
        %v6558 = vcombine.high %v6492, %v6508
        %v6560 = vunpack.c.l.s4 1934713408
        %v6561 = vunpack.c.0.s8 %v6560
        %v6562 = vlaneseq
        %v6563 = vshrl.u32 %v6562, 7
        %v6564 = vsub.s32 %v6561, %v6563
        %v6565 = vrot.slane %v6557, %v6564
        %v6567 = vunpack.c.l.s4 1934713408
        %v6568 = vunpack.c.0.s8 %v6567
        %v6569 = vlaneseq
        %v6570 = vshrl.u32 %v6569, 7
        %v6571 = vsub.s32 %v6568, %v6570
        %v6572 = vrot.slane %v6558, %v6571
        %v6573 = vcombine.low %v6517, %v6549
        %v6574 = vcombine.high %v6517, %v6549
        %v6575 = vcombine.low %v6524, %v6556
        %v6576 = vcombine.high %v6524, %v6556
        %v6577 = vcombine.low %v6533, %v6565
        %v6578 = vcombine.high %v6533, %v6565
        %v6579 = vcombine.low %v6540, %v6572
        %v6580 = vcombine.high %v6540, %v6572
        %v6581 = vcombine.low %v6126, %v6130
        %v6582 = vcombine.high %v6126, %v6130
        %v6584 = vunpack.c.l.s4 1983009808
        %v6585 = vunpack.c.0.s8 %v6584
        %v6586 = vlaneseq
        %v6587 = vshrl.u32 %v6586, 7
        %v6588 = vsub.s32 %v6585, %v6587
        %v6589 = vrot.slane %v6581, %v6588
        %v6591 = vunpack.c.l.s4 1983009808
        %v6592 = vunpack.c.0.s8 %v6591
        %v6593 = vlaneseq
        %v6594 = vshrl.u32 %v6593, 7
        %v6595 = vsub.s32 %v6592, %v6594
        %v6596 = vrot.slane %v6582, %v6595
        %v6597 = vcombine.low %v6128, %v6132
        %v6598 = vcombine.high %v6128, %v6132
        %v6600 = vunpack.c.l.s4 1983009808
        %v6601 = vunpack.c.0.s8 %v6600
        %v6602 = vlaneseq
        %v6603 = vshrl.u32 %v6602, 7
        %v6604 = vsub.s32 %v6601, %v6603
        %v6605 = vrot.slane %v6597, %v6604
        %v6607 = vunpack.c.l.s4 1983009808
        %v6608 = vunpack.c.0.s8 %v6607
        %v6609 = vlaneseq
        %v6610 = vshrl.u32 %v6609, 7
        %v6611 = vsub.s32 %v6608, %v6610
        %v6612 = vrot.slane %v6598, %v6611
        %v6613 = vcombine.low %v6134, %v6138
        %v6614 = vcombine.high %v6134, %v6138
        %v6616 = vunpack.c.l.s4 1983009808
        %v6617 = vunpack.c.0.s8 %v6616
        %v6618 = vlaneseq
        %v6619 = vshrl.u32 %v6618, 7
        %v6620 = vsub.s32 %v6617, %v6619
        %v6621 = vrot.slane %v6613, %v6620
        %v6623 = vunpack.c.l.s4 1983009808
        %v6624 = vunpack.c.0.s8 %v6623
        %v6625 = vlaneseq
        %v6626 = vshrl.u32 %v6625, 7
        %v6627 = vsub.s32 %v6624, %v6626
        %v6628 = vrot.slane %v6614, %v6627
        %v6629 = vcombine.low %v6136, %v6140
        %v6630 = vcombine.high %v6136, %v6140
        %v6632 = vunpack.c.l.s4 1983009808
        %v6633 = vunpack.c.0.s8 %v6632
        %v6634 = vlaneseq
        %v6635 = vshrl.u32 %v6634, 7
        %v6636 = vsub.s32 %v6633, %v6635
        %v6637 = vrot.slane %v6629, %v6636
        %v6639 = vunpack.c.l.s4 1983009808
        %v6640 = vunpack.c.0.s8 %v6639
        %v6641 = vlaneseq
        %v6642 = vshrl.u32 %v6641, 7
        %v6643 = vsub.s32 %v6640, %v6642
        %v6644 = vrot.slane %v6630, %v6643
        %v6645 = vcombine.low %v6589, %v6605
        %v6646 = vcombine.high %v6589, %v6605
        %v6648 = vunpack.c.l.s4 1934713408
        %v6649 = vunpack.c.0.s8 %v6648
        %v6650 = vlaneseq
        %v6651 = vshrl.u32 %v6650, 7
        %v6652 = vsub.s32 %v6649, %v6651
        %v6653 = vrot.slane %v6645, %v6652
        %v6655 = vunpack.c.l.s4 1934713408
        %v6656 = vunpack.c.0.s8 %v6655
        %v6657 = vlaneseq
        %v6658 = vshrl.u32 %v6657, 7
        %v6659 = vsub.s32 %v6656, %v6658
        %v6660 = vrot.slane %v6646, %v6659
        %v6661 = vcombine.low %v6596, %v6612
        %v6662 = vcombine.high %v6596, %v6612
        %v6664 = vunpack.c.l.s4 1934713408
        %v6665 = vunpack.c.0.s8 %v6664
        %v6666 = vlaneseq
        %v6667 = vshrl.u32 %v6666, 7
        %v6668 = vsub.s32 %v6665, %v6667
        %v6669 = vrot.slane %v6661, %v6668
        %v6671 = vunpack.c.l.s4 1934713408
        %v6672 = vunpack.c.0.s8 %v6671
        %v6673 = vlaneseq
        %v6674 = vshrl.u32 %v6673, 7
        %v6675 = vsub.s32 %v6672, %v6674
        %v6676 = vrot.slane %v6662, %v6675
        %v6677 = vcombine.low %v6621, %v6637
        %v6678 = vcombine.high %v6621, %v6637
        %v6680 = vunpack.c.l.s4 1934713408
        %v6681 = vunpack.c.0.s8 %v6680
        %v6682 = vlaneseq
        %v6683 = vshrl.u32 %v6682, 7
        %v6684 = vsub.s32 %v6681, %v6683
        %v6685 = vrot.slane %v6677, %v6684
        %v6687 = vunpack.c.l.s4 1934713408
        %v6688 = vunpack.c.0.s8 %v6687
        %v6689 = vlaneseq
        %v6690 = vshrl.u32 %v6689, 7
        %v6691 = vsub.s32 %v6688, %v6690
        %v6692 = vrot.slane %v6678, %v6691
        %v6693 = vcombine.low %v6628, %v6644
        %v6694 = vcombine.high %v6628, %v6644
        %v6696 = vunpack.c.l.s4 1934713408
        %v6697 = vunpack.c.0.s8 %v6696
        %v6698 = vlaneseq
        %v6699 = vshrl.u32 %v6698, 7
        %v6700 = vsub.s32 %v6697, %v6699
        %v6701 = vrot.slane %v6693, %v6700
        %v6703 = vunpack.c.l.s4 1934713408
        %v6704 = vunpack.c.0.s8 %v6703
        %v6705 = vlaneseq
        %v6706 = vshrl.u32 %v6705, 7
        %v6707 = vsub.s32 %v6704, %v6706
        %v6708 = vrot.slane %v6694, %v6707
        %v6709 = vcombine.low %v6653, %v6685
        %v6710 = vcombine.high %v6653, %v6685
        %v6711 = vcombine.low %v6660, %v6692
        %v6712 = vcombine.high %v6660, %v6692
        %v6713 = vcombine.low %v6669, %v6701
        %v6714 = vcombine.high %v6669, %v6701
        %v6715 = vcombine.low %v6676, %v6708
        %v6716 = vcombine.high %v6676, %v6708
        %6721 = vrot.lane.b32.xlu0 %v6302, 16
        %v6722 = vpop.permute.xlu0 %6721
        %6723 = vrot.lane.b32.xlu0 %v6438, 16
        %v6724 = vpop.permute.xlu0 %6723
        %6725 = vrot.lane.b32.xlu0 %v6574, 16
        %v6726 = vpop.permute.xlu0 %6725
        %6727 = vrot.lane.b32.xlu0 %v6710, 16
        %v6728 = vpop.permute.xlu0 %6727
        %6737 = vrot.lane.b32.xlu0 %v6303, 32
        %v6738 = vpop.permute.xlu0 %6737
        %6739 = vrot.lane.b32.xlu0 %v6439, 32
        %v6740 = vpop.permute.xlu0 %6739
        %6741 = vrot.lane.b32.xlu0 %v6575, 32
        %v6742 = vpop.permute.xlu0 %6741
        %6743 = vrot.lane.b32.xlu0 %v6711, 32
        %v6744 = vpop.permute.xlu0 %6743
        %6753 = vrot.lane.b32.xlu0 %v6304, 48
        %v6754 = vpop.permute.xlu0 %6753
        %6755 = vrot.lane.b32.xlu0 %v6440, 48
        %v6756 = vpop.permute.xlu0 %6755
        %6757 = vrot.lane.b32.xlu0 %v6576, 48
        %v6758 = vpop.permute.xlu0 %6757
        %6759 = vrot.lane.b32.xlu0 %v6712, 48
        %v6760 = vpop.permute.xlu0 %6759
        %6769 = vrot.lane.b32.xlu0 %v6305, 64
        %v6770 = vpop.permute.xlu0 %6769
        %6771 = vrot.lane.b32.xlu0 %v6441, 64
        %v6772 = vpop.permute.xlu0 %6771
        %6773 = vrot.lane.b32.xlu0 %v6577, 64
        %v6774 = vpop.permute.xlu0 %6773
        %6775 = vrot.lane.b32.xlu0 %v6713, 64
        %v6776 = vpop.permute.xlu0 %6775
        %6785 = vrot.lane.b32.xlu0 %v6306, 80
        %v6786 = vpop.permute.xlu0 %6785
        %6787 = vrot.lane.b32.xlu0 %v6442, 80
        %v6788 = vpop.permute.xlu0 %6787
        %6789 = vrot.lane.b32.xlu0 %v6578, 80
        %v6790 = vpop.permute.xlu0 %6789
        %6791 = vrot.lane.b32.xlu0 %v6714, 80
        %v6792 = vpop.permute.xlu0 %6791
        %6801 = vrot.lane.b32.xlu0 %v6307, 96
        %v6802 = vpop.permute.xlu0 %6801
        %6803 = vrot.lane.b32.xlu0 %v6443, 96
        %v6804 = vpop.permute.xlu0 %6803
        %6805 = vrot.lane.b32.xlu0 %v6579, 96
        %v6806 = vpop.permute.xlu0 %6805
        %6807 = vrot.lane.b32.xlu0 %v6715, 96
        %v6808 = vpop.permute.xlu0 %6807
        %6817 = vrot.lane.b32.xlu0 %v6308, 112
        %v6818 = vpop.permute.xlu0 %6817
        %6819 = vrot.lane.b32.xlu0 %v6444, 112
        %v6820 = vpop.permute.xlu0 %6819
        %6821 = vrot.lane.b32.xlu0 %v6580, 112
        %v6822 = vpop.permute.xlu0 %6821
        %6823 = vrot.lane.b32.xlu0 %v6716, 112
        %v6824 = vpop.permute.xlu0 %6823
        %v6829 = vsel %vm1390, %v6301, %v6722
        %v6830 = vsel %vm1390, %v6437, %v6724
        %v6831 = vsel %vm1390, %v6573, %v6726
        %v6832 = vsel %vm1390, %v6709, %v6728
        %v6833 = vsel %vm1395, %v6829, %v6738
        %v6834 = vsel %vm1395, %v6830, %v6740
        %v6835 = vsel %vm1395, %v6831, %v6742
        %v6836 = vsel %vm1395, %v6832, %v6744
        %v6837 = vsel %vm1400, %v6833, %v6754
        %v6838 = vsel %vm1400, %v6834, %v6756
        %v6839 = vsel %vm1400, %v6835, %v6758
        %v6840 = vsel %vm1400, %v6836, %v6760
        %v6841 = vsel %vm1405, %v6837, %v6770
        %v6842 = vsel %vm1405, %v6838, %v6772
        %v6843 = vsel %vm1405, %v6839, %v6774
        %v6844 = vsel %vm1405, %v6840, %v6776
        %v6845 = vsel %vm1410, %v6841, %v6786
        %v6846 = vsel %vm1410, %v6842, %v6788
        %v6847 = vsel %vm1410, %v6843, %v6790
        %v6848 = vsel %vm1410, %v6844, %v6792
        %v6849 = vsel %vm1415, %v6845, %v6802
        %v6850 = vsel %vm1415, %v6846, %v6804
        %v6851 = vsel %vm1415, %v6847, %v6806
        %v6852 = vsel %vm1415, %v6848, %v6808
        %v6853 = vsel %vm1420, %v6849, %v6818
        %v6854 = vsel %vm1420, %v6850, %v6820
        %v6855 = vsel %vm1420, %v6851, %v6822
        %v6856 = vsel %vm1420, %v6852, %v6824
        %6857 = vrot.lane.b32.xlu0 %v5329, 126
        %v6858 = vpop.permute.xlu0 %6857
        %6859 = vrot.lane.b32.xlu0 %v5330, 126
        %v6860 = vpop.permute.xlu0 %6859
        %6861 = vrot.lane.b32.xlu0 %v5331, 126
        %v6862 = vpop.permute.xlu0 %6861
        %6863 = vrot.lane.b32.xlu0 %v5332, 126
        %v6864 = vpop.permute.xlu0 %6863
        %6865 = vrot.lane.b32.xlu0 %v5333, 126
        %v6866 = vpop.permute.xlu0 %6865
        %6867 = vrot.lane.b32.xlu0 %v5334, 126
        %v6868 = vpop.permute.xlu0 %6867
        %6869 = vrot.lane.b32.xlu0 %v5335, 126
        %v6870 = vpop.permute.xlu0 %6869
        %6871 = vrot.lane.b32.xlu0 %v5336, 126
        %v6872 = vpop.permute.xlu0 %6871
        %6873 = vrot.lane.b32.xlu0 %v5337, 126
        %v6874 = vpop.permute.xlu0 %6873
        %6875 = vrot.lane.b32.xlu0 %v5338, 126
        %v6876 = vpop.permute.xlu0 %6875
        %6877 = vrot.lane.b32.xlu0 %v5339, 126
        %v6878 = vpop.permute.xlu0 %6877
        %6879 = vrot.lane.b32.xlu0 %v5340, 126
        %v6880 = vpop.permute.xlu0 %6879
        %6881 = vrot.lane.b32.xlu0 %v5341, 126
        %v6882 = vpop.permute.xlu0 %6881
        %6883 = vrot.lane.b32.xlu0 %v5342, 126
        %v6884 = vpop.permute.xlu0 %6883
        %6885 = vrot.lane.b32.xlu0 %v5343, 126
        %v6886 = vpop.permute.xlu0 %6885
        %6887 = vrot.lane.b32.xlu0 %v5344, 126
        %v6888 = vpop.permute.xlu0 %6887
        %6889 = vrot.lane.b32.xlu0 %v5345, 126
        %v6890 = vpop.permute.xlu0 %6889
        %6891 = vrot.lane.b32.xlu0 %v5346, 126
        %v6892 = vpop.permute.xlu0 %6891
        %6893 = vrot.lane.b32.xlu0 %v5347, 126
        %v6894 = vpop.permute.xlu0 %6893
        %6895 = vrot.lane.b32.xlu0 %v5348, 126
        %v6896 = vpop.permute.xlu0 %6895
        %6897 = vrot.lane.b32.xlu0 %v5349, 126
        %v6898 = vpop.permute.xlu0 %6897
        %6899 = vrot.lane.b32.xlu0 %v5350, 126
        %v6900 = vpop.permute.xlu0 %6899
        %6901 = vrot.lane.b32.xlu0 %v5351, 126
        %v6902 = vpop.permute.xlu0 %6901
        %6903 = vrot.lane.b32.xlu0 %v5352, 126
        %v6904 = vpop.permute.xlu0 %6903
        %6905 = vrot.lane.b32.xlu0 %v5353, 126
        %v6906 = vpop.permute.xlu0 %6905
        %6907 = vrot.lane.b32.xlu0 %v5354, 126
        %v6908 = vpop.permute.xlu0 %6907
        %6909 = vrot.lane.b32.xlu0 %v5355, 126
        %v6910 = vpop.permute.xlu0 %6909
        %6911 = vrot.lane.b32.xlu0 %v5356, 126
        %v6912 = vpop.permute.xlu0 %6911
        %6913 = vrot.lane.b32.xlu0 %v5357, 126
        %v6914 = vpop.permute.xlu0 %6913
        %6915 = vrot.lane.b32.xlu0 %v5358, 126
        %v6916 = vpop.permute.xlu0 %6915
        %6917 = vrot.lane.b32.xlu0 %v5359, 126
        %v6918 = vpop.permute.xlu0 %6917
        %6919 = vrot.lane.b32.xlu0 %v5360, 126
        %v6920 = vpop.permute.xlu0 %6919
        %v6953 = vcombine.low %v6858, %v6862
        %v6954 = vcombine.high %v6858, %v6862
        %v6956 = vunpack.c.l.s4 1983009808
        %v6957 = vunpack.c.0.s8 %v6956
        %v6958 = vlaneseq
        %v6959 = vshrl.u32 %v6958, 7
        %v6960 = vsub.s32 %v6957, %v6959
        %v6961 = vrot.slane %v6953, %v6960
        %v6963 = vunpack.c.l.s4 1983009808
        %v6964 = vunpack.c.0.s8 %v6963
        %v6965 = vlaneseq
        %v6966 = vshrl.u32 %v6965, 7
        %v6967 = vsub.s32 %v6964, %v6966
        %v6968 = vrot.slane %v6954, %v6967
        %v6969 = vcombine.low %v6860, %v6864
        %v6970 = vcombine.high %v6860, %v6864
        %v6972 = vunpack.c.l.s4 1983009808
        %v6973 = vunpack.c.0.s8 %v6972
        %v6974 = vlaneseq
        %v6975 = vshrl.u32 %v6974, 7
        %v6976 = vsub.s32 %v6973, %v6975
        %v6977 = vrot.slane %v6969, %v6976
        %v6979 = vunpack.c.l.s4 1983009808
        %v6980 = vunpack.c.0.s8 %v6979
        %v6981 = vlaneseq
        %v6982 = vshrl.u32 %v6981, 7
        %v6983 = vsub.s32 %v6980, %v6982
        %v6984 = vrot.slane %v6970, %v6983
        %v6985 = vcombine.low %v6866, %v6870
        %v6986 = vcombine.high %v6866, %v6870
        %v6988 = vunpack.c.l.s4 1983009808
        %v6989 = vunpack.c.0.s8 %v6988
        %v6990 = vlaneseq
        %v6991 = vshrl.u32 %v6990, 7
        %v6992 = vsub.s32 %v6989, %v6991
        %v6993 = vrot.slane %v6985, %v6992
        %v6995 = vunpack.c.l.s4 1983009808
        %v6996 = vunpack.c.0.s8 %v6995
        %v6997 = vlaneseq
        %v6998 = vshrl.u32 %v6997, 7
        %v6999 = vsub.s32 %v6996, %v6998
        %v7000 = vrot.slane %v6986, %v6999
        %v7001 = vcombine.low %v6868, %v6872
        %v7002 = vcombine.high %v6868, %v6872
        %v7004 = vunpack.c.l.s4 1983009808
        %v7005 = vunpack.c.0.s8 %v7004
        %v7006 = vlaneseq
        %v7007 = vshrl.u32 %v7006, 7
        %v7008 = vsub.s32 %v7005, %v7007
        %v7009 = vrot.slane %v7001, %v7008
        %v7011 = vunpack.c.l.s4 1983009808
        %v7012 = vunpack.c.0.s8 %v7011
        %v7013 = vlaneseq
        %v7014 = vshrl.u32 %v7013, 7
        %v7015 = vsub.s32 %v7012, %v7014
        %v7016 = vrot.slane %v7002, %v7015
        %v7017 = vcombine.low %v6961, %v6977
        %v7018 = vcombine.high %v6961, %v6977
        %v7020 = vunpack.c.l.s4 1934713408
        %v7021 = vunpack.c.0.s8 %v7020
        %v7022 = vlaneseq
        %v7023 = vshrl.u32 %v7022, 7
        %v7024 = vsub.s32 %v7021, %v7023
        %v7025 = vrot.slane %v7017, %v7024
        %v7027 = vunpack.c.l.s4 1934713408
        %v7028 = vunpack.c.0.s8 %v7027
        %v7029 = vlaneseq
        %v7030 = vshrl.u32 %v7029, 7
        %v7031 = vsub.s32 %v7028, %v7030
        %v7032 = vrot.slane %v7018, %v7031
        %v7033 = vcombine.low %v6968, %v6984
        %v7034 = vcombine.high %v6968, %v6984
        %v7036 = vunpack.c.l.s4 1934713408
        %v7037 = vunpack.c.0.s8 %v7036
        %v7038 = vlaneseq
        %v7039 = vshrl.u32 %v7038, 7
        %v7040 = vsub.s32 %v7037, %v7039
        %v7041 = vrot.slane %v7033, %v7040
        %v7043 = vunpack.c.l.s4 1934713408
        %v7044 = vunpack.c.0.s8 %v7043
        %v7045 = vlaneseq
        %v7046 = vshrl.u32 %v7045, 7
        %v7047 = vsub.s32 %v7044, %v7046
        %v7048 = vrot.slane %v7034, %v7047
        %v7049 = vcombine.low %v6993, %v7009
        %v7050 = vcombine.high %v6993, %v7009
        %v7052 = vunpack.c.l.s4 1934713408
        %v7053 = vunpack.c.0.s8 %v7052
        %v7054 = vlaneseq
        %v7055 = vshrl.u32 %v7054, 7
        %v7056 = vsub.s32 %v7053, %v7055
        %v7057 = vrot.slane %v7049, %v7056
        %v7059 = vunpack.c.l.s4 1934713408
        %v7060 = vunpack.c.0.s8 %v7059
        %v7061 = vlaneseq
        %v7062 = vshrl.u32 %v7061, 7
        %v7063 = vsub.s32 %v7060, %v7062
        %v7064 = vrot.slane %v7050, %v7063
        %v7065 = vcombine.low %v7000, %v7016
        %v7066 = vcombine.high %v7000, %v7016
        %v7068 = vunpack.c.l.s4 1934713408
        %v7069 = vunpack.c.0.s8 %v7068
        %v7070 = vlaneseq
        %v7071 = vshrl.u32 %v7070, 7
        %v7072 = vsub.s32 %v7069, %v7071
        %v7073 = vrot.slane %v7065, %v7072
        %v7075 = vunpack.c.l.s4 1934713408
        %v7076 = vunpack.c.0.s8 %v7075
        %v7077 = vlaneseq
        %v7078 = vshrl.u32 %v7077, 7
        %v7079 = vsub.s32 %v7076, %v7078
        %v7080 = vrot.slane %v7066, %v7079
        %v7081 = vcombine.low %v7025, %v7057
        %v7082 = vcombine.high %v7025, %v7057
        %v7083 = vcombine.low %v7032, %v7064
        %v7084 = vcombine.high %v7032, %v7064
        %v7085 = vcombine.low %v7041, %v7073
        %v7086 = vcombine.high %v7041, %v7073
        %v7087 = vcombine.low %v7048, %v7080
        %v7088 = vcombine.high %v7048, %v7080
        %v7089 = vcombine.low %v6874, %v6878
        %v7090 = vcombine.high %v6874, %v6878
        %v7092 = vunpack.c.l.s4 1983009808
        %v7093 = vunpack.c.0.s8 %v7092
        %v7094 = vlaneseq
        %v7095 = vshrl.u32 %v7094, 7
        %v7096 = vsub.s32 %v7093, %v7095
        %v7097 = vrot.slane %v7089, %v7096
        %v7099 = vunpack.c.l.s4 1983009808
        %v7100 = vunpack.c.0.s8 %v7099
        %v7101 = vlaneseq
        %v7102 = vshrl.u32 %v7101, 7
        %v7103 = vsub.s32 %v7100, %v7102
        %v7104 = vrot.slane %v7090, %v7103
        %v7105 = vcombine.low %v6876, %v6880
        %v7106 = vcombine.high %v6876, %v6880
        %v7108 = vunpack.c.l.s4 1983009808
        %v7109 = vunpack.c.0.s8 %v7108
        %v7110 = vlaneseq
        %v7111 = vshrl.u32 %v7110, 7
        %v7112 = vsub.s32 %v7109, %v7111
        %v7113 = vrot.slane %v7105, %v7112
        %v7115 = vunpack.c.l.s4 1983009808
        %v7116 = vunpack.c.0.s8 %v7115
        %v7117 = vlaneseq
        %v7118 = vshrl.u32 %v7117, 7
        %v7119 = vsub.s32 %v7116, %v7118
        %v7120 = vrot.slane %v7106, %v7119
        %v7121 = vcombine.low %v6882, %v6886
        %v7122 = vcombine.high %v6882, %v6886
        %v7124 = vunpack.c.l.s4 1983009808
        %v7125 = vunpack.c.0.s8 %v7124
        %v7126 = vlaneseq
        %v7127 = vshrl.u32 %v7126, 7
        %v7128 = vsub.s32 %v7125, %v7127
        %v7129 = vrot.slane %v7121, %v7128
        %v7131 = vunpack.c.l.s4 1983009808
        %v7132 = vunpack.c.0.s8 %v7131
        %v7133 = vlaneseq
        %v7134 = vshrl.u32 %v7133, 7
        %v7135 = vsub.s32 %v7132, %v7134
        %v7136 = vrot.slane %v7122, %v7135
        %v7137 = vcombine.low %v6884, %v6888
        %v7138 = vcombine.high %v6884, %v6888
        %v7140 = vunpack.c.l.s4 1983009808
        %v7141 = vunpack.c.0.s8 %v7140
        %v7142 = vlaneseq
        %v7143 = vshrl.u32 %v7142, 7
        %v7144 = vsub.s32 %v7141, %v7143
        %v7145 = vrot.slane %v7137, %v7144
        %v7147 = vunpack.c.l.s4 1983009808
        %v7148 = vunpack.c.0.s8 %v7147
        %v7149 = vlaneseq
        %v7150 = vshrl.u32 %v7149, 7
        %v7151 = vsub.s32 %v7148, %v7150
        %v7152 = vrot.slane %v7138, %v7151
        %v7153 = vcombine.low %v7097, %v7113
        %v7154 = vcombine.high %v7097, %v7113
        %v7156 = vunpack.c.l.s4 1934713408
        %v7157 = vunpack.c.0.s8 %v7156
        %v7158 = vlaneseq
        %v7159 = vshrl.u32 %v7158, 7
        %v7160 = vsub.s32 %v7157, %v7159
        %v7161 = vrot.slane %v7153, %v7160
        %v7163 = vunpack.c.l.s4 1934713408
        %v7164 = vunpack.c.0.s8 %v7163
        %v7165 = vlaneseq
        %v7166 = vshrl.u32 %v7165, 7
        %v7167 = vsub.s32 %v7164, %v7166
        %v7168 = vrot.slane %v7154, %v7167
        %v7169 = vcombine.low %v7104, %v7120
        %v7170 = vcombine.high %v7104, %v7120
        %v7172 = vunpack.c.l.s4 1934713408
        %v7173 = vunpack.c.0.s8 %v7172
        %v7174 = vlaneseq
        %v7175 = vshrl.u32 %v7174, 7
        %v7176 = vsub.s32 %v7173, %v7175
        %v7177 = vrot.slane %v7169, %v7176
        %v7179 = vunpack.c.l.s4 1934713408
        %v7180 = vunpack.c.0.s8 %v7179
        %v7181 = vlaneseq
        %v7182 = vshrl.u32 %v7181, 7
        %v7183 = vsub.s32 %v7180, %v7182
        %v7184 = vrot.slane %v7170, %v7183
        %v7185 = vcombine.low %v7129, %v7145
        %v7186 = vcombine.high %v7129, %v7145
        %v7188 = vunpack.c.l.s4 1934713408
        %v7189 = vunpack.c.0.s8 %v7188
        %v7190 = vlaneseq
        %v7191 = vshrl.u32 %v7190, 7
        %v7192 = vsub.s32 %v7189, %v7191
        %v7193 = vrot.slane %v7185, %v7192
        %v7195 = vunpack.c.l.s4 1934713408
        %v7196 = vunpack.c.0.s8 %v7195
        %v7197 = vlaneseq
        %v7198 = vshrl.u32 %v7197, 7
        %v7199 = vsub.s32 %v7196, %v7198
        %v7200 = vrot.slane %v7186, %v7199
        %v7201 = vcombine.low %v7136, %v7152
        %v7202 = vcombine.high %v7136, %v7152
        %v7204 = vunpack.c.l.s4 1934713408
        %v7205 = vunpack.c.0.s8 %v7204
        %v7206 = vlaneseq
        %v7207 = vshrl.u32 %v7206, 7
        %v7208 = vsub.s32 %v7205, %v7207
        %v7209 = vrot.slane %v7201, %v7208
        %v7211 = vunpack.c.l.s4 1934713408
        %v7212 = vunpack.c.0.s8 %v7211
        %v7213 = vlaneseq
        %v7214 = vshrl.u32 %v7213, 7
        %v7215 = vsub.s32 %v7212, %v7214
        %v7216 = vrot.slane %v7202, %v7215
        %v7217 = vcombine.low %v7161, %v7193
        %v7218 = vcombine.high %v7161, %v7193
        %v7219 = vcombine.low %v7168, %v7200
        %v7220 = vcombine.high %v7168, %v7200
        %v7221 = vcombine.low %v7177, %v7209
        %v7222 = vcombine.high %v7177, %v7209
        %v7223 = vcombine.low %v7184, %v7216
        %v7224 = vcombine.high %v7184, %v7216
        %v7225 = vcombine.low %v6890, %v6894
        %v7226 = vcombine.high %v6890, %v6894
        %v7228 = vunpack.c.l.s4 1983009808
        %v7229 = vunpack.c.0.s8 %v7228
        %v7230 = vlaneseq
        %v7231 = vshrl.u32 %v7230, 7
        %v7232 = vsub.s32 %v7229, %v7231
        %v7233 = vrot.slane %v7225, %v7232
        %v7235 = vunpack.c.l.s4 1983009808
        %v7236 = vunpack.c.0.s8 %v7235
        %v7237 = vlaneseq
        %v7238 = vshrl.u32 %v7237, 7
        %v7239 = vsub.s32 %v7236, %v7238
        %v7240 = vrot.slane %v7226, %v7239
        %v7241 = vcombine.low %v6892, %v6896
        %v7242 = vcombine.high %v6892, %v6896
        %v7244 = vunpack.c.l.s4 1983009808
        %v7245 = vunpack.c.0.s8 %v7244
        %v7246 = vlaneseq
        %v7247 = vshrl.u32 %v7246, 7
        %v7248 = vsub.s32 %v7245, %v7247
        %v7249 = vrot.slane %v7241, %v7248
        %v7251 = vunpack.c.l.s4 1983009808
        %v7252 = vunpack.c.0.s8 %v7251
        %v7253 = vlaneseq
        %v7254 = vshrl.u32 %v7253, 7
        %v7255 = vsub.s32 %v7252, %v7254
        %v7256 = vrot.slane %v7242, %v7255
        %v7257 = vcombine.low %v6898, %v6902
        %v7258 = vcombine.high %v6898, %v6902
        %v7260 = vunpack.c.l.s4 1983009808
        %v7261 = vunpack.c.0.s8 %v7260
        %v7262 = vlaneseq
        %v7263 = vshrl.u32 %v7262, 7
        %v7264 = vsub.s32 %v7261, %v7263
        %v7265 = vrot.slane %v7257, %v7264
        %v7267 = vunpack.c.l.s4 1983009808
        %v7268 = vunpack.c.0.s8 %v7267
        %v7269 = vlaneseq
        %v7270 = vshrl.u32 %v7269, 7
        %v7271 = vsub.s32 %v7268, %v7270
        %v7272 = vrot.slane %v7258, %v7271
        %v7273 = vcombine.low %v6900, %v6904
        %v7274 = vcombine.high %v6900, %v6904
        %v7276 = vunpack.c.l.s4 1983009808
        %v7277 = vunpack.c.0.s8 %v7276
        %v7278 = vlaneseq
        %v7279 = vshrl.u32 %v7278, 7
        %v7280 = vsub.s32 %v7277, %v7279
        %v7281 = vrot.slane %v7273, %v7280
        %v7283 = vunpack.c.l.s4 1983009808
        %v7284 = vunpack.c.0.s8 %v7283
        %v7285 = vlaneseq
        %v7286 = vshrl.u32 %v7285, 7
        %v7287 = vsub.s32 %v7284, %v7286
        %v7288 = vrot.slane %v7274, %v7287
        %v7289 = vcombine.low %v7233, %v7249
        %v7290 = vcombine.high %v7233, %v7249
        %v7292 = vunpack.c.l.s4 1934713408
        %v7293 = vunpack.c.0.s8 %v7292
        %v7294 = vlaneseq
        %v7295 = vshrl.u32 %v7294, 7
        %v7296 = vsub.s32 %v7293, %v7295
        %v7297 = vrot.slane %v7289, %v7296
        %v7299 = vunpack.c.l.s4 1934713408
        %v7300 = vunpack.c.0.s8 %v7299
        %v7301 = vlaneseq
        %v7302 = vshrl.u32 %v7301, 7
        %v7303 = vsub.s32 %v7300, %v7302
        %v7304 = vrot.slane %v7290, %v7303
        %v7305 = vcombine.low %v7240, %v7256
        %v7306 = vcombine.high %v7240, %v7256
        %v7308 = vunpack.c.l.s4 1934713408
        %v7309 = vunpack.c.0.s8 %v7308
        %v7310 = vlaneseq
        %v7311 = vshrl.u32 %v7310, 7
        %v7312 = vsub.s32 %v7309, %v7311
        %v7313 = vrot.slane %v7305, %v7312
        %v7315 = vunpack.c.l.s4 1934713408
        %v7316 = vunpack.c.0.s8 %v7315
        %v7317 = vlaneseq
        %v7318 = vshrl.u32 %v7317, 7
        %v7319 = vsub.s32 %v7316, %v7318
        %v7320 = vrot.slane %v7306, %v7319
        %v7321 = vcombine.low %v7265, %v7281
        %v7322 = vcombine.high %v7265, %v7281
        %v7324 = vunpack.c.l.s4 1934713408
        %v7325 = vunpack.c.0.s8 %v7324
        %v7326 = vlaneseq
        %v7327 = vshrl.u32 %v7326, 7
        %v7328 = vsub.s32 %v7325, %v7327
        %v7329 = vrot.slane %v7321, %v7328
        %v7331 = vunpack.c.l.s4 1934713408
        %v7332 = vunpack.c.0.s8 %v7331
        %v7333 = vlaneseq
        %v7334 = vshrl.u32 %v7333, 7
        %v7335 = vsub.s32 %v7332, %v7334
        %v7336 = vrot.slane %v7322, %v7335
        %v7337 = vcombine.low %v7272, %v7288
        %v7338 = vcombine.high %v7272, %v7288
        %v7340 = vunpack.c.l.s4 1934713408
        %v7341 = vunpack.c.0.s8 %v7340
        %v7342 = vlaneseq
        %v7343 = vshrl.u32 %v7342, 7
        %v7344 = vsub.s32 %v7341, %v7343
        %v7345 = vrot.slane %v7337, %v7344
        %v7347 = vunpack.c.l.s4 1934713408
        %v7348 = vunpack.c.0.s8 %v7347
        %v7349 = vlaneseq
        %v7350 = vshrl.u32 %v7349, 7
        %v7351 = vsub.s32 %v7348, %v7350
        %v7352 = vrot.slane %v7338, %v7351
        %v7353 = vcombine.low %v7297, %v7329
        %v7354 = vcombine.high %v7297, %v7329
        %v7355 = vcombine.low %v7304, %v7336
        %v7356 = vcombine.high %v7304, %v7336
        %v7357 = vcombine.low %v7313, %v7345
        %v7358 = vcombine.high %v7313, %v7345
        %v7359 = vcombine.low %v7320, %v7352
        %v7360 = vcombine.high %v7320, %v7352
        %v7361 = vcombine.low %v6906, %v6910
        %v7362 = vcombine.high %v6906, %v6910
        %v7364 = vunpack.c.l.s4 1983009808
        %v7365 = vunpack.c.0.s8 %v7364
        %v7366 = vlaneseq
        %v7367 = vshrl.u32 %v7366, 7
        %v7368 = vsub.s32 %v7365, %v7367
        %v7369 = vrot.slane %v7361, %v7368
        %v7371 = vunpack.c.l.s4 1983009808
        %v7372 = vunpack.c.0.s8 %v7371
        %v7373 = vlaneseq
        %v7374 = vshrl.u32 %v7373, 7
        %v7375 = vsub.s32 %v7372, %v7374
        %v7376 = vrot.slane %v7362, %v7375
        %v7377 = vcombine.low %v6908, %v6912
        %v7378 = vcombine.high %v6908, %v6912
        %v7380 = vunpack.c.l.s4 1983009808
        %v7381 = vunpack.c.0.s8 %v7380
        %v7382 = vlaneseq
        %v7383 = vshrl.u32 %v7382, 7
        %v7384 = vsub.s32 %v7381, %v7383
        %v7385 = vrot.slane %v7377, %v7384
        %v7387 = vunpack.c.l.s4 1983009808
        %v7388 = vunpack.c.0.s8 %v7387
        %v7389 = vlaneseq
        %v7390 = vshrl.u32 %v7389, 7
        %v7391 = vsub.s32 %v7388, %v7390
        %v7392 = vrot.slane %v7378, %v7391
        %v7393 = vcombine.low %v6914, %v6918
        %v7394 = vcombine.high %v6914, %v6918
        %v7396 = vunpack.c.l.s4 1983009808
        %v7397 = vunpack.c.0.s8 %v7396
        %v7398 = vlaneseq
        %v7399 = vshrl.u32 %v7398, 7
        %v7400 = vsub.s32 %v7397, %v7399
        %v7401 = vrot.slane %v7393, %v7400
        %v7403 = vunpack.c.l.s4 1983009808
        %v7404 = vunpack.c.0.s8 %v7403
        %v7405 = vlaneseq
        %v7406 = vshrl.u32 %v7405, 7
        %v7407 = vsub.s32 %v7404, %v7406
        %v7408 = vrot.slane %v7394, %v7407
        %v7409 = vcombine.low %v6916, %v6920
        %v7410 = vcombine.high %v6916, %v6920
        %v7412 = vunpack.c.l.s4 1983009808
        %v7413 = vunpack.c.0.s8 %v7412
        %v7414 = vlaneseq
        %v7415 = vshrl.u32 %v7414, 7
        %v7416 = vsub.s32 %v7413, %v7415
        %v7417 = vrot.slane %v7409, %v7416
        %v7419 = vunpack.c.l.s4 1983009808
        %v7420 = vunpack.c.0.s8 %v7419
        %v7421 = vlaneseq
        %v7422 = vshrl.u32 %v7421, 7
        %v7423 = vsub.s32 %v7420, %v7422
        %v7424 = vrot.slane %v7410, %v7423
        %v7425 = vcombine.low %v7369, %v7385
        %v7426 = vcombine.high %v7369, %v7385
        %v7428 = vunpack.c.l.s4 1934713408
        %v7429 = vunpack.c.0.s8 %v7428
        %v7430 = vlaneseq
        %v7431 = vshrl.u32 %v7430, 7
        %v7432 = vsub.s32 %v7429, %v7431
        %v7433 = vrot.slane %v7425, %v7432
        %v7435 = vunpack.c.l.s4 1934713408
        %v7436 = vunpack.c.0.s8 %v7435
        %v7437 = vlaneseq
        %v7438 = vshrl.u32 %v7437, 7
        %v7439 = vsub.s32 %v7436, %v7438
        %v7440 = vrot.slane %v7426, %v7439
        %v7441 = vcombine.low %v7376, %v7392
        %v7442 = vcombine.high %v7376, %v7392
        %v7444 = vunpack.c.l.s4 1934713408
        %v7445 = vunpack.c.0.s8 %v7444
        %v7446 = vlaneseq
        %v7447 = vshrl.u32 %v7446, 7
        %v7448 = vsub.s32 %v7445, %v7447
        %v7449 = vrot.slane %v7441, %v7448
        %v7451 = vunpack.c.l.s4 1934713408
        %v7452 = vunpack.c.0.s8 %v7451
        %v7453 = vlaneseq
        %v7454 = vshrl.u32 %v7453, 7
        %v7455 = vsub.s32 %v7452, %v7454
        %v7456 = vrot.slane %v7442, %v7455
        %v7457 = vcombine.low %v7401, %v7417
        %v7458 = vcombine.high %v7401, %v7417
        %v7460 = vunpack.c.l.s4 1934713408
        %v7461 = vunpack.c.0.s8 %v7460
        %v7462 = vlaneseq
        %v7463 = vshrl.u32 %v7462, 7
        %v7464 = vsub.s32 %v7461, %v7463
        %v7465 = vrot.slane %v7457, %v7464
        %v7467 = vunpack.c.l.s4 1934713408
        %v7468 = vunpack.c.0.s8 %v7467
        %v7469 = vlaneseq
        %v7470 = vshrl.u32 %v7469, 7
        %v7471 = vsub.s32 %v7468, %v7470
        %v7472 = vrot.slane %v7458, %v7471
        %v7473 = vcombine.low %v7408, %v7424
        %v7474 = vcombine.high %v7408, %v7424
        %v7476 = vunpack.c.l.s4 1934713408
        %v7477 = vunpack.c.0.s8 %v7476
        %v7478 = vlaneseq
        %v7479 = vshrl.u32 %v7478, 7
        %v7480 = vsub.s32 %v7477, %v7479
        %v7481 = vrot.slane %v7473, %v7480
        %v7483 = vunpack.c.l.s4 1934713408
        %v7484 = vunpack.c.0.s8 %v7483
        %v7485 = vlaneseq
        %v7486 = vshrl.u32 %v7485, 7
        %v7487 = vsub.s32 %v7484, %v7486
        %v7488 = vrot.slane %v7474, %v7487
        %v7489 = vcombine.low %v7433, %v7465
        %v7490 = vcombine.high %v7433, %v7465
        %v7491 = vcombine.low %v7440, %v7472
        %v7492 = vcombine.high %v7440, %v7472
        %v7493 = vcombine.low %v7449, %v7481
        %v7494 = vcombine.high %v7449, %v7481
        %v7495 = vcombine.low %v7456, %v7488
        %v7496 = vcombine.high %v7456, %v7488
        %7501 = vrot.lane.b32.xlu0 %v7082, 16
        %v7502 = vpop.permute.xlu0 %7501
        %7503 = vrot.lane.b32.xlu0 %v7218, 16
        %v7504 = vpop.permute.xlu0 %7503
        %7505 = vrot.lane.b32.xlu0 %v7354, 16
        %v7506 = vpop.permute.xlu0 %7505
        %7507 = vrot.lane.b32.xlu0 %v7490, 16
        %v7508 = vpop.permute.xlu0 %7507
        %7517 = vrot.lane.b32.xlu0 %v7083, 32
        %v7518 = vpop.permute.xlu0 %7517
        %7519 = vrot.lane.b32.xlu0 %v7219, 32
        %v7520 = vpop.permute.xlu0 %7519
        %7521 = vrot.lane.b32.xlu0 %v7355, 32
        %v7522 = vpop.permute.xlu0 %7521
        %7523 = vrot.lane.b32.xlu0 %v7491, 32
        %v7524 = vpop.permute.xlu0 %7523
        %7533 = vrot.lane.b32.xlu0 %v7084, 48
        %v7534 = vpop.permute.xlu0 %7533
        %7535 = vrot.lane.b32.xlu0 %v7220, 48
        %v7536 = vpop.permute.xlu0 %7535
        %7537 = vrot.lane.b32.xlu0 %v7356, 48
        %v7538 = vpop.permute.xlu0 %7537
        %7539 = vrot.lane.b32.xlu0 %v7492, 48
        %v7540 = vpop.permute.xlu0 %7539
        %7549 = vrot.lane.b32.xlu0 %v7085, 64
        %v7550 = vpop.permute.xlu0 %7549
        %7551 = vrot.lane.b32.xlu0 %v7221, 64
        %v7552 = vpop.permute.xlu0 %7551
        %7553 = vrot.lane.b32.xlu0 %v7357, 64
        %v7554 = vpop.permute.xlu0 %7553
        %7555 = vrot.lane.b32.xlu0 %v7493, 64
        %v7556 = vpop.permute.xlu0 %7555
        %7565 = vrot.lane.b32.xlu0 %v7086, 80
        %v7566 = vpop.permute.xlu0 %7565
        %7567 = vrot.lane.b32.xlu0 %v7222, 80
        %v7568 = vpop.permute.xlu0 %7567
        %7569 = vrot.lane.b32.xlu0 %v7358, 80
        %v7570 = vpop.permute.xlu0 %7569
        %7571 = vrot.lane.b32.xlu0 %v7494, 80
        %v7572 = vpop.permute.xlu0 %7571
        %7581 = vrot.lane.b32.xlu0 %v7087, 96
        %v7582 = vpop.permute.xlu0 %7581
        %7583 = vrot.lane.b32.xlu0 %v7223, 96
        %v7584 = vpop.permute.xlu0 %7583
        %7585 = vrot.lane.b32.xlu0 %v7359, 96
        %v7586 = vpop.permute.xlu0 %7585
        %7587 = vrot.lane.b32.xlu0 %v7495, 96
        %v7588 = vpop.permute.xlu0 %7587
        %7597 = vrot.lane.b32.xlu0 %v7088, 112
        %v7598 = vpop.permute.xlu0 %7597
        %7599 = vrot.lane.b32.xlu0 %v7224, 112
        %v7600 = vpop.permute.xlu0 %7599
        %7601 = vrot.lane.b32.xlu0 %v7360, 112
        %v7602 = vpop.permute.xlu0 %7601
        %7603 = vrot.lane.b32.xlu0 %v7496, 112
        %v7604 = vpop.permute.xlu0 %7603
        %v7609 = vsel %vm1390, %v7081, %v7502
        %v7610 = vsel %vm1390, %v7217, %v7504
        %v7611 = vsel %vm1390, %v7353, %v7506
        %v7612 = vsel %vm1390, %v7489, %v7508
        %v7613 = vsel %vm1395, %v7609, %v7518
        %v7614 = vsel %vm1395, %v7610, %v7520
        %v7615 = vsel %vm1395, %v7611, %v7522
        %v7616 = vsel %vm1395, %v7612, %v7524
        %v7617 = vsel %vm1400, %v7613, %v7534
        %v7618 = vsel %vm1400, %v7614, %v7536
        %v7619 = vsel %vm1400, %v7615, %v7538
        %v7620 = vsel %vm1400, %v7616, %v7540
        %v7621 = vsel %vm1405, %v7617, %v7550
        %v7622 = vsel %vm1405, %v7618, %v7552
        %v7623 = vsel %vm1405, %v7619, %v7554
        %v7624 = vsel %vm1405, %v7620, %v7556
        %v7625 = vsel %vm1410, %v7621, %v7566
        %v7626 = vsel %vm1410, %v7622, %v7568
        %v7627 = vsel %vm1410, %v7623, %v7570
        %v7628 = vsel %vm1410, %v7624, %v7572
        %v7629 = vsel %vm1415, %v7625, %v7582
        %v7630 = vsel %vm1415, %v7626, %v7584
        %v7631 = vsel %vm1415, %v7627, %v7586
        %v7632 = vsel %vm1415, %v7628, %v7588
        %v7633 = vsel %vm1420, %v7629, %v7598
        %v7634 = vsel %vm1420, %v7630, %v7600
        %v7635 = vsel %vm1420, %v7631, %v7602
        %v7636 = vsel %vm1420, %v7632, %v7604
        %v7637 = vld [vmem:[%s213] sm:$0xff]
        %v7638 = vld [vmem:[%s213 + $0x8] sm:$0xff]
        %v7639 = vld [vmem:[%s213 + $0x10] sm:$0xff]
        %v7640 = vld [vmem:[%s213 + $0x18] sm:$0xff]
        %v7641 = vld [vmem:[%s213 + $0x20] sm:$0xff]
        %v7642 = vld [vmem:[%s213 + $0x28] sm:$0xff]
        %v7643 = vld [vmem:[%s216] sm:$0x1]
        %v7644 = vlaneseq
        %v7645 = vshrl.u32 %v7644, 7
        %v7646 = vsub.s32 0, %v7645
        %v7647 = vrot.slane %v7643, %v7646
        %7649 = vbcast.lane.b32.xlu0 %v7647, 256
        %v7650 = vpop.permute.xlu0 %7649
        %s7652 = sor.u32 256, 8
        %7653 = vbcast.lane.b32.xlu0 %v7647, %s7652
        %v7654 = vpop.permute.xlu0 %7653
        %v7656 = vsel %vm1395, %v7639, 0
        %v7659 = vsel %vm1395, %v7642, 0
        %7661 = vmatprep.subr.mxu0 0.0
        %7662 = vmatpush1.msra.mxu0 %v3734
        %7663 = vmatprep.subr.mxu0 0.0
        %7664 = vmatpush1.msra.mxu0 %v3733
        %7665 = vmatprep.subr.mxu0 0.0
        %7666 = vmatpush1.msra.mxu0 %v3732
        %7667 = vmatprep.subr.mxu0 0.0
        %7668 = vmatpush1.msra.mxu0 %v3731
        %7669 = vmatprep.subr.mxu0 0.0
        %7670 = vmatpush1.msra.mxu0 %v3016
        %7671 = vmatprep.subr.mxu0 0.0
        %7672 = vmatpush1.msra.mxu0 %v3015
        %7673 = vmatprep.subr.mxu0 0.0
        %7674 = vmatpush1.msra.mxu0 %v3014
        %7675 = vmatprep.subr.mxu0 0.0
        %7676 = vmatpush1.msra.mxu0 %v3013
        %7677 = vmatprep.subr.mxu0 0.0
        %7678 = vmatpush1.msra.mxu0 %v2236
        %7679 = vmatprep.subr.mxu0 0.0
        %7680 = vmatpush1.msra.mxu0 %v2235
        %7681 = vmatprep.subr.mxu0 0.0
        %7682 = vmatpush1.msra.mxu0 %v2234
        %7683 = vmatprep.subr.mxu0 0.0
        %7684 = vmatpush1.msra.mxu0 %v2233
        %7685 = vmatprep.subr.mxu0 0.0
        %7686 = vmatpush1.msra.mxu0 %v1424
        %7687 = vmatprep.subr.mxu0 0.0
        %7688 = vmatpush1.msra.mxu0 %v1423
        %7689 = vmatprep.subr.mxu0 0.0
        %7690 = vmatpush1.msra.mxu0 %v1422
        %7691 = vmatprep.subr.mxu0 0.0
        %7692 = vmatpush1.msra.mxu0 %v1421
        %7693 = vmatprep.subr.mxu0 0.0
        %7694 = vmatpush2.msra.mxu0 %v6856
        %7695 = vmatprep.subr.mxu0 0.0
        %7696 = vmatpush2.msra.mxu0 %v6855
        %7697 = vmatprep.subr.mxu0 0.0
        %7698 = vmatpush2.msra.mxu0 %v6854
        %7699 = vmatprep.subr.mxu0 0.0
        %7700 = vmatpush2.msra.mxu0 %v6853
        %7701 = vmatprep.subr.mxu0 0.0
        %7702 = vmatpush2.msra.mxu0 %v6044
        %7703 = vmatprep.subr.mxu0 0.0
        %7704 = vmatpush2.msra.mxu0 %v6043
        %7705 = vmatprep.subr.mxu0 0.0
        %7706 = vmatpush2.msra.mxu0 %v6042
        %7707 = vmatprep.subr.mxu0 0.0
        %7708 = vmatpush2.msra.mxu0 %v6041
        %7709 = vmatprep.subr.mxu0 0.0
        %7710 = vmatpush2.msra.mxu0 %v5326
        %7711 = vmatprep.subr.mxu0 0.0
        %7712 = vmatpush2.msra.mxu0 %v5325
        %7713 = vmatprep.subr.mxu0 0.0
        %7714 = vmatpush2.msra.mxu0 %v5324
        %7715 = vmatprep.subr.mxu0 0.0
        %7716 = vmatpush2.msra.mxu0 %v5323
        %7717 = vmatprep.subr.mxu0 0.0
        %7718 = vmatpush2.msra.mxu0 %v4546
        %7719 = vmatprep.subr.mxu0 0.0
        %7720 = vmatpush2.msra.mxu0 %v4545
        %7721 = vmatprep.subr.mxu0 0.0
        %7722 = vmatpush2.msra.mxu0 %v4544
        %7723 = vmatprep.subr.mxu0 0.0
        %7724 = vmatpush2.msra.mxu0 %v4543
        %7725 = vmatprep.mubr.f32.mxu0 %v7638
        %7726 = vmatmul.mubr.f32.gmra.mxu0 %v7637
        %v7727 = vpop.f32.mrf.mxu0
        %v7728 = vadd.f32 %v7650, %v7727
        %v7729 = vpop.f32.mrf.mxu0
        %7730 = vmatprep.mubr.f32.mxu0 %v7641
        %7731 = vmatmul.mubr.f32.gmra.mxu0 %v7640
        %v7732 = vpop.f32.mrf.mxu0
        %v7733 = vadd.f32 %v7654, %v7732
        %v7734 = vpop.f32.mrf.mxu0
        %7735 = vdwg.mxu0
        %7736 = vmatprep.subr.mxu0 0.0
        %7737 = vmatpush1.msra.mxu0 0.0
        %7738 = vmatprep.subr.mxu0 0.0
        %7739 = vmatpush1.msra.mxu0 0.0
        %7740 = vmatprep.subr.mxu0 0.0
        %7741 = vmatpush1.msra.mxu0 0.0
        %7742 = vmatprep.subr.mxu0 0.0
        %7743 = vmatpush1.msra.mxu0 0.0
        %7744 = vmatprep.subr.mxu0 0.0
        %7745 = vmatpush1.msra.mxu0 0.0
        %7746 = vmatprep.subr.mxu0 0.0
        %7747 = vmatpush1.msra.mxu0 0.0
        %7748 = vmatprep.subr.mxu0 0.0
        %7749 = vmatpush1.msra.mxu0 0.0
        %7750 = vmatprep.subr.mxu0 0.0
        %7751 = vmatpush1.msra.mxu0 0.0
        %7752 = vmatprep.subr.mxu0 0.0
        %7753 = vmatpush1.msra.mxu0 0.0
        %7754 = vmatprep.subr.mxu0 0.0
        %7755 = vmatpush1.msra.mxu0 0.0
        %7756 = vmatprep.subr.mxu0 0.0
        %7757 = vmatpush1.msra.mxu0 0.0
        %7758 = vmatprep.subr.mxu0 0.0
        %7759 = vmatpush1.msra.mxu0 0.0
        %7760 = vmatprep.subr.mxu0 0.0
        %7761 = vmatpush1.msra.mxu0 %v7636
        %7762 = vmatprep.subr.mxu0 0.0
        %7763 = vmatpush1.msra.mxu0 %v7635
        %7764 = vmatprep.subr.mxu0 0.0
        %7765 = vmatpush1.msra.mxu0 %v7634
        %7766 = vmatprep.subr.mxu0 0.0
        %7767 = vmatpush1.msra.mxu0 %v7633
        %7768 = vmatprep.subr.mxu0 0.0
        %7769 = vmatpush2.msra.mxu0 0.0
        %7770 = vmatprep.subr.mxu0 0.0
        %7771 = vmatpush2.msra.mxu0 0.0
        %7772 = vmatprep.subr.mxu0 0.0
        %7773 = vmatpush2.msra.mxu0 0.0
        %7774 = vmatprep.subr.mxu0 0.0
        %7775 = vmatpush2.msra.mxu0 0.0
        %7776 = vmatprep.subr.mxu0 0.0
        %7777 = vmatpush2.msra.mxu0 0.0
        %7778 = vmatprep.subr.mxu0 0.0
        %7779 = vmatpush2.msra.mxu0 0.0
        %7780 = vmatprep.subr.mxu0 0.0
        %7781 = vmatpush2.msra.mxu0 0.0
        %7782 = vmatprep.subr.mxu0 0.0
        %7783 = vmatpush2.msra.mxu0 0.0
        %7784 = vmatprep.subr.mxu0 0.0
        %7785 = vmatpush2.msra.mxu0 0.0
        %7786 = vmatprep.subr.mxu0 0.0
        %7787 = vmatpush2.msra.mxu0 0.0
        %7788 = vmatprep.subr.mxu0 0.0
        %7789 = vmatpush2.msra.mxu0 0.0
        %7790 = vmatprep.subr.mxu0 0.0
        %7791 = vmatpush2.msra.mxu0 0.0
        %7792 = vmatprep.subr.mxu0 0.0
        %7793 = vmatpush2.msra.mxu0 0.0
        %7794 = vmatprep.subr.mxu0 0.0
        %7795 = vmatpush2.msra.mxu0 0.0
        %7796 = vmatprep.subr.mxu0 0.0
        %7797 = vmatpush2.msra.mxu0 0.0
        %7798 = vmatprep.subr.mxu0 0.0
        %7799 = vmatpush2.msra.mxu0 0.0
        %7800 = vmatprep.mubr.f32.mxu0 0.0
        %7801 = vmatmul.mubr.f32.gmra.mxu0 %v7656
        %v7802 = vpop.f32.mrf.mxu0
        %v7803 = vadd.f32 %v7728, %v7802
        %v7804 = vpop.f32.mrf.mxu0
        %7805 = vmatprep.mubr.f32.mxu0 0.0
        %7806 = vmatmul.mubr.f32.gmra.mxu0 %v7659
        %v7807 = vpop.f32.mrf.mxu0
        %v7808 = vadd.f32 %v7733, %v7807
        %v7809 = vpop.f32.mrf.mxu0
        %7810 = vdwg.mxu0
        %7811 = vst [vmem:[%s203] sm:$0xff] %v7803
        %7812 = vst [vmem:[%s203 + $0x8] sm:$0xff] %v7808
        %s7813 = sand.u32 %s117, 1
        %s7814 = scalar_lea.sflag [#allocation4], %s7813
        %s7815 = sand.u32 %s117, 1
        %s7816 = smul.addr %s7815, 16
        %s7817 = scalar_lea.vmem [#allocation3], %s7816
        // Predicated region
        $region33: #{tpu_custom_call.1} parent=31 // pred_check
          %p7818 = pneg %p127
        $region34: #{tpu_custom_call.1} parent=31 // pred_check_branch
          %7820 = sbr.rel (%p7818) target = $region36
        $region35: #{tpu_custom_call.1} parent=31 // pred_region
          %s7822 = ssub.s32 256, 256
          %7823 = vsyncadd %s7814, %s7822
          %s7824 = smul.addr %s21, 4
          %s7825 = sadd.s32 %s22, %s7824
          %s7826 = smul.addr %s7825, 128
          %s7827 = scalar_lea.hbm %s3, %s7826
          %s7828 = sshll.u32 %s7817, 4
          %s7829 = int_to_ptr.vmem [resolvable:$true] %s7828
          %7834 = dma.vmem_to_hbm [thread:$0]  %s7829, 256, %s7827, %s7814, 128, 256, 8
        $region36: #{tpu_custom_call.1} parent=31 // pred_fallthru
          _
      $region32: #{tpu_custom_call.1} parent=5 // pred_fallthru
        _
      %p7835 = scmp.le.s32.totalorder 2, %s12
      // Predicated region
      $region37: #{tpu_custom_call.1} parent=5 // pred_check
        %p7836 = pneg %p7835
      $region38: #{tpu_custom_call.1} parent=5 // pred_check_branch
        %7838 = sbr.rel (%p7836) target = $region40
      $region39: #{tpu_custom_call.1} parent=5 // pred_region
        %s7839 = ssub.s32 %s12, 2
        // Predicated region
        $region41: #{tpu_custom_call.1} parent=39 // pred_check
          %p7840 = pneg %p133
        $region42: #{tpu_custom_call.1} parent=39 // pred_check_branch
          %7842 = sbr.rel (%p7840) target = $region44
        $region43: #{tpu_custom_call.1} parent=39 // pred_region
          %s7843 = sand.u32 %s118, 1
          %s7844 = scalar_lea.sflag [#allocation4], %s7843
          %s7845 = sand.u32 %s118, 1
          %s7846 = smul.addr %s7845, 16
          %s7847 = scalar_lea.vmem [#allocation3], %s7846
          %7848 = dma.done %s7844, 256
        $region44: #{tpu_custom_call.1} parent=39 // pred_fallthru
          _
      $region40: #{tpu_custom_call.1} parent=5 // pred_fallthru
        _
    $region6: #{tpu_custom_call.1} parent=1 // loop_footer
      %s16 = sadd.s32 1, %s12
    $region7: #{tpu_custom_call.1} parent=1 // loop_footer_branch
      %11 = sbr.rel target = $region3
    $region8: #{tpu_custom_call.1} parent=1 // loop_exit
      _
    %7849 = vsyncpa [#allocation4], 1
    %s7850 = scalar_lea.sflag [#allocation4], 1
    %7851 = vsyncpa %s7850, 1

</llo_original>
